<compile_context>
chip_gen: v7x
topology: tpu7x:2x2x1
jax: 0.10.0
libtpu: 0.0.40
codegen_flags: <defaults>
</compile_context>

<pallas_src>
import math

import jax
import jax.numpy as jnp
from jax import lax
from jax.experimental import pallas as pl
from jax.experimental.pallas import tpu as pltpu  # noqa: F401  (TPU backend assumed)

# ----- small ViT configuration (structure of torchvision vit_*, shrunk) -----
BATCH = 2
IN_CH = 3
IMAGE = 32
PATCH = 16
NUM_PATCHES = (IMAGE // PATCH) ** 2          # 4
SEQ = NUM_PATCHES + 1                        # 5  (class token + patches)
SEQ_PAD = 8                                  # sublane-padded tokens per image
HIDDEN = 32
NUM_HEADS = 4
HEAD_DIM = HIDDEN // NUM_HEADS               # 8
MLP_DIM = 64
NUM_LAYERS = 2
NUM_CLASSES = 10
CLASSES_PAD = 128                            # lane-dense classifier output slab
ROWS = BATCH * SEQ_PAD                       # 16 (= 2 full sublane groups)
PATCH_DIM = IN_CH * PATCH * PATCH            # 768 (lane-dense contraction dim)
LN_EPS = 1e-6                                # torchvision ViT LayerNorm eps


# ---------------------------- fused Pallas kernel ----------------------------

def _layernorm_noaffine(x):
    # gamma/beta are folded into the following weight matrix at pack time.
    mean = jnp.mean(x, axis=-1, keepdims=True)
    xc = x - mean
    var = jnp.mean(xc * xc, axis=-1, keepdims=True)
    return xc * lax.rsqrt(var + LN_EPS)


def _gelu(x):
    # exact GELU, same as torch.nn.GELU()
    return 0.5 * x * (1.0 + lax.erf(x * (1.0 / math.sqrt(2.0))))


def _vit_kernel(patches_ref, cls_pos_ref, conv_w_ref,
                w_in_ref, b_in_ref, wo_ref, ob_ref,
                w1_ref, b1_ref, w2_ref, b2_ref,
                head_w_ref, head_b_ref,
                out_ref):
    f32 = jnp.float32

    # Patch-embedding Conv2d as one matmul; cls token / positional embedding / conv
    # bias are pre-folded into cls_pos (zero rows feed the class-token & pad slots).
    x = jnp.dot(patches_ref[...], conv_w_ref[...], preferred_element_type=f32)
    x = x + cls_pos_ref[...]                                     # (ROWS, HIDDEN)

    # Additive attention-mask bias (hoisted out of the layer/head loops): a query row
    # may only attend to keys of the same image and only to the SEQ real tokens.
    row_ids = lax.broadcasted_iota(jnp.int32, (ROWS, ROWS), 0)
    col_ids = lax.broadcasted_iota(jnp.int32, (ROWS, ROWS), 1)
    same_img = (row_ids >> 3) == (col_ids >> 3)                  # SEQ_PAD == 8
    real_key = (col_ids & (SEQ_PAD - 1)) < SEQ
    mask_bias = jnp.where(jnp.logical_and(same_img, real_key),
                          jnp.float32(0.0), jnp.float32(-1e30))

    dims_qkT = (((1,), (1,)), ((), ()))                          # q @ k^T (contract last dims)

    for l in range(NUM_LAYERS):                                  # static unroll (2 layers)
        # ---- multi-head self-attention block ----
        y = _layernorm_noaffine(x)                               # LN1 affine folded into W_in
        # One fused in-projection matmul; query scale 1/sqrt(Dh) already folded in.
        qkv = jnp.dot(y, w_in_ref[l], preferred_element_type=f32) + b_in_ref[l]   # (ROWS, 96)
        attn = jnp.zeros((ROWS, HIDDEN), f32)
        for h in range(NUM_HEADS):                               # static unroll (4 heads)
            q = qkv[:, h * HEAD_DIM:(h + 1) * HEAD_DIM]
            k = qkv[:, HIDDEN + h * HEAD_DIM:HIDDEN + (h + 1) * HEAD_DIM]
            v = qkv[:, 2 * HIDDEN + h * HEAD_DIM:2 * HIDDEN + (h + 1) * HEAD_DIM]
            s = lax.dot_general(q, k, dims_qkT, preferred_element_type=f32) + mask_bias
            m = jnp.max(s, axis=-1, keepdims=True)
            p = jnp.exp(s - m)
            denom = jnp.sum(p, axis=-1, keepdims=True)
            p = p * pl.reciprocal(denom, approx=True)            # EUP, not VALU divide
            o = jnp.dot(p, v, preferred_element_type=f32)        # (ROWS, HEAD_DIM)
            # concat-over-heads + out-projection == sum of per-head projections
            attn = attn + jnp.dot(o, wo_ref[l, h], preferred_element_type=f32)
        x = x + attn + ob_ref[l]

        # ---- MLP block ----
        y2 = _layernorm_noaffine(x)                              # LN2 affine folded into W1
        hdn = _gelu(jnp.dot(y2, w1_ref[l], preferred_element_type=f32) + b1_ref[l])
        x = x + jnp.dot(hdn, w2_ref[l], preferred_element_type=f32) + b2_ref[l]

    # ---- final encoder LayerNorm + classifier head (LN affine folded into head) ----
    # Computed for all 16 rows (cost negligible) so the single HBM store is a full,
    # lane-dense (16, 128) slab; class-token rows are sliced outside.
    xn = _layernorm_noaffine(x)
    out_ref[...] = jnp.dot(xn, head_w_ref[...], preferred_element_type=f32) + head_b_ref[...]


# ---------------------------- parameters ----------------------------

def init_params(key):
    keys = iter(jax.random.split(key, 32))

    def nrm(shape, scale=0.02):
        return scale * jax.random.normal(next(keys), shape, dtype=jnp.float32)

    params = {
        "conv_w": nrm((PATCH_DIM, HIDDEN)),     # Conv2d(3, hidden, PATCH, PATCH) flattened (c,ph,pw)
        "conv_b": jnp.zeros((HIDDEN,), jnp.float32),
        "cls": nrm((1, 1, HIDDEN)),
        "pos": nrm((1, SEQ, HIDDEN)),
        "ln_g": jnp.ones((HIDDEN,), jnp.float32),
        "ln_b": jnp.zeros((HIDDEN,), jnp.float32),
        "head_w": nrm((HIDDEN, NUM_CLASSES)),   # replaced heads.head Linear
        "head_b": jnp.zeros((NUM_CLASSES,), jnp.float32),
        "layers": [],
    }
    for _ in range(NUM_LAYERS):
        params["layers"].append({
            "ln1_g": jnp.ones((HIDDEN,), jnp.float32),
            "ln1_b": jnp.zeros((HIDDEN,), jnp.float32),
            "in_w": nrm((HIDDEN, 3 * HIDDEN)),  # qkv in-projection (q|k|v columns, head-major)
            "in_b": jnp.zeros((3 * HIDDEN,), jnp.float32),
            "out_w": nrm((HIDDEN, HIDDEN)),
            "out_b": jnp.zeros((HIDDEN,), jnp.float32),
            "ln2_g": jnp.ones((HIDDEN,), jnp.float32),
            "ln2_b": jnp.zeros((HIDDEN,), jnp.float32),
            "mlp_w1": nrm((HIDDEN, MLP_DIM)),
            "mlp_b1": jnp.zeros((MLP_DIM,), jnp.float32),
            "mlp_w2": nrm((MLP_DIM, HIDDEN)),
            "mlp_b2": jnp.zeros((HIDDEN,), jnp.float32),
        })
    return params


def pack_params(params):
    """One-time repack of PyTorch-shaped params into kernel-friendly stacked slabs.

    Folds (exactly, at pack time):
      * conv bias + cls token + positional embedding into the cls_pos slab,
      * LN1 gamma/beta and the 1/sqrt(head_dim) query scale into W_in / b_in,
      * LN2 gamma/beta into mlp W1 / b1,
      * final-LN gamma/beta into the (128-lane padded) classifier head.
    """
    L = NUM_LAYERS
    scale = 1.0 / math.sqrt(HEAD_DIM)

    # Per-image sequence initializer: row 0 = cls + pos[0]; rows 1..4 = pos[s] + conv_b;
    # rows 5..7 = zero padding.
    cls_row = params["cls"].reshape(1, HIDDEN) + params["pos"][0, 0:1]
    patch_rows = params["pos"][0, 1:SEQ] + params["conv_b"].reshape(1, HIDDEN)
    pad_rows = jnp.zeros((SEQ_PAD - SEQ, HIDDEN), jnp.float32)
    per_image = jnp.concatenate([cls_row, patch_rows, pad_rows], axis=0)   # (SEQ_PAD, HIDDEN)
    cls_pos = jnp.tile(per_image, (BATCH, 1))                              # (ROWS, HIDDEN)

    def stack(name):
        return jnp.stack([lyr[name] for lyr in params["layers"]], axis=0)

    # --- fused QKV in-projection with LN1 affine + query scale folded in ---
    ln1_g, ln1_b = stack("ln1_g"), stack("ln1_b")            # (L, HIDDEN)
    in_w, in_b = stack("in_w"), stack("in_b")                # (L, HIDDEN, 3H), (L, 3H)
    w_in = ln1_g[:, :, None] * in_w
    b_in = jnp.einsum("ld,lde->le", ln1_b, in_w) + in_b
    qscale = jnp.concatenate([jnp.full((HIDDEN,), scale, jnp.float32),
                              jnp.ones((2 * HIDDEN,), jnp.float32)])
    w_in = w_in * qscale[None, None, :]
    b_in = b_in * qscale[None, :]

    # --- MLP first linear with LN2 affine folded in ---
    ln2_g, ln2_b = stack("ln2_g"), stack("ln2_b")
    w1, b1 = stack("mlp_w1"), stack("mlp_b1")
    w1f = ln2_g[:, :, None] * w1
    b1f = jnp.einsum("ld,lde->le", ln2_b, w1) + b1

    # --- classifier head padded to 128 lanes, with final-LN affine folded in ---
    head_w = jnp.zeros((HIDDEN, CLASSES_PAD), jnp.float32).at[:, :NUM_CLASSES].set(params["head_w"])
    head_b = jnp.zeros((CLASSES_PAD,), jnp.float32).at[:NUM_CLASSES].set(params["head_b"])
    head_wf = params["ln_g"][:, None] * head_w
    head_bf = params["ln_b"] @ head_w + head_b

    return {
        "cls_pos": cls_pos,
        "conv_w": params["conv_w"],
        "w_in": w_in,                                          # (L, HIDDEN, 3*HIDDEN)
        "b_in": b_in.reshape(L, 1, 3 * HIDDEN),
        "wo": stack("out_w").reshape(L, NUM_HEADS, HEAD_DIM, HIDDEN),  # out_w rows split per head
        "ob": stack("out_b").reshape(L, 1, HIDDEN),
        "w1": w1f,
        "b1": b1f.reshape(L, 1, MLP_DIM),
        "w2": stack("mlp_w2"),
        "b2": stack("mlp_b2").reshape(L, 1, HIDDEN),
        "head_w": head_wf,
        "head_b": head_bf.reshape(1, CLASSES_PAD),
    }


# ---------------------------- forward pass ----------------------------

@jax.jit
def vit_forward(packed, x):
    # x: (B, C, H, W) NCHW, like the PyTorch module.
    B, C, H, W = x.shape
    assert B == BATCH and C == IN_CH and H == IMAGE and W == IMAGE
    hn, wn = H // PATCH, W // PATCH

    # Patch-embedding Conv2d as patch-flatten (c, ph, pw order); the matmul runs in-kernel.
    patches = (x.reshape(B, C, hn, PATCH, wn, PATCH)
                 .transpose(0, 2, 4, 1, 3, 5)
                 .reshape(B, hn * wn, C * PATCH * PATCH))
    # Zero row 0 (class-token slot) and rows SEQ..SEQ_PAD-1 (sublane padding).
    patches = jnp.pad(patches, ((0, 0), (1, SEQ_PAD - 1 - hn * wn), (0, 0)))
    patches = patches.reshape(B * SEQ_PAD, C * PATCH * PATCH)    # (ROWS, PATCH_DIM)

    out = pl.pallas_call(
        _vit_kernel,
        out_shape=jax.ShapeDtypeStruct((B * SEQ_PAD, CLASSES_PAD), jnp.float32),
    )(patches, packed["cls_pos"], packed["conv_w"],
      packed["w_in"], packed["b_in"], packed["wo"], packed["ob"],
      packed["w1"], packed["b1"], packed["w2"], packed["b2"],
      packed["head_w"], packed["head_b"])

    # class token (position 0 of each image), real classes only
    return out.reshape(B, SEQ_PAD, CLASSES_PAD)[:, 0, :NUM_CLASSES]


# ---------------------------- pure-JAX reference (for correctness) ----------------------------

def vit_reference(params, x):
    B = x.shape[0]
    hn, wn = IMAGE // PATCH, IMAGE // PATCH
    patches = (x.reshape(B, IN_CH, hn, PATCH, wn, PATCH)
                 .transpose(0, 2, 4, 1, 3, 5)
                 .reshape(B, hn * wn, PATCH_DIM))
    tok = patches @ params["conv_w"] + params["conv_b"]
    cls = jnp.broadcast_to(params["cls"], (B, 1, HIDDEN))
    xx = jnp.concatenate([cls, tok], axis=1) + params["pos"]     # (B, SEQ, HIDDEN)

    def ln(z, g, b):
        mu = z.mean(-1, keepdims=True)
        zc = z - mu
        var = (zc * zc).mean(-1, keepdims=True)
        return zc / jnp.sqrt(var + LN_EPS) * g + b

    for lyr in params["layers"]:
        y = ln(xx, lyr["ln1_g"], lyr["ln1_b"])
        qkv = y @ lyr["in_w"] + lyr["in_b"]
        q, k, v = jnp.split(qkv, 3, axis=-1)

        def heads(t):
            return t.reshape(B, SEQ, NUM_HEADS, HEAD_DIM).transpose(0, 2, 1, 3)

        qh, kh, vh = heads(q), heads(k), heads(v)
        s = jnp.einsum("bhqd,bhkd->bhqk", qh, kh) / math.sqrt(HEAD_DIM)
        p = jax.nn.softmax(s, axis=-1)
        o = jnp.einsum("bhqk,bhkd->bhqd", p, vh).transpose(0, 2, 1, 3).reshape(B, SEQ, HIDDEN)
        xx = xx + o @ lyr["out_w"] + lyr["out_b"]

        y2 = ln(xx, lyr["ln2_g"], lyr["ln2_b"])
        hdn = y2 @ lyr["mlp_w1"] + lyr["mlp_b1"]
        hdn = 0.5 * hdn * (1.0 + lax.erf(hdn / math.sqrt(2.0)))
        xx = xx + hdn @ lyr["mlp_w2"] + lyr["mlp_b2"]

    xn = ln(xx, params["ln_g"], params["ln_b"])
    return xn[:, 0] @ params["head_w"] + params["head_b"]


if __name__ == "__main__":
    key = jax.random.PRNGKey(0)
    kp, kx = jax.random.split(key)
    params = init_params(kp)
    packed = pack_params(params)
    x = jax.random.normal(kx, (BATCH, IN_CH, IMAGE, IMAGE), dtype=jnp.float32)

    logits = vit_forward(packed, x)
    jax.block_until_ready(logits)
    assert logits.shape == (BATCH, NUM_CLASSES)

    ref = vit_reference(params, x)
    assert jnp.allclose(logits, ref, atol=1e-3, rtol=1e-2), \
        f"max abs diff {float(jnp.max(jnp.abs(logits - ref)))}"
    print("KERNEL_OK")
</pallas_src>

<mosaic_0001>
module attributes {stable_mosaic.version = 11 : i64} {
  func.func @_vit_kernel(%arg0: memref<16x768xf32, #tpu.memory_space<vmem>>, %arg1: memref<16x32xf32, #tpu.memory_space<vmem>>, %arg2: memref<768x32xf32, #tpu.memory_space<vmem>>, %arg3: memref<2x32x96xf32, #tpu.memory_space<vmem>>, %arg4: memref<2x1x96xf32, #tpu.memory_space<vmem>>, %arg5: memref<2x4x8x32xf32, #tpu.memory_space<vmem>>, %arg6: memref<2x1x32xf32, #tpu.memory_space<vmem>>, %arg7: memref<2x32x64xf32, #tpu.memory_space<vmem>>, %arg8: memref<2x1x64xf32, #tpu.memory_space<vmem>>, %arg9: memref<2x64x32xf32, #tpu.memory_space<vmem>>, %arg10: memref<2x1x32xf32, #tpu.memory_space<vmem>>, %arg11: memref<32x128xf32, #tpu.memory_space<vmem>>, %arg12: memref<1x128xf32, #tpu.memory_space<vmem>>, %arg13: memref<16x128xf32, #tpu.memory_space<vmem>>) attributes {dimension_semantics = [], scalar_prefetch = 0 : i64, scratch_operands = 0 : i64, tpu.core_type = #tpu.core_type<tc>} {
    %c0 = arith.constant 0 : index
    %c0_0 = arith.constant 0 : index
    %0 = vector.load %arg0[%c0, %c0_0] : memref<16x768xf32, #tpu.memory_space<vmem>>, vector<16x768xf32>
    %c0_1 = arith.constant 0 : index
    %c0_2 = arith.constant 0 : index
    %1 = vector.load %arg2[%c0_1, %c0_2] : memref<768x32xf32, #tpu.memory_space<vmem>>, vector<768x32xf32>
    %cst = arith.constant dense<0.000000e+00> : vector<16x32xf32>
    %2 = tpu.matmul %0, %1, %cst {dimension_numbers = #tpu.dot_dimension_numbers<[1], [0], [0], [1], [0, 0, 1, 1], [], []>} : vector<16x768xf32>, vector<768x32xf32>, vector<16x32xf32> -> vector<16x32xf32>
    %c0_3 = arith.constant 0 : index
    %c0_4 = arith.constant 0 : index
    %3 = vector.load %arg1[%c0_3, %c0_4] : memref<16x32xf32, #tpu.memory_space<vmem>>, vector<16x32xf32>
    %4 = arith.addf %2, %3 : vector<16x32xf32>
    %5 = tpu.iota {dimensions = array<i32: 0>} : vector<16x16xi32>
    %6 = tpu.iota {dimensions = array<i32: 1>} : vector<16x16xi32>
    %c3_i32 = arith.constant 3 : i32
    %7 = vector.broadcast %c3_i32 : i32 to vector<16x16xi32>
    %8 = arith.shrsi %5, %7 : vector<16x16xi32>
    %c3_i32_5 = arith.constant 3 : i32
    %9 = vector.broadcast %c3_i32_5 : i32 to vector<16x16xi32>
    %10 = arith.shrsi %6, %9 : vector<16x16xi32>
    %11 = arith.cmpi eq, %8, %10 : vector<16x16xi32>
    %c7_i32 = arith.constant 7 : i32
    %12 = vector.broadcast %c7_i32 : i32 to vector<16x16xi32>
    %13 = arith.andi %6, %12 : vector<16x16xi32>
    %c5_i32 = arith.constant 5 : i32
    %14 = vector.broadcast %c5_i32 : i32 to vector<16x16xi32>
    %15 = arith.cmpi slt, %13, %14 : vector<16x16xi32>
    %16 = arith.andi %11, %15 : vector<16x16xi1>
    %cst_6 = arith.constant 0.000000e+00 : f32
    %cst_7 = arith.constant -1.000000e+30 : f32
    %17 = vector.broadcast %cst_6 : f32 to vector<16x16xf32>
    %18 = vector.broadcast %cst_7 : f32 to vector<16x16xf32>
    %19 = arith.select %16, %17, %18 : vector<16x16xi1>, vector<16x16xf32>
    %cst_8 = arith.constant dense<0.000000e+00> : vector<16xf32>
    %20 = vector.multi_reduction <add>, %4, %cst_8 [1] : vector<16x32xf32> to vector<16xf32>
    %21 = vector.shape_cast %20 : vector<16xf32> to vector<16x1xf32>
    %cst_9 = arith.constant 3.200000e+01 : f32
    %22 = vector.broadcast %cst_9 : f32 to vector<16x1xf32>
    %23 = arith.divf %21, %22 : vector<16x1xf32>
    %24 = vector.broadcast %23 : vector<16x1xf32> to vector<16x32xf32>
    %25 = arith.subf %4, %24 : vector<16x32xf32>
    %26 = arith.mulf %25, %25 : vector<16x32xf32>
    %cst_10 = arith.constant dense<0.000000e+00> : vector<16xf32>
    %27 = vector.multi_reduction <add>, %26, %cst_10 [1] : vector<16x32xf32> to vector<16xf32>
    %28 = vector.shape_cast %27 : vector<16xf32> to vector<16x1xf32>
    %cst_11 = arith.constant 3.200000e+01 : f32
    %29 = vector.broadcast %cst_11 : f32 to vector<16x1xf32>
    %30 = arith.divf %28, %29 : vector<16x1xf32>
    %cst_12 = arith.constant 9.99999997E-7 : f32
    %31 = vector.broadcast %cst_12 : f32 to vector<16x1xf32>
    %32 = arith.addf %30, %31 : vector<16x1xf32>
    %33 = math.rsqrt %32 : vector<16x1xf32>
    %34 = vector.broadcast %33 : vector<16x1xf32> to vector<16x32xf32>
    %35 = arith.mulf %25, %34 : vector<16x32xf32>
    %c0_13 = arith.constant 0 : index
    %c0_14 = arith.constant 0 : index
    %c0_15 = arith.constant 0 : index
    %36 = vector.load %arg3[%c0_13, %c0_14, %c0_15] : memref<2x32x96xf32, #tpu.memory_space<vmem>>, vector<1x32x96xf32>
    %37 = vector.shape_cast %36 : vector<1x32x96xf32> to vector<32x96xf32>
    %cst_16 = arith.constant dense<0.000000e+00> : vector<16x96xf32>
    %38 = tpu.matmul %35, %37, %cst_16 {dimension_numbers = #tpu.dot_dimension_numbers<[1], [0], [0], [1], [0, 0, 1, 1], [], []>} : vector<16x32xf32>, vector<32x96xf32>, vector<16x96xf32> -> vector<16x96xf32>
    %c0_17 = arith.constant 0 : index
    %c0_18 = arith.constant 0 : index
    %c0_19 = arith.constant 0 : index
    %39 = vector.load %arg4[%c0_17, %c0_18, %c0_19] : memref<2x1x96xf32, #tpu.memory_space<vmem>>, vector<1x1x96xf32>
    %40 = vector.shape_cast %39 : vector<1x1x96xf32> to vector<1x96xf32>
    %41 = vector.broadcast %40 : vector<1x96xf32> to vector<16x96xf32>
    %42 = arith.addf %38, %41 : vector<16x96xf32>
    %cst_20 = arith.constant 0.000000e+00 : f32
    %43 = vector.broadcast %cst_20 : f32 to vector<16x32xf32>
    %44 = vector.extract_strided_slice %42 {offsets = [0, 0], sizes = [16, 8], strides = [1, 1]} : vector<16x96xf32> to vector<16x8xf32>
    %45 = vector.extract_strided_slice %42 {offsets = [0, 32], sizes = [16, 8], strides = [1, 1]} : vector<16x96xf32> to vector<16x8xf32>
    %46 = vector.extract_strided_slice %42 {offsets = [0, 64], sizes = [16, 8], strides = [1, 1]} : vector<16x96xf32> to vector<16x8xf32>
    %cst_21 = arith.constant dense<0.000000e+00> : vector<16x16xf32>
    %47 = tpu.matmul %44, %45, %cst_21 {dimension_numbers = #tpu.dot_dimension_numbers<[1], [1], [0], [0], [0, 0, 1, 0], [], []>} : vector<16x8xf32>, vector<16x8xf32>, vector<16x16xf32> -> vector<16x16xf32>
    %48 = arith.addf %47, %19 : vector<16x16xf32>
    %cst_22 = arith.constant dense<0xFF800000> : vector<16xf32>
    %49 = vector.multi_reduction <maximumf>, %48, %cst_22 [1] : vector<16x16xf32> to vector<16xf32>
    %50 = vector.shape_cast %49 : vector<16xf32> to vector<16x1xf32>
    %51 = vector.broadcast %50 : vector<16x1xf32> to vector<16x16xf32>
    %52 = arith.subf %48, %51 : vector<16x16xf32>
    %53 = math.exp %52 : vector<16x16xf32>
    %cst_23 = arith.constant dense<0.000000e+00> : vector<16xf32>
    %54 = vector.multi_reduction <add>, %53, %cst_23 [1] : vector<16x16xf32> to vector<16xf32>
    %55 = vector.shape_cast %54 : vector<16xf32> to vector<16x1xf32>
    %56 = tpu.reciprocal %55 {approx = true} : vector<16x1xf32> -> vector<16x1xf32>
    %57 = vector.broadcast %56 : vector<16x1xf32> to vector<16x16xf32>
    %58 = arith.mulf %53, %57 : vector<16x16xf32>
    %cst_24 = arith.constant dense<0.000000e+00> : vector<16x8xf32>
    %59 = tpu.matmul %58, %46, %cst_24 {dimension_numbers = #tpu.dot_dimension_numbers<[1], [0], [0], [1], [0, 0, 1, 1], [], []>} : vector<16x16xf32>, vector<16x8xf32>, vector<16x8xf32> -> vector<16x8xf32>
    %c0_25 = arith.constant 0 : index
    %c0_26 = arith.constant 0 : index
    %c0_27 = arith.constant 0 : index
    %c0_28 = arith.constant 0 : index
    %60 = vector.load %arg5[%c0_25, %c0_26, %c0_27, %c0_28] : memref<2x4x8x32xf32, #tpu.memory_space<vmem>>, vector<1x1x8x32xf32>
    %61 = vector.shape_cast %60 : vector<1x1x8x32xf32> to vector<8x32xf32>
    %cst_29 = arith.constant dense<0.000000e+00> : vector<16x32xf32>
    %62 = tpu.matmul %59, %61, %cst_29 {dimension_numbers = #tpu.dot_dimension_numbers<[1], [0], [0], [1], [0, 0, 1, 1], [], []>} : vector<16x8xf32>, vector<8x32xf32>, vector<16x32xf32> -> vector<16x32xf32>
    %63 = arith.addf %43, %62 : vector<16x32xf32>
    %64 = vector.extract_strided_slice %42 {offsets = [0, 8], sizes = [16, 8], strides = [1, 1]} : vector<16x96xf32> to vector<16x8xf32>
    %65 = vector.extract_strided_slice %42 {offsets = [0, 40], sizes = [16, 8], strides = [1, 1]} : vector<16x96xf32> to vector<16x8xf32>
    %66 = vector.extract_strided_slice %42 {offsets = [0, 72], sizes = [16, 8], strides = [1, 1]} : vector<16x96xf32> to vector<16x8xf32>
    %cst_30 = arith.constant dense<0.000000e+00> : vector<16x16xf32>
    %67 = tpu.matmul %64, %65, %cst_30 {dimension_numbers = #tpu.dot_dimension_numbers<[1], [1], [0], [0], [0, 0, 1, 0], [], []>} : vector<16x8xf32>, vector<16x8xf32>, vector<16x16xf32> -> vector<16x16xf32>
    %68 = arith.addf %67, %19 : vector<16x16xf32>
    %cst_31 = arith.constant dense<0xFF800000> : vector<16xf32>
    %69 = vector.multi_reduction <maximumf>, %68, %cst_31 [1] : vector<16x16xf32> to vector<16xf32>
    %70 = vector.shape_cast %69 : vector<16xf32> to vector<16x1xf32>
    %71 = vector.broadcast %70 : vector<16x1xf32> to vector<16x16xf32>
    %72 = arith.subf %68, %71 : vector<16x16xf32>
    %73 = math.exp %72 : vector<16x16xf32>
    %cst_32 = arith.constant dense<0.000000e+00> : vector<16xf32>
    %74 = vector.multi_reduction <add>, %73, %cst_32 [1] : vector<16x16xf32> to vector<16xf32>
    %75 = vector.shape_cast %74 : vector<16xf32> to vector<16x1xf32>
    %76 = tpu.reciprocal %75 {approx = true} : vector<16x1xf32> -> vector<16x1xf32>
    %77 = vector.broadcast %76 : vector<16x1xf32> to vector<16x16xf32>
    %78 = arith.mulf %73, %77 : vector<16x16xf32>
    %cst_33 = arith.constant dense<0.000000e+00> : vector<16x8xf32>
    %79 = tpu.matmul %78, %66, %cst_33 {dimension_numbers = #tpu.dot_dimension_numbers<[1], [0], [0], [1], [0, 0, 1, 1], [], []>} : vector<16x16xf32>, vector<16x8xf32>, vector<16x8xf32> -> vector<16x8xf32>
    %c0_34 = arith.constant 0 : index
    %c1 = arith.constant 1 : index
    %c0_35 = arith.constant 0 : index
    %c0_36 = arith.constant 0 : index
    %80 = vector.load %arg5[%c0_34, %c1, %c0_35, %c0_36] : memref<2x4x8x32xf32, #tpu.memory_space<vmem>>, vector<1x1x8x32xf32>
    %81 = vector.shape_cast %80 : vector<1x1x8x32xf32> to vector<8x32xf32>
    %cst_37 = arith.constant dense<0.000000e+00> : vector<16x32xf32>
    %82 = tpu.matmul %79, %81, %cst_37 {dimension_numbers = #tpu.dot_dimension_numbers<[1], [0], [0], [1], [0, 0, 1, 1], [], []>} : vector<16x8xf32>, vector<8x32xf32>, vector<16x32xf32> -> vector<16x32xf32>
    %83 = arith.addf %63, %82 : vector<16x32xf32>
    %84 = vector.extract_strided_slice %42 {offsets = [0, 16], sizes = [16, 8], strides = [1, 1]} : vector<16x96xf32> to vector<16x8xf32>
    %85 = vector.extract_strided_slice %42 {offsets = [0, 48], sizes = [16, 8], strides = [1, 1]} : vector<16x96xf32> to vector<16x8xf32>
    %86 = vector.extract_strided_slice %42 {offsets = [0, 80], sizes = [16, 8], strides = [1, 1]} : vector<16x96xf32> to vector<16x8xf32>
    %cst_38 = arith.constant dense<0.000000e+00> : vector<16x16xf32>
    %87 = tpu.matmul %84, %85, %cst_38 {dimension_numbers = #tpu.dot_dimension_numbers<[1], [1], [0], [0], [0, 0, 1, 0], [], []>} : vector<16x8xf32>, vector<16x8xf32>, vector<16x16xf32> -> vector<16x16xf32>
    %88 = arith.addf %87, %19 : vector<16x16xf32>
    %cst_39 = arith.constant dense<0xFF800000> : vector<16xf32>
    %89 = vector.multi_reduction <maximumf>, %88, %cst_39 [1] : vector<16x16xf32> to vector<16xf32>
    %90 = vector.shape_cast %89 : vector<16xf32> to vector<16x1xf32>
    %91 = vector.broadcast %90 : vector<16x1xf32> to vector<16x16xf32>
    %92 = arith.subf %88, %91 : vector<16x16xf32>
    %93 = math.exp %92 : vector<16x16xf32>
    %cst_40 = arith.constant dense<0.000000e+00> : vector<16xf32>
    %94 = vector.multi_reduction <add>, %93, %cst_40 [1] : vector<16x16xf32> to vector<16xf32>
    %95 = vector.shape_cast %94 : vector<16xf32> to vector<16x1xf32>
    %96 = tpu.reciprocal %95 {approx = true} : vector<16x1xf32> -> vector<16x1xf32>
    %97 = vector.broadcast %96 : vector<16x1xf32> to vector<16x16xf32>
    %98 = arith.mulf %93, %97 : vector<16x16xf32>
    %cst_41 = arith.constant dense<0.000000e+00> : vector<16x8xf32>
    %99 = tpu.matmul %98, %86, %cst_41 {dimension_numbers = #tpu.dot_dimension_numbers<[1], [0], [0], [1], [0, 0, 1, 1], [], []>} : vector<16x16xf32>, vector<16x8xf32>, vector<16x8xf32> -> vector<16x8xf32>
    %c0_42 = arith.constant 0 : index
    %c2 = arith.constant 2 : index
    %c0_43 = arith.constant 0 : index
    %c0_44 = arith.constant 0 : index
    %100 = vector.load %arg5[%c0_42, %c2, %c0_43, %c0_44] : memref<2x4x8x32xf32, #tpu.memory_space<vmem>>, vector<1x1x8x32xf32>
    %101 = vector.shape_cast %100 : vector<1x1x8x32xf32> to vector<8x32xf32>
    %cst_45 = arith.constant dense<0.000000e+00> : vector<16x32xf32>
    %102 = tpu.matmul %99, %101, %cst_45 {dimension_numbers = #tpu.dot_dimension_numbers<[1], [0], [0], [1], [0, 0, 1, 1], [], []>} : vector<16x8xf32>, vector<8x32xf32>, vector<16x32xf32> -> vector<16x32xf32>
    %103 = arith.addf %83, %102 : vector<16x32xf32>
    %104 = vector.extract_strided_slice %42 {offsets = [0, 24], sizes = [16, 8], strides = [1, 1]} : vector<16x96xf32> to vector<16x8xf32>
    %105 = vector.extract_strided_slice %42 {offsets = [0, 56], sizes = [16, 8], strides = [1, 1]} : vector<16x96xf32> to vector<16x8xf32>
    %106 = vector.extract_strided_slice %42 {offsets = [0, 88], sizes = [16, 8], strides = [1, 1]} : vector<16x96xf32> to vector<16x8xf32>
    %cst_46 = arith.constant dense<0.000000e+00> : vector<16x16xf32>
    %107 = tpu.matmul %104, %105, %cst_46 {dimension_numbers = #tpu.dot_dimension_numbers<[1], [1], [0], [0], [0, 0, 1, 0], [], []>} : vector<16x8xf32>, vector<16x8xf32>, vector<16x16xf32> -> vector<16x16xf32>
    %108 = arith.addf %107, %19 : vector<16x16xf32>
    %cst_47 = arith.constant dense<0xFF800000> : vector<16xf32>
    %109 = vector.multi_reduction <maximumf>, %108, %cst_47 [1] : vector<16x16xf32> to vector<16xf32>
    %110 = vector.shape_cast %109 : vector<16xf32> to vector<16x1xf32>
    %111 = vector.broadcast %110 : vector<16x1xf32> to vector<16x16xf32>
    %112 = arith.subf %108, %111 : vector<16x16xf32>
    %113 = math.exp %112 : vector<16x16xf32>
    %cst_48 = arith.constant dense<0.000000e+00> : vector<16xf32>
    %114 = vector.multi_reduction <add>, %113, %cst_48 [1] : vector<16x16xf32> to vector<16xf32>
    %115 = vector.shape_cast %114 : vector<16xf32> to vector<16x1xf32>
    %116 = tpu.reciprocal %115 {approx = true} : vector<16x1xf32> -> vector<16x1xf32>
    %117 = vector.broadcast %116 : vector<16x1xf32> to vector<16x16xf32>
    %118 = arith.mulf %113, %117 : vector<16x16xf32>
    %cst_49 = arith.constant dense<0.000000e+00> : vector<16x8xf32>
    %119 = tpu.matmul %118, %106, %cst_49 {dimension_numbers = #tpu.dot_dimension_numbers<[1], [0], [0], [1], [0, 0, 1, 1], [], []>} : vector<16x16xf32>, vector<16x8xf32>, vector<16x8xf32> -> vector<16x8xf32>
    %c0_50 = arith.constant 0 : index
    %c3 = arith.constant 3 : index
    %c0_51 = arith.constant 0 : index
    %c0_52 = arith.constant 0 : index
    %120 = vector.load %arg5[%c0_50, %c3, %c0_51, %c0_52] : memref<2x4x8x32xf32, #tpu.memory_space<vmem>>, vector<1x1x8x32xf32>
    %121 = vector.shape_cast %120 : vector<1x1x8x32xf32> to vector<8x32xf32>
    %cst_53 = arith.constant dense<0.000000e+00> : vector<16x32xf32>
    %122 = tpu.matmul %119, %121, %cst_53 {dimension_numbers = #tpu.dot_dimension_numbers<[1], [0], [0], [1], [0, 0, 1, 1], [], []>} : vector<16x8xf32>, vector<8x32xf32>, vector<16x32xf32> -> vector<16x32xf32>
    %123 = arith.addf %103, %122 : vector<16x32xf32>
    %124 = arith.addf %4, %123 : vector<16x32xf32>
    %c0_54 = arith.constant 0 : index
    %c0_55 = arith.constant 0 : index
    %c0_56 = arith.constant 0 : index
    %125 = vector.load %arg6[%c0_54, %c0_55, %c0_56] : memref<2x1x32xf32, #tpu.memory_space<vmem>>, vector<1x1x32xf32>
    %126 = vector.shape_cast %125 : vector<1x1x32xf32> to vector<1x32xf32>
    %127 = vector.broadcast %126 : vector<1x32xf32> to vector<16x32xf32>
    %128 = arith.addf %124, %127 : vector<16x32xf32>
    %cst_57 = arith.constant dense<0.000000e+00> : vector<16xf32>
    %129 = vector.multi_reduction <add>, %128, %cst_57 [1] : vector<16x32xf32> to vector<16xf32>
    %130 = vector.shape_cast %129 : vector<16xf32> to vector<16x1xf32>
    %cst_58 = arith.constant 3.200000e+01 : f32
    %131 = vector.broadcast %cst_58 : f32 to vector<16x1xf32>
    %132 = arith.divf %130, %131 : vector<16x1xf32>
    %133 = vector.broadcast %132 : vector<16x1xf32> to vector<16x32xf32>
    %134 = arith.subf %128, %133 : vector<16x32xf32>
    %135 = arith.mulf %134, %134 : vector<16x32xf32>
    %cst_59 = arith.constant dense<0.000000e+00> : vector<16xf32>
    %136 = vector.multi_reduction <add>, %135, %cst_59 [1] : vector<16x32xf32> to vector<16xf32>
    %137 = vector.shape_cast %136 : vector<16xf32> to vector<16x1xf32>
    %cst_60 = arith.constant 3.200000e+01 : f32
    %138 = vector.broadcast %cst_60 : f32 to vector<16x1xf32>
    %139 = arith.divf %137, %138 : vector<16x1xf32>
    %cst_61 = arith.constant 9.99999997E-7 : f32
    %140 = vector.broadcast %cst_61 : f32 to vector<16x1xf32>
    %141 = arith.addf %139, %140 : vector<16x1xf32>
    %142 = math.rsqrt %141 : vector<16x1xf32>
    %143 = vector.broadcast %142 : vector<16x1xf32> to vector<16x32xf32>
    %144 = arith.mulf %134, %143 : vector<16x32xf32>
    %c0_62 = arith.constant 0 : index
    %c0_63 = arith.constant 0 : index
    %c0_64 = arith.constant 0 : index
    %145 = vector.load %arg7[%c0_62, %c0_63, %c0_64] : memref<2x32x64xf32, #tpu.memory_space<vmem>>, vector<1x32x64xf32>
    %146 = vector.shape_cast %145 : vector<1x32x64xf32> to vector<32x64xf32>
    %cst_65 = arith.constant dense<0.000000e+00> : vector<16x64xf32>
    %147 = tpu.matmul %144, %146, %cst_65 {dimension_numbers = #tpu.dot_dimension_numbers<[1], [0], [0], [1], [0, 0, 1, 1], [], []>} : vector<16x32xf32>, vector<32x64xf32>, vector<16x64xf32> -> vector<16x64xf32>
    %c0_66 = arith.constant 0 : index
    %c0_67 = arith.constant 0 : index
    %c0_68 = arith.constant 0 : index
    %148 = vector.load %arg8[%c0_66, %c0_67, %c0_68] : memref<2x1x64xf32, #tpu.memory_space<vmem>>, vector<1x1x64xf32>
    %149 = vector.shape_cast %148 : vector<1x1x64xf32> to vector<1x64xf32>
    %150 = vector.broadcast %149 : vector<1x64xf32> to vector<16x64xf32>
    %151 = arith.addf %147, %150 : vector<16x64xf32>
    %cst_69 = arith.constant 5.000000e-01 : f32
    %152 = vector.broadcast %cst_69 : f32 to vector<16x64xf32>
    %153 = arith.mulf %152, %151 : vector<16x64xf32>
    %cst_70 = arith.constant 0.707106769 : f32
    %154 = vector.broadcast %cst_70 : f32 to vector<16x64xf32>
    %155 = arith.mulf %151, %154 : vector<16x64xf32>
    %156 = math.erf %155 : vector<16x64xf32>
    %cst_71 = arith.constant 1.000000e+00 : f32
    %157 = vector.broadcast %cst_71 : f32 to vector<16x64xf32>
    %158 = arith.addf %157, %156 : vector<16x64xf32>
    %159 = arith.mulf %153, %158 : vector<16x64xf32>
    %c0_72 = arith.constant 0 : index
    %c0_73 = arith.constant 0 : index
    %c0_74 = arith.constant 0 : index
    %160 = vector.load %arg9[%c0_72, %c0_73, %c0_74] : memref<2x64x32xf32, #tpu.memory_space<vmem>>, vector<1x64x32xf32>
    %161 = vector.shape_cast %160 : vector<1x64x32xf32> to vector<64x32xf32>
    %cst_75 = arith.constant dense<0.000000e+00> : vector<16x32xf32>
    %162 = tpu.matmul %159, %161, %cst_75 {dimension_numbers = #tpu.dot_dimension_numbers<[1], [0], [0], [1], [0, 0, 1, 1], [], []>} : vector<16x64xf32>, vector<64x32xf32>, vector<16x32xf32> -> vector<16x32xf32>
    %163 = arith.addf %128, %162 : vector<16x32xf32>
    %c0_76 = arith.constant 0 : index
    %c0_77 = arith.constant 0 : index
    %c0_78 = arith.constant 0 : index
    %164 = vector.load %arg10[%c0_76, %c0_77, %c0_78] : memref<2x1x32xf32, #tpu.memory_space<vmem>>, vector<1x1x32xf32>
    %165 = vector.shape_cast %164 : vector<1x1x32xf32> to vector<1x32xf32>
    %166 = vector.broadcast %165 : vector<1x32xf32> to vector<16x32xf32>
    %167 = arith.addf %163, %166 : vector<16x32xf32>
    %cst_79 = arith.constant dense<0.000000e+00> : vector<16xf32>
    %168 = vector.multi_reduction <add>, %167, %cst_79 [1] : vector<16x32xf32> to vector<16xf32>
    %169 = vector.shape_cast %168 : vector<16xf32> to vector<16x1xf32>
    %cst_80 = arith.constant 3.200000e+01 : f32
    %170 = vector.broadcast %cst_80 : f32 to vector<16x1xf32>
    %171 = arith.divf %169, %170 : vector<16x1xf32>
    %172 = vector.broadcast %171 : vector<16x1xf32> to vector<16x32xf32>
    %173 = arith.subf %167, %172 : vector<16x32xf32>
    %174 = arith.mulf %173, %173 : vector<16x32xf32>
    %cst_81 = arith.constant dense<0.000000e+00> : vector<16xf32>
    %175 = vector.multi_reduction <add>, %174, %cst_81 [1] : vector<16x32xf32> to vector<16xf32>
    %176 = vector.shape_cast %175 : vector<16xf32> to vector<16x1xf32>
    %cst_82 = arith.constant 3.200000e+01 : f32
    %177 = vector.broadcast %cst_82 : f32 to vector<16x1xf32>
    %178 = arith.divf %176, %177 : vector<16x1xf32>
    %cst_83 = arith.constant 9.99999997E-7 : f32
    %179 = vector.broadcast %cst_83 : f32 to vector<16x1xf32>
    %180 = arith.addf %178, %179 : vector<16x1xf32>
    %181 = math.rsqrt %180 : vector<16x1xf32>
    %182 = vector.broadcast %181 : vector<16x1xf32> to vector<16x32xf32>
    %183 = arith.mulf %173, %182 : vector<16x32xf32>
    %c1_84 = arith.constant 1 : index
    %c0_85 = arith.constant 0 : index
    %c0_86 = arith.constant 0 : index
    %184 = vector.load %arg3[%c1_84, %c0_85, %c0_86] : memref<2x32x96xf32, #tpu.memory_space<vmem>>, vector<1x32x96xf32>
    %185 = vector.shape_cast %184 : vector<1x32x96xf32> to vector<32x96xf32>
    %cst_87 = arith.constant dense<0.000000e+00> : vector<16x96xf32>
    %186 = tpu.matmul %183, %185, %cst_87 {dimension_numbers = #tpu.dot_dimension_numbers<[1], [0], [0], [1], [0, 0, 1, 1], [], []>} : vector<16x32xf32>, vector<32x96xf32>, vector<16x96xf32> -> vector<16x96xf32>
    %c1_88 = arith.constant 1 : index
    %c0_89 = arith.constant 0 : index
    %c0_90 = arith.constant 0 : index
    %187 = vector.load %arg4[%c1_88, %c0_89, %c0_90] : memref<2x1x96xf32, #tpu.memory_space<vmem>>, vector<1x1x96xf32>
    %188 = vector.shape_cast %187 : vector<1x1x96xf32> to vector<1x96xf32>
    %189 = vector.broadcast %188 : vector<1x96xf32> to vector<16x96xf32>
    %190 = arith.addf %186, %189 : vector<16x96xf32>
    %cst_91 = arith.constant 0.000000e+00 : f32
    %191 = vector.broadcast %cst_91 : f32 to vector<16x32xf32>
    %192 = vector.extract_strided_slice %190 {offsets = [0, 0], sizes = [16, 8], strides = [1, 1]} : vector<16x96xf32> to vector<16x8xf32>
    %193 = vector.extract_strided_slice %190 {offsets = [0, 32], sizes = [16, 8], strides = [1, 1]} : vector<16x96xf32> to vector<16x8xf32>
    %194 = vector.extract_strided_slice %190 {offsets = [0, 64], sizes = [16, 8], strides = [1, 1]} : vector<16x96xf32> to vector<16x8xf32>
    %cst_92 = arith.constant dense<0.000000e+00> : vector<16x16xf32>
    %195 = tpu.matmul %192, %193, %cst_92 {dimension_numbers = #tpu.dot_dimension_numbers<[1], [1], [0], [0], [0, 0, 1, 0], [], []>} : vector<16x8xf32>, vector<16x8xf32>, vector<16x16xf32> -> vector<16x16xf32>
    %196 = arith.addf %195, %19 : vector<16x16xf32>
    %cst_93 = arith.constant dense<0xFF800000> : vector<16xf32>
    %197 = vector.multi_reduction <maximumf>, %196, %cst_93 [1] : vector<16x16xf32> to vector<16xf32>
    %198 = vector.shape_cast %197 : vector<16xf32> to vector<16x1xf32>
    %199 = vector.broadcast %198 : vector<16x1xf32> to vector<16x16xf32>
    %200 = arith.subf %196, %199 : vector<16x16xf32>
    %201 = math.exp %200 : vector<16x16xf32>
    %cst_94 = arith.constant dense<0.000000e+00> : vector<16xf32>
    %202 = vector.multi_reduction <add>, %201, %cst_94 [1] : vector<16x16xf32> to vector<16xf32>
    %203 = vector.shape_cast %202 : vector<16xf32> to vector<16x1xf32>
    %204 = tpu.reciprocal %203 {approx = true} : vector<16x1xf32> -> vector<16x1xf32>
    %205 = vector.broadcast %204 : vector<16x1xf32> to vector<16x16xf32>
    %206 = arith.mulf %201, %205 : vector<16x16xf32>
    %cst_95 = arith.constant dense<0.000000e+00> : vector<16x8xf32>
    %207 = tpu.matmul %206, %194, %cst_95 {dimension_numbers = #tpu.dot_dimension_numbers<[1], [0], [0], [1], [0, 0, 1, 1], [], []>} : vector<16x16xf32>, vector<16x8xf32>, vector<16x8xf32> -> vector<16x8xf32>
    %c1_96 = arith.constant 1 : index
    %c0_97 = arith.constant 0 : index
    %c0_98 = arith.constant 0 : index
    %c0_99 = arith.constant 0 : index
    %208 = vector.load %arg5[%c1_96, %c0_97, %c0_98, %c0_99] : memref<2x4x8x32xf32, #tpu.memory_space<vmem>>, vector<1x1x8x32xf32>
    %209 = vector.shape_cast %208 : vector<1x1x8x32xf32> to vector<8x32xf32>
    %cst_100 = arith.constant dense<0.000000e+00> : vector<16x32xf32>
    %210 = tpu.matmul %207, %209, %cst_100 {dimension_numbers = #tpu.dot_dimension_numbers<[1], [0], [0], [1], [0, 0, 1, 1], [], []>} : vector<16x8xf32>, vector<8x32xf32>, vector<16x32xf32> -> vector<16x32xf32>
    %211 = arith.addf %191, %210 : vector<16x32xf32>
    %212 = vector.extract_strided_slice %190 {offsets = [0, 8], sizes = [16, 8], strides = [1, 1]} : vector<16x96xf32> to vector<16x8xf32>
    %213 = vector.extract_strided_slice %190 {offsets = [0, 40], sizes = [16, 8], strides = [1, 1]} : vector<16x96xf32> to vector<16x8xf32>
    %214 = vector.extract_strided_slice %190 {offsets = [0, 72], sizes = [16, 8], strides = [1, 1]} : vector<16x96xf32> to vector<16x8xf32>
    %cst_101 = arith.constant dense<0.000000e+00> : vector<16x16xf32>
    %215 = tpu.matmul %212, %213, %cst_101 {dimension_numbers = #tpu.dot_dimension_numbers<[1], [1], [0], [0], [0, 0, 1, 0], [], []>} : vector<16x8xf32>, vector<16x8xf32>, vector<16x16xf32> -> vector<16x16xf32>
    %216 = arith.addf %215, %19 : vector<16x16xf32>
    %cst_102 = arith.constant dense<0xFF800000> : vector<16xf32>
    %217 = vector.multi_reduction <maximumf>, %216, %cst_102 [1] : vector<16x16xf32> to vector<16xf32>
    %218 = vector.shape_cast %217 : vector<16xf32> to vector<16x1xf32>
    %219 = vector.broadcast %218 : vector<16x1xf32> to vector<16x16xf32>
    %220 = arith.subf %216, %219 : vector<16x16xf32>
    %221 = math.exp %220 : vector<16x16xf32>
    %cst_103 = arith.constant dense<0.000000e+00> : vector<16xf32>
    %222 = vector.multi_reduction <add>, %221, %cst_103 [1] : vector<16x16xf32> to vector<16xf32>
    %223 = vector.shape_cast %222 : vector<16xf32> to vector<16x1xf32>
    %224 = tpu.reciprocal %223 {approx = true} : vector<16x1xf32> -> vector<16x1xf32>
    %225 = vector.broadcast %224 : vector<16x1xf32> to vector<16x16xf32>
    %226 = arith.mulf %221, %225 : vector<16x16xf32>
    %cst_104 = arith.constant dense<0.000000e+00> : vector<16x8xf32>
    %227 = tpu.matmul %226, %214, %cst_104 {dimension_numbers = #tpu.dot_dimension_numbers<[1], [0], [0], [1], [0, 0, 1, 1], [], []>} : vector<16x16xf32>, vector<16x8xf32>, vector<16x8xf32> -> vector<16x8xf32>
    %c1_105 = arith.constant 1 : index
    %c1_106 = arith.constant 1 : index
    %c0_107 = arith.constant 0 : index
    %c0_108 = arith.constant 0 : index
    %228 = vector.load %arg5[%c1_105, %c1_106, %c0_107, %c0_108] : memref<2x4x8x32xf32, #tpu.memory_space<vmem>>, vector<1x1x8x32xf32>
    %229 = vector.shape_cast %228 : vector<1x1x8x32xf32> to vector<8x32xf32>
    %cst_109 = arith.constant dense<0.000000e+00> : vector<16x32xf32>
    %230 = tpu.matmul %227, %229, %cst_109 {dimension_numbers = #tpu.dot_dimension_numbers<[1], [0], [0], [1], [0, 0, 1, 1], [], []>} : vector<16x8xf32>, vector<8x32xf32>, vector<16x32xf32> -> vector<16x32xf32>
    %231 = arith.addf %211, %230 : vector<16x32xf32>
    %232 = vector.extract_strided_slice %190 {offsets = [0, 16], sizes = [16, 8], strides = [1, 1]} : vector<16x96xf32> to vector<16x8xf32>
    %233 = vector.extract_strided_slice %190 {offsets = [0, 48], sizes = [16, 8], strides = [1, 1]} : vector<16x96xf32> to vector<16x8xf32>
    %234 = vector.extract_strided_slice %190 {offsets = [0, 80], sizes = [16, 8], strides = [1, 1]} : vector<16x96xf32> to vector<16x8xf32>
    %cst_110 = arith.constant dense<0.000000e+00> : vector<16x16xf32>
    %235 = tpu.matmul %232, %233, %cst_110 {dimension_numbers = #tpu.dot_dimension_numbers<[1], [1], [0], [0], [0, 0, 1, 0], [], []>} : vector<16x8xf32>, vector<16x8xf32>, vector<16x16xf32> -> vector<16x16xf32>
    %236 = arith.addf %235, %19 : vector<16x16xf32>
    %cst_111 = arith.constant dense<0xFF800000> : vector<16xf32>
    %237 = vector.multi_reduction <maximumf>, %236, %cst_111 [1] : vector<16x16xf32> to vector<16xf32>
    %238 = vector.shape_cast %237 : vector<16xf32> to vector<16x1xf32>
    %239 = vector.broadcast %238 : vector<16x1xf32> to vector<16x16xf32>
    %240 = arith.subf %236, %239 : vector<16x16xf32>
    %241 = math.exp %240 : vector<16x16xf32>
    %cst_112 = arith.constant dense<0.000000e+00> : vector<16xf32>
    %242 = vector.multi_reduction <add>, %241, %cst_112 [1] : vector<16x16xf32> to vector<16xf32>
    %243 = vector.shape_cast %242 : vector<16xf32> to vector<16x1xf32>
    %244 = tpu.reciprocal %243 {approx = true} : vector<16x1xf32> -> vector<16x1xf32>
    %245 = vector.broadcast %244 : vector<16x1xf32> to vector<16x16xf32>
    %246 = arith.mulf %241, %245 : vector<16x16xf32>
    %cst_113 = arith.constant dense<0.000000e+00> : vector<16x8xf32>
    %247 = tpu.matmul %246, %234, %cst_113 {dimension_numbers = #tpu.dot_dimension_numbers<[1], [0], [0], [1], [0, 0, 1, 1], [], []>} : vector<16x16xf32>, vector<16x8xf32>, vector<16x8xf32> -> vector<16x8xf32>
    %c1_114 = arith.constant 1 : index
    %c2_115 = arith.constant 2 : index
    %c0_116 = arith.constant 0 : index
    %c0_117 = arith.constant 0 : index
    %248 = vector.load %arg5[%c1_114, %c2_115, %c0_116, %c0_117] : memref<2x4x8x32xf32, #tpu.memory_space<vmem>>, vector<1x1x8x32xf32>
    %249 = vector.shape_cast %248 : vector<1x1x8x32xf32> to vector<8x32xf32>
    %cst_118 = arith.constant dense<0.000000e+00> : vector<16x32xf32>
    %250 = tpu.matmul %247, %249, %cst_118 {dimension_numbers = #tpu.dot_dimension_numbers<[1], [0], [0], [1], [0, 0, 1, 1], [], []>} : vector<16x8xf32>, vector<8x32xf32>, vector<16x32xf32> -> vector<16x32xf32>
    %251 = arith.addf %231, %250 : vector<16x32xf32>
    %252 = vector.extract_strided_slice %190 {offsets = [0, 24], sizes = [16, 8], strides = [1, 1]} : vector<16x96xf32> to vector<16x8xf32>
    %253 = vector.extract_strided_slice %190 {offsets = [0, 56], sizes = [16, 8], strides = [1, 1]} : vector<16x96xf32> to vector<16x8xf32>
    %254 = vector.extract_strided_slice %190 {offsets = [0, 88], sizes = [16, 8], strides = [1, 1]} : vector<16x96xf32> to vector<16x8xf32>
    %cst_119 = arith.constant dense<0.000000e+00> : vector<16x16xf32>
    %255 = tpu.matmul %252, %253, %cst_119 {dimension_numbers = #tpu.dot_dimension_numbers<[1], [1], [0], [0], [0, 0, 1, 0], [], []>} : vector<16x8xf32>, vector<16x8xf32>, vector<16x16xf32> -> vector<16x16xf32>
    %256 = arith.addf %255, %19 : vector<16x16xf32>
    %cst_120 = arith.constant dense<0xFF800000> : vector<16xf32>
    %257 = vector.multi_reduction <maximumf>, %256, %cst_120 [1] : vector<16x16xf32> to vector<16xf32>
    %258 = vector.shape_cast %257 : vector<16xf32> to vector<16x1xf32>
    %259 = vector.broadcast %258 : vector<16x1xf32> to vector<16x16xf32>
    %260 = arith.subf %256, %259 : vector<16x16xf32>
    %261 = math.exp %260 : vector<16x16xf32>
    %cst_121 = arith.constant dense<0.000000e+00> : vector<16xf32>
    %262 = vector.multi_reduction <add>, %261, %cst_121 [1] : vector<16x16xf32> to vector<16xf32>
    %263 = vector.shape_cast %262 : vector<16xf32> to vector<16x1xf32>
    %264 = tpu.reciprocal %263 {approx = true} : vector<16x1xf32> -> vector<16x1xf32>
    %265 = vector.broadcast %264 : vector<16x1xf32> to vector<16x16xf32>
    %266 = arith.mulf %261, %265 : vector<16x16xf32>
    %cst_122 = arith.constant dense<0.000000e+00> : vector<16x8xf32>
    %267 = tpu.matmul %266, %254, %cst_122 {dimension_numbers = #tpu.dot_dimension_numbers<[1], [0], [0], [1], [0, 0, 1, 1], [], []>} : vector<16x16xf32>, vector<16x8xf32>, vector<16x8xf32> -> vector<16x8xf32>
    %c1_123 = arith.constant 1 : index
    %c3_124 = arith.constant 3 : index
    %c0_125 = arith.constant 0 : index
    %c0_126 = arith.constant 0 : index
    %268 = vector.load %arg5[%c1_123, %c3_124, %c0_125, %c0_126] : memref<2x4x8x32xf32, #tpu.memory_space<vmem>>, vector<1x1x8x32xf32>
    %269 = vector.shape_cast %268 : vector<1x1x8x32xf32> to vector<8x32xf32>
    %cst_127 = arith.constant dense<0.000000e+00> : vector<16x32xf32>
    %270 = tpu.matmul %267, %269, %cst_127 {dimension_numbers = #tpu.dot_dimension_numbers<[1], [0], [0], [1], [0, 0, 1, 1], [], []>} : vector<16x8xf32>, vector<8x32xf32>, vector<16x32xf32> -> vector<16x32xf32>
    %271 = arith.addf %251, %270 : vector<16x32xf32>
    %272 = arith.addf %167, %271 : vector<16x32xf32>
    %c1_128 = arith.constant 1 : index
    %c0_129 = arith.constant 0 : index
    %c0_130 = arith.constant 0 : index
    %273 = vector.load %arg6[%c1_128, %c0_129, %c0_130] : memref<2x1x32xf32, #tpu.memory_space<vmem>>, vector<1x1x32xf32>
    %274 = vector.shape_cast %273 : vector<1x1x32xf32> to vector<1x32xf32>
    %275 = vector.broadcast %274 : vector<1x32xf32> to vector<16x32xf32>
    %276 = arith.addf %272, %275 : vector<16x32xf32>
    %cst_131 = arith.constant dense<0.000000e+00> : vector<16xf32>
    %277 = vector.multi_reduction <add>, %276, %cst_131 [1] : vector<16x32xf32> to vector<16xf32>
    %278 = vector.shape_cast %277 : vector<16xf32> to vector<16x1xf32>
    %cst_132 = arith.constant 3.200000e+01 : f32
    %279 = vector.broadcast %cst_132 : f32 to vector<16x1xf32>
    %280 = arith.divf %278, %279 : vector<16x1xf32>
    %281 = vector.broadcast %280 : vector<16x1xf32> to vector<16x32xf32>
    %282 = arith.subf %276, %281 : vector<16x32xf32>
    %283 = arith.mulf %282, %282 : vector<16x32xf32>
    %cst_133 = arith.constant dense<0.000000e+00> : vector<16xf32>
    %284 = vector.multi_reduction <add>, %283, %cst_133 [1] : vector<16x32xf32> to vector<16xf32>
    %285 = vector.shape_cast %284 : vector<16xf32> to vector<16x1xf32>
    %cst_134 = arith.constant 3.200000e+01 : f32
    %286 = vector.broadcast %cst_134 : f32 to vector<16x1xf32>
    %287 = arith.divf %285, %286 : vector<16x1xf32>
    %cst_135 = arith.constant 9.99999997E-7 : f32
    %288 = vector.broadcast %cst_135 : f32 to vector<16x1xf32>
    %289 = arith.addf %287, %288 : vector<16x1xf32>
    %290 = math.rsqrt %289 : vector<16x1xf32>
    %291 = vector.broadcast %290 : vector<16x1xf32> to vector<16x32xf32>
    %292 = arith.mulf %282, %291 : vector<16x32xf32>
    %c1_136 = arith.constant 1 : index
    %c0_137 = arith.constant 0 : index
    %c0_138 = arith.constant 0 : index
    %293 = vector.load %arg7[%c1_136, %c0_137, %c0_138] : memref<2x32x64xf32, #tpu.memory_space<vmem>>, vector<1x32x64xf32>
    %294 = vector.shape_cast %293 : vector<1x32x64xf32> to vector<32x64xf32>
    %cst_139 = arith.constant dense<0.000000e+00> : vector<16x64xf32>
    %295 = tpu.matmul %292, %294, %cst_139 {dimension_numbers = #tpu.dot_dimension_numbers<[1], [0], [0], [1], [0, 0, 1, 1], [], []>} : vector<16x32xf32>, vector<32x64xf32>, vector<16x64xf32> -> vector<16x64xf32>
    %c1_140 = arith.constant 1 : index
    %c0_141 = arith.constant 0 : index
    %c0_142 = arith.constant 0 : index
    %296 = vector.load %arg8[%c1_140, %c0_141, %c0_142] : memref<2x1x64xf32, #tpu.memory_space<vmem>>, vector<1x1x64xf32>
    %297 = vector.shape_cast %296 : vector<1x1x64xf32> to vector<1x64xf32>
    %298 = vector.broadcast %297 : vector<1x64xf32> to vector<16x64xf32>
    %299 = arith.addf %295, %298 : vector<16x64xf32>
    %cst_143 = arith.constant 5.000000e-01 : f32
    %300 = vector.broadcast %cst_143 : f32 to vector<16x64xf32>
    %301 = arith.mulf %300, %299 : vector<16x64xf32>
    %cst_144 = arith.constant 0.707106769 : f32
    %302 = vector.broadcast %cst_144 : f32 to vector<16x64xf32>
    %303 = arith.mulf %299, %302 : vector<16x64xf32>
    %304 = math.erf %303 : vector<16x64xf32>
    %cst_145 = arith.constant 1.000000e+00 : f32
    %305 = vector.broadcast %cst_145 : f32 to vector<16x64xf32>
    %306 = arith.addf %305, %304 : vector<16x64xf32>
    %307 = arith.mulf %301, %306 : vector<16x64xf32>
    %c1_146 = arith.constant 1 : index
    %c0_147 = arith.constant 0 : index
    %c0_148 = arith.constant 0 : index
    %308 = vector.load %arg9[%c1_146, %c0_147, %c0_148] : memref<2x64x32xf32, #tpu.memory_space<vmem>>, vector<1x64x32xf32>
    %309 = vector.shape_cast %308 : vector<1x64x32xf32> to vector<64x32xf32>
    %cst_149 = arith.constant dense<0.000000e+00> : vector<16x32xf32>
    %310 = tpu.matmul %307, %309, %cst_149 {dimension_numbers = #tpu.dot_dimension_numbers<[1], [0], [0], [1], [0, 0, 1, 1], [], []>} : vector<16x64xf32>, vector<64x32xf32>, vector<16x32xf32> -> vector<16x32xf32>
    %311 = arith.addf %276, %310 : vector<16x32xf32>
    %c1_150 = arith.constant 1 : index
    %c0_151 = arith.constant 0 : index
    %c0_152 = arith.constant 0 : index
    %312 = vector.load %arg10[%c1_150, %c0_151, %c0_152] : memref<2x1x32xf32, #tpu.memory_space<vmem>>, vector<1x1x32xf32>
    %313 = vector.shape_cast %312 : vector<1x1x32xf32> to vector<1x32xf32>
    %314 = vector.broadcast %313 : vector<1x32xf32> to vector<16x32xf32>
    %315 = arith.addf %311, %314 : vector<16x32xf32>
    %cst_153 = arith.constant dense<0.000000e+00> : vector<16xf32>
    %316 = vector.multi_reduction <add>, %315, %cst_153 [1] : vector<16x32xf32> to vector<16xf32>
    %317 = vector.shape_cast %316 : vector<16xf32> to vector<16x1xf32>
    %cst_154 = arith.constant 3.200000e+01 : f32
    %318 = vector.broadcast %cst_154 : f32 to vector<16x1xf32>
    %319 = arith.divf %317, %318 : vector<16x1xf32>
    %320 = vector.broadcast %319 : vector<16x1xf32> to vector<16x32xf32>
    %321 = arith.subf %315, %320 : vector<16x32xf32>
    %322 = arith.mulf %321, %321 : vector<16x32xf32>
    %cst_155 = arith.constant dense<0.000000e+00> : vector<16xf32>
    %323 = vector.multi_reduction <add>, %322, %cst_155 [1] : vector<16x32xf32> to vector<16xf32>
    %324 = vector.shape_cast %323 : vector<16xf32> to vector<16x1xf32>
    %cst_156 = arith.constant 3.200000e+01 : f32
    %325 = vector.broadcast %cst_156 : f32 to vector<16x1xf32>
    %326 = arith.divf %324, %325 : vector<16x1xf32>
    %cst_157 = arith.constant 9.99999997E-7 : f32
    %327 = vector.broadcast %cst_157 : f32 to vector<16x1xf32>
    %328 = arith.addf %326, %327 : vector<16x1xf32>
    %329 = math.rsqrt %328 : vector<16x1xf32>
    %330 = vector.broadcast %329 : vector<16x1xf32> to vector<16x32xf32>
    %331 = arith.mulf %321, %330 : vector<16x32xf32>
    %c0_158 = arith.constant 0 : index
    %c0_159 = arith.constant 0 : index
    %332 = vector.load %arg11[%c0_158, %c0_159] : memref<32x128xf32, #tpu.memory_space<vmem>>, vector<32x128xf32>
    %cst_160 = arith.constant dense<0.000000e+00> : vector<16x128xf32>
    %333 = tpu.matmul %331, %332, %cst_160 {dimension_numbers = #tpu.dot_dimension_numbers<[1], [0], [0], [1], [0, 0, 1, 1], [], []>} : vector<16x32xf32>, vector<32x128xf32>, vector<16x128xf32> -> vector<16x128xf32>
    %c0_161 = arith.constant 0 : index
    %c0_162 = arith.constant 0 : index
    %334 = vector.load %arg12[%c0_161, %c0_162] : memref<1x128xf32, #tpu.memory_space<vmem>>, vector<1x128xf32>
    %335 = vector.broadcast %334 : vector<1x128xf32> to vector<16x128xf32>
    %336 = arith.addf %333, %335 : vector<16x128xf32>
    %c0_163 = arith.constant 0 : index
    %c0_164 = arith.constant 0 : index
    %337 = vector.load %arg13[%c0_163, %c0_164] : memref<16x128xf32, #tpu.memory_space<vmem>>, vector<16x128xf32>
    tpu.vector_store %arg13[%c0_163, %c0_164], %336 {strides = array<i32>} : memref<16x128xf32, #tpu.memory_space<vmem>>, vector<16x128xf32>,
    return
  }
}

</mosaic_0001>

<llo_original>
// kernel: vit_forward.1
$region0: #{vit_forward.1}
  #allocation0 [shape = 'u32[]', space=smem, size = 0x4, offset = 0x4, fixed_abs, tag = 'smem constant byte address 0x4 - core index']
  #allocation1 [shape = 'u32[144,128]{1,0:T(1,128)}', space=vmem, size = 0x12000, scoped, tag = 'internal scratch']
  %s0 = inlined_call_operand.vmem [shape: f32[16,768], index: 0, kind: input, shape index: {}]
  %s1 = inlined_call_operand.vmem [shape: f32[16,32], index: 1, kind: input, shape index: {}]
  %s2 = inlined_call_operand.vmem [shape: f32[768,32], index: 2, kind: input, shape index: {}]
  %s3 = inlined_call_operand.vmem [shape: f32[2,32,96], index: 3, kind: input, shape index: {}]
  %s4 = inlined_call_operand.vmem [shape: f32[2,1,96], index: 4, kind: input, shape index: {}]
  %s5 = inlined_call_operand.vmem [shape: f32[2,4,8,32], index: 5, kind: input, shape index: {}]
  %s6 = inlined_call_operand.vmem [shape: f32[2,1,32], index: 6, kind: input, shape index: {}]
  %s7 = inlined_call_operand.vmem [shape: f32[2,32,64], index: 7, kind: input, shape index: {}]
  %s8 = inlined_call_operand.vmem [shape: f32[2,1,64], index: 8, kind: input, shape index: {}]
  %s9 = inlined_call_operand.vmem [shape: f32[2,64,32], index: 9, kind: input, shape index: {}]
  %s10 = inlined_call_operand.vmem [shape: f32[2,1,32], index: 10, kind: input, shape index: {}]
  %s11 = inlined_call_operand.vmem [shape: f32[32,128], index: 11, kind: input, shape index: {}]
  %s12 = inlined_call_operand.vmem [shape: f32[1,128], index: 12, kind: input, shape index: {}]
  %s13 = inlined_call_operand.vmem [shape: f32[16,128], index: 13, kind: output, shape index: {}]
  %s14 = sld [smem:[#allocation0]]
  $region62: #{vit_forward.1} parent=0
    _
  %s16 = ssub.s32 1, %s14
  %s17 = scalar_select 0, %s16, %s14
  // Predicated region
  $region2: #{vit_forward.1} parent=0 // pred_check
    _
  $region3: #{vit_forward.1} parent=0 // pred_check_branch
    %19 = sbr.rel (0) target = $region5
  $region4: #{vit_forward.1} parent=0 // pred_region
    _
  $region5: #{vit_forward.1} parent=0 // pred_fallthru
    _
  // Predicated region
  $region6: #{vit_forward.1} parent=0 // pred_check
    _
  $region7: #{vit_forward.1} parent=0 // pred_check_branch
    %21 = sbr.rel (0) target = $region9
  $region8: #{vit_forward.1} parent=0 // pred_region
    _
  $region9: #{vit_forward.1} parent=0 // pred_fallthru
    _
  // Predicated region
  $region10: #{vit_forward.1} parent=0 // pred_check
    _
  $region11: #{vit_forward.1} parent=0 // pred_check_branch
    %23 = sbr.rel (0) target = $region13
  $region12: #{vit_forward.1} parent=0 // pred_region
    _
  $region13: #{vit_forward.1} parent=0 // pred_fallthru
    _
  // Predicated region
  $region14: #{vit_forward.1} parent=0 // pred_check
    _
  $region15: #{vit_forward.1} parent=0 // pred_check_branch
    %25 = sbr.rel (0) target = $region17
  $region16: #{vit_forward.1} parent=0 // pred_region
    _
  $region17: #{vit_forward.1} parent=0 // pred_fallthru
    _
  // Predicated region
  $region18: #{vit_forward.1} parent=0 // pred_check
    _
  $region19: #{vit_forward.1} parent=0 // pred_check_branch
    %27 = sbr.rel (0) target = $region21
  $region20: #{vit_forward.1} parent=0 // pred_region
    _
  $region21: #{vit_forward.1} parent=0 // pred_fallthru
    _
  // Predicated region
  $region22: #{vit_forward.1} parent=0 // pred_check
    _
  $region23: #{vit_forward.1} parent=0 // pred_check_branch
    %29 = sbr.rel (0) target = $region25
  $region24: #{vit_forward.1} parent=0 // pred_region
    _
  $region25: #{vit_forward.1} parent=0 // pred_fallthru
    _
  // Predicated region
  $region26: #{vit_forward.1} parent=0 // pred_check
    _
  $region27: #{vit_forward.1} parent=0 // pred_check_branch
    %31 = sbr.rel (0) target = $region29
  $region28: #{vit_forward.1} parent=0 // pred_region
    _
  $region29: #{vit_forward.1} parent=0 // pred_fallthru
    _
  // Predicated region
  $region30: #{vit_forward.1} parent=0 // pred_check
    _
  $region31: #{vit_forward.1} parent=0 // pred_check_branch
    %33 = sbr.rel (0) target = $region33
  $region32: #{vit_forward.1} parent=0 // pred_region
    _
  $region33: #{vit_forward.1} parent=0 // pred_fallthru
    _
  // Predicated region
  $region34: #{vit_forward.1} parent=0 // pred_check
    _
  $region35: #{vit_forward.1} parent=0 // pred_check_branch
    %35 = sbr.rel (0) target = $region37
  $region36: #{vit_forward.1} parent=0 // pred_region
    _
  $region37: #{vit_forward.1} parent=0 // pred_fallthru
    _
  // Predicated region
  $region38: #{vit_forward.1} parent=0 // pred_check
    _
  $region39: #{vit_forward.1} parent=0 // pred_check_branch
    %37 = sbr.rel (0) target = $region41
  $region40: #{vit_forward.1} parent=0 // pred_region
    _
  $region41: #{vit_forward.1} parent=0 // pred_fallthru
    _
  // Predicated region
  $region42: #{vit_forward.1} parent=0 // pred_check
    _
  $region43: #{vit_forward.1} parent=0 // pred_check_branch
    %39 = sbr.rel (0) target = $region45
  $region44: #{vit_forward.1} parent=0 // pred_region
    _
  $region45: #{vit_forward.1} parent=0 // pred_fallthru
    _
  // Predicated region
  $region46: #{vit_forward.1} parent=0 // pred_check
    _
  $region47: #{vit_forward.1} parent=0 // pred_check_branch
    %41 = sbr.rel (0) target = $region49
  $region48: #{vit_forward.1} parent=0 // pred_region
    _
  $region49: #{vit_forward.1} parent=0 // pred_fallthru
    _
  // Predicated region
  $region50: #{vit_forward.1} parent=0 // pred_check
    _
  $region51: #{vit_forward.1} parent=0 // pred_check_branch
    %43 = sbr.rel (0) target = $region53
  $region52: #{vit_forward.1} parent=0 // pred_region
    _
  $region53: #{vit_forward.1} parent=0 // pred_fallthru
    _
  %v44 = vld [vmem:[%s0] sm:$0xff]
  %v45 = vld [vmem:[%s0 + $0x8] sm:$0xff]
  %v46 = vld [vmem:[%s0 + $0x10] sm:$0xff]
  %v47 = vld [vmem:[%s0 + $0x18] sm:$0xff]
  %v48 = vld [vmem:[%s0 + $0x20] sm:$0xff]
  %v49 = vld [vmem:[%s0 + $0x28] sm:$0xff]
  %v50 = vld [vmem:[%s0 + $0x30] sm:$0xff]
  %v51 = vld [vmem:[%s0 + $0x38] sm:$0xff]
  %v52 = vld [vmem:[%s0 + $0x40] sm:$0xff]
  %v53 = vld [vmem:[%s0 + $0x48] sm:$0xff]
  %v54 = vld [vmem:[%s0 + $0x50] sm:$0xff]
  %v55 = vld [vmem:[%s0 + $0x58] sm:$0xff]
  %v56 = vld [vmem:[%s2] sm:$0xff]
  %v57 = vld [vmem:[%s2 + $0x8] sm:$0xff]
  %v58 = vld [vmem:[%s2 + $0x10] sm:$0xff]
  %v59 = vld [vmem:[%s2 + $0x18] sm:$0xff]
  %v60 = vld [vmem:[%s2 + $0x20] sm:$0xff]
  %v61 = vld [vmem:[%s2 + $0x28] sm:$0xff]
  %v62 = vld [vmem:[%s2 + $0x30] sm:$0xff]
  %v63 = vld [vmem:[%s2 + $0x38] sm:$0xff]
  %v64 = vld [vmem:[%s2 + $0x40] sm:$0xff]
  %v65 = vld [vmem:[%s2 + $0x48] sm:$0xff]
  %v66 = vld [vmem:[%s2 + $0x50] sm:$0xff]
  %v67 = vld [vmem:[%s2 + $0x58] sm:$0xff]
  %v68 = vld [vmem:[%s2 + $0x60] sm:$0xff]
  %v69 = vld [vmem:[%s2 + $0x68] sm:$0xff]
  %v70 = vld [vmem:[%s2 + $0x70] sm:$0xff]
  %v71 = vld [vmem:[%s2 + $0x78] sm:$0xff]
  %v72 = vld [vmem:[%s2 + $0x80] sm:$0xff]
  %v73 = vld [vmem:[%s2 + $0x88] sm:$0xff]
  %v74 = vld [vmem:[%s2 + $0x90] sm:$0xff]
  %v75 = vld [vmem:[%s2 + $0x98] sm:$0xff]
  %v76 = vld [vmem:[%s2 + $0xa0] sm:$0xff]
  %v77 = vld [vmem:[%s2 + $0xa8] sm:$0xff]
  %v78 = vld [vmem:[%s2 + $0xb0] sm:$0xff]
  %v79 = vld [vmem:[%s2 + $0xb8] sm:$0xff]
  %v80 = vld [vmem:[%s2 + $0xc0] sm:$0xff]
  %v81 = vld [vmem:[%s2 + $0xc8] sm:$0xff]
  %v82 = vld [vmem:[%s2 + $0xd0] sm:$0xff]
  %v83 = vld [vmem:[%s2 + $0xd8] sm:$0xff]
  %v84 = vld [vmem:[%s2 + $0xe0] sm:$0xff]
  %v85 = vld [vmem:[%s2 + $0xe8] sm:$0xff]
  %v86 = vld [vmem:[%s2 + $0xf0] sm:$0xff]
  %v87 = vld [vmem:[%s2 + $0xf8] sm:$0xff]
  %v88 = vld [vmem:[%s2 + $0x100] sm:$0xff]
  %v89 = vld [vmem:[%s2 + $0x108] sm:$0xff]
  %v90 = vld [vmem:[%s2 + $0x110] sm:$0xff]
  %v91 = vld [vmem:[%s2 + $0x118] sm:$0xff]
  %v92 = vld [vmem:[%s2 + $0x120] sm:$0xff]
  %v93 = vld [vmem:[%s2 + $0x128] sm:$0xff]
  %v94 = vld [vmem:[%s2 + $0x130] sm:$0xff]
  %v95 = vld [vmem:[%s2 + $0x138] sm:$0xff]
  %v96 = vld [vmem:[%s2 + $0x140] sm:$0xff]
  %v97 = vld [vmem:[%s2 + $0x148] sm:$0xff]
  %v98 = vld [vmem:[%s2 + $0x150] sm:$0xff]
  %v99 = vld [vmem:[%s2 + $0x158] sm:$0xff]
  %v100 = vld [vmem:[%s2 + $0x160] sm:$0xff]
  %v101 = vld [vmem:[%s2 + $0x168] sm:$0xff]
  %v102 = vld [vmem:[%s2 + $0x170] sm:$0xff]
  %v103 = vld [vmem:[%s2 + $0x178] sm:$0xff]
  %v104 = vld [vmem:[%s2 + $0x180] sm:$0xff]
  %v105 = vld [vmem:[%s2 + $0x188] sm:$0xff]
  %v106 = vld [vmem:[%s2 + $0x190] sm:$0xff]
  %v107 = vld [vmem:[%s2 + $0x198] sm:$0xff]
  %v108 = vld [vmem:[%s2 + $0x1a0] sm:$0xff]
  %v109 = vld [vmem:[%s2 + $0x1a8] sm:$0xff]
  %v110 = vld [vmem:[%s2 + $0x1b0] sm:$0xff]
  %v111 = vld [vmem:[%s2 + $0x1b8] sm:$0xff]
  %v112 = vld [vmem:[%s2 + $0x1c0] sm:$0xff]
  %v113 = vld [vmem:[%s2 + $0x1c8] sm:$0xff]
  %v114 = vld [vmem:[%s2 + $0x1d0] sm:$0xff]
  %v115 = vld [vmem:[%s2 + $0x1d8] sm:$0xff]
  %v116 = vld [vmem:[%s2 + $0x1e0] sm:$0xff]
  %v117 = vld [vmem:[%s2 + $0x1e8] sm:$0xff]
  %v118 = vld [vmem:[%s2 + $0x1f0] sm:$0xff]
  %v119 = vld [vmem:[%s2 + $0x1f8] sm:$0xff]
  %v120 = vld [vmem:[%s2 + $0x200] sm:$0xff]
  %v121 = vld [vmem:[%s2 + $0x208] sm:$0xff]
  %v122 = vld [vmem:[%s2 + $0x210] sm:$0xff]
  %v123 = vld [vmem:[%s2 + $0x218] sm:$0xff]
  %v124 = vld [vmem:[%s2 + $0x220] sm:$0xff]
  %v125 = vld [vmem:[%s2 + $0x228] sm:$0xff]
  %v126 = vld [vmem:[%s2 + $0x230] sm:$0xff]
  %v127 = vld [vmem:[%s2 + $0x238] sm:$0xff]
  %v128 = vld [vmem:[%s2 + $0x240] sm:$0xff]
  %v129 = vld [vmem:[%s2 + $0x248] sm:$0xff]
  %v130 = vld [vmem:[%s2 + $0x250] sm:$0xff]
  %v131 = vld [vmem:[%s2 + $0x258] sm:$0xff]
  %v132 = vld [vmem:[%s2 + $0x260] sm:$0xff]
  %v133 = vld [vmem:[%s2 + $0x268] sm:$0xff]
  %v134 = vld [vmem:[%s2 + $0x270] sm:$0xff]
  %v135 = vld [vmem:[%s2 + $0x278] sm:$0xff]
  %v136 = vld [vmem:[%s2 + $0x280] sm:$0xff]
  %v137 = vld [vmem:[%s2 + $0x288] sm:$0xff]
  %v138 = vld [vmem:[%s2 + $0x290] sm:$0xff]
  %v139 = vld [vmem:[%s2 + $0x298] sm:$0xff]
  %v140 = vld [vmem:[%s2 + $0x2a0] sm:$0xff]
  %v141 = vld [vmem:[%s2 + $0x2a8] sm:$0xff]
  %v142 = vld [vmem:[%s2 + $0x2b0] sm:$0xff]
  %v143 = vld [vmem:[%s2 + $0x2b8] sm:$0xff]
  %v144 = vld [vmem:[%s2 + $0x2c0] sm:$0xff]
  %v145 = vld [vmem:[%s2 + $0x2c8] sm:$0xff]
  %v146 = vld [vmem:[%s2 + $0x2d0] sm:$0xff]
  %v147 = vld [vmem:[%s2 + $0x2d8] sm:$0xff]
  %v148 = vld [vmem:[%s2 + $0x2e0] sm:$0xff]
  %v149 = vld [vmem:[%s2 + $0x2e8] sm:$0xff]
  %v150 = vld [vmem:[%s2 + $0x2f0] sm:$0xff]
  %v151 = vld [vmem:[%s2 + $0x2f8] sm:$0xff]
  %v152 = vld [vmem:[%s1] sm:$0xff]
  %v153 = vld [vmem:[%s1 + $0x8] sm:$0xff]
  %154 = vmatprep.subr.mxu0 0.0
  %155 = vmatpush1.msra.mxu0 %v56
  %156 = vmatprep.subr.mxu0 0.0
  %157 = vmatpush1.msra.mxu0 %v57
  %158 = vmatprep.subr.mxu0 0.0
  %159 = vmatpush1.msra.mxu0 %v58
  %160 = vmatprep.subr.mxu0 0.0
  %161 = vmatpush1.msra.mxu0 %v59
  %162 = vmatprep.subr.mxu0 0.0
  %163 = vmatpush1.msra.mxu0 %v60
  %164 = vmatprep.subr.mxu0 0.0
  %165 = vmatpush1.msra.mxu0 %v61
  %166 = vmatprep.subr.mxu0 0.0
  %167 = vmatpush1.msra.mxu0 %v62
  %168 = vmatprep.subr.mxu0 0.0
  %169 = vmatpush1.msra.mxu0 %v63
  %170 = vmatprep.subr.mxu0 0.0
  %171 = vmatpush1.msra.mxu0 %v64
  %172 = vmatprep.subr.mxu0 0.0
  %173 = vmatpush1.msra.mxu0 %v65
  %174 = vmatprep.subr.mxu0 0.0
  %175 = vmatpush1.msra.mxu0 %v66
  %176 = vmatprep.subr.mxu0 0.0
  %177 = vmatpush1.msra.mxu0 %v67
  %178 = vmatprep.subr.mxu0 0.0
  %179 = vmatpush1.msra.mxu0 %v68
  %180 = vmatprep.subr.mxu0 0.0
  %181 = vmatpush1.msra.mxu0 %v69
  %182 = vmatprep.subr.mxu0 0.0
  %183 = vmatpush1.msra.mxu0 %v70
  %184 = vmatprep.subr.mxu0 0.0
  %185 = vmatpush1.msra.mxu0 %v71
  %186 = vmatprep.subr.mxu0 0.0
  %187 = vmatpush1.msra.mxu0 %v72
  %188 = vmatprep.subr.mxu0 0.0
  %189 = vmatpush1.msra.mxu0 %v73
  %190 = vmatprep.subr.mxu0 0.0
  %191 = vmatpush1.msra.mxu0 %v74
  %192 = vmatprep.subr.mxu0 0.0
  %193 = vmatpush1.msra.mxu0 %v75
  %194 = vmatprep.subr.mxu0 0.0
  %195 = vmatpush1.msra.mxu0 %v76
  %196 = vmatprep.subr.mxu0 0.0
  %197 = vmatpush1.msra.mxu0 %v77
  %198 = vmatprep.subr.mxu0 0.0
  %199 = vmatpush1.msra.mxu0 %v78
  %200 = vmatprep.subr.mxu0 0.0
  %201 = vmatpush1.msra.mxu0 %v79
  %202 = vmatprep.subr.mxu0 0.0
  %203 = vmatpush1.msra.mxu0 %v80
  %204 = vmatprep.subr.mxu0 0.0
  %205 = vmatpush1.msra.mxu0 %v81
  %206 = vmatprep.subr.mxu0 0.0
  %207 = vmatpush1.msra.mxu0 %v82
  %208 = vmatprep.subr.mxu0 0.0
  %209 = vmatpush1.msra.mxu0 %v83
  %210 = vmatprep.subr.mxu0 0.0
  %211 = vmatpush1.msra.mxu0 %v84
  %212 = vmatprep.subr.mxu0 0.0
  %213 = vmatpush1.msra.mxu0 %v85
  %214 = vmatprep.subr.mxu0 0.0
  %215 = vmatpush1.msra.mxu0 %v86
  %216 = vmatprep.subr.mxu0 0.0
  %217 = vmatpush1.msra.mxu0 %v87
  %218 = vmatprep.mubr.f32.mxu0 %v45
  %219 = vmatmul.mubr.f32.gmra.mrb[0].mxu0 %v44
  %v220 = vpop.f32.mrb[0].mxu0
  %v221 = vadd.f32 %v152, %v220
  %v222 = vpop.f32.mrb[0].mxu0
  %223 = vmatprep.mubr.f32.mxu0 %v51
  %224 = vmatmul.mubr.f32.gmra.mrb[0].mxu0 %v50
  %v225 = vpop.f32.mrb[0].mxu0
  %v226 = vadd.f32 %v153, %v225
  %v227 = vpop.f32.mrb[0].mxu0
  %228 = vdwg.mxu0
  %229 = vmatprep.subr.mxu0 0.0
  %230 = vmatpush1.msra.mxu0 %v88
  %231 = vmatprep.subr.mxu0 0.0
  %232 = vmatpush1.msra.mxu0 %v89
  %233 = vmatprep.subr.mxu0 0.0
  %234 = vmatpush1.msra.mxu0 %v90
  %235 = vmatprep.subr.mxu0 0.0
  %236 = vmatpush1.msra.mxu0 %v91
  %237 = vmatprep.subr.mxu0 0.0
  %238 = vmatpush1.msra.mxu0 %v92
  %239 = vmatprep.subr.mxu0 0.0
  %240 = vmatpush1.msra.mxu0 %v93
  %241 = vmatprep.subr.mxu0 0.0
  %242 = vmatpush1.msra.mxu0 %v94
  %243 = vmatprep.subr.mxu0 0.0
  %244 = vmatpush1.msra.mxu0 %v95
  %245 = vmatprep.subr.mxu0 0.0
  %246 = vmatpush1.msra.mxu0 %v96
  %247 = vmatprep.subr.mxu0 0.0
  %248 = vmatpush1.msra.mxu0 %v97
  %249 = vmatprep.subr.mxu0 0.0
  %250 = vmatpush1.msra.mxu0 %v98
  %251 = vmatprep.subr.mxu0 0.0
  %252 = vmatpush1.msra.mxu0 %v99
  %253 = vmatprep.subr.mxu0 0.0
  %254 = vmatpush1.msra.mxu0 %v100
  %255 = vmatprep.subr.mxu0 0.0
  %256 = vmatpush1.msra.mxu0 %v101
  %257 = vmatprep.subr.mxu0 0.0
  %258 = vmatpush1.msra.mxu0 %v102
  %259 = vmatprep.subr.mxu0 0.0
  %260 = vmatpush1.msra.mxu0 %v103
  %261 = vmatprep.subr.mxu0 0.0
  %262 = vmatpush1.msra.mxu0 %v104
  %263 = vmatprep.subr.mxu0 0.0
  %264 = vmatpush1.msra.mxu0 %v105
  %265 = vmatprep.subr.mxu0 0.0
  %266 = vmatpush1.msra.mxu0 %v106
  %267 = vmatprep.subr.mxu0 0.0
  %268 = vmatpush1.msra.mxu0 %v107
  %269 = vmatprep.subr.mxu0 0.0
  %270 = vmatpush1.msra.mxu0 %v108
  %271 = vmatprep.subr.mxu0 0.0
  %272 = vmatpush1.msra.mxu0 %v109
  %273 = vmatprep.subr.mxu0 0.0
  %274 = vmatpush1.msra.mxu0 %v110
  %275 = vmatprep.subr.mxu0 0.0
  %276 = vmatpush1.msra.mxu0 %v111
  %277 = vmatprep.subr.mxu0 0.0
  %278 = vmatpush1.msra.mxu0 %v112
  %279 = vmatprep.subr.mxu0 0.0
  %280 = vmatpush1.msra.mxu0 %v113
  %281 = vmatprep.subr.mxu0 0.0
  %282 = vmatpush1.msra.mxu0 %v114
  %283 = vmatprep.subr.mxu0 0.0
  %284 = vmatpush1.msra.mxu0 %v115
  %285 = vmatprep.subr.mxu0 0.0
  %286 = vmatpush1.msra.mxu0 %v116
  %287 = vmatprep.subr.mxu0 0.0
  %288 = vmatpush1.msra.mxu0 %v117
  %289 = vmatprep.subr.mxu0 0.0
  %290 = vmatpush1.msra.mxu0 %v118
  %291 = vmatprep.subr.mxu0 0.0
  %292 = vmatpush1.msra.mxu0 %v119
  %293 = vmatprep.mubr.f32.mxu0 %v47
  %294 = vmatmul.mubr.f32.gmra.mrb[0].mxu0 %v46
  %v295 = vpop.f32.mrb[0].mxu0
  %v296 = vadd.f32 %v221, %v295
  %v297 = vpop.f32.mrb[0].mxu0
  %298 = vmatprep.mubr.f32.mxu0 %v53
  %299 = vmatmul.mubr.f32.gmra.mrb[0].mxu0 %v52
  %v300 = vpop.f32.mrb[0].mxu0
  %v301 = vadd.f32 %v226, %v300
  %v302 = vpop.f32.mrb[0].mxu0
  %303 = vdwg.mxu0
  %304 = vmatprep.subr.mxu0 0.0
  %305 = vmatpush1.msra.mxu0 %v120
  %306 = vmatprep.subr.mxu0 0.0
  %307 = vmatpush1.msra.mxu0 %v121
  %308 = vmatprep.subr.mxu0 0.0
  %309 = vmatpush1.msra.mxu0 %v122
  %310 = vmatprep.subr.mxu0 0.0
  %311 = vmatpush1.msra.mxu0 %v123
  %312 = vmatprep.subr.mxu0 0.0
  %313 = vmatpush1.msra.mxu0 %v124
  %314 = vmatprep.subr.mxu0 0.0
  %315 = vmatpush1.msra.mxu0 %v125
  %316 = vmatprep.subr.mxu0 0.0
  %317 = vmatpush1.msra.mxu0 %v126
  %318 = vmatprep.subr.mxu0 0.0
  %319 = vmatpush1.msra.mxu0 %v127
  %320 = vmatprep.subr.mxu0 0.0
  %321 = vmatpush1.msra.mxu0 %v128
  %322 = vmatprep.subr.mxu0 0.0
  %323 = vmatpush1.msra.mxu0 %v129
  %324 = vmatprep.subr.mxu0 0.0
  %325 = vmatpush1.msra.mxu0 %v130
  %326 = vmatprep.subr.mxu0 0.0
  %327 = vmatpush1.msra.mxu0 %v131
  %328 = vmatprep.subr.mxu0 0.0
  %329 = vmatpush1.msra.mxu0 %v132
  %330 = vmatprep.subr.mxu0 0.0
  %331 = vmatpush1.msra.mxu0 %v133
  %332 = vmatprep.subr.mxu0 0.0
  %333 = vmatpush1.msra.mxu0 %v134
  %334 = vmatprep.subr.mxu0 0.0
  %335 = vmatpush1.msra.mxu0 %v135
  %336 = vmatprep.subr.mxu0 0.0
  %337 = vmatpush1.msra.mxu0 %v136
  %338 = vmatprep.subr.mxu0 0.0
  %339 = vmatpush1.msra.mxu0 %v137
  %340 = vmatprep.subr.mxu0 0.0
  %341 = vmatpush1.msra.mxu0 %v138
  %342 = vmatprep.subr.mxu0 0.0
  %343 = vmatpush1.msra.mxu0 %v139
  %344 = vmatprep.subr.mxu0 0.0
  %345 = vmatpush1.msra.mxu0 %v140
  %346 = vmatprep.subr.mxu0 0.0
  %347 = vmatpush1.msra.mxu0 %v141
  %348 = vmatprep.subr.mxu0 0.0
  %349 = vmatpush1.msra.mxu0 %v142
  %350 = vmatprep.subr.mxu0 0.0
  %351 = vmatpush1.msra.mxu0 %v143
  %352 = vmatprep.subr.mxu0 0.0
  %353 = vmatpush1.msra.mxu0 %v144
  %354 = vmatprep.subr.mxu0 0.0
  %355 = vmatpush1.msra.mxu0 %v145
  %356 = vmatprep.subr.mxu0 0.0
  %357 = vmatpush1.msra.mxu0 %v146
  %358 = vmatprep.subr.mxu0 0.0
  %359 = vmatpush1.msra.mxu0 %v147
  %360 = vmatprep.subr.mxu0 0.0
  %361 = vmatpush1.msra.mxu0 %v148
  %362 = vmatprep.subr.mxu0 0.0
  %363 = vmatpush1.msra.mxu0 %v149
  %364 = vmatprep.subr.mxu0 0.0
  %365 = vmatpush1.msra.mxu0 %v150
  %366 = vmatprep.subr.mxu0 0.0
  %367 = vmatpush1.msra.mxu0 %v151
  %368 = vmatprep.mubr.f32.mxu0 %v49
  %369 = vmatmul.mubr.f32.gmra.mrb[0].mxu0 %v48
  %v370 = vpop.f32.mrb[0].mxu0
  %v371 = vadd.f32 %v296, %v370
  %v372 = vpop.f32.mrb[0].mxu0
  %373 = vmatprep.mubr.f32.mxu0 %v55
  %374 = vmatmul.mubr.f32.gmra.mrb[0].mxu0 %v54
  %v375 = vpop.f32.mrb[0].mxu0
  %v376 = vadd.f32 %v301, %v375
  %v377 = vpop.f32.mrb[0].mxu0
  %378 = vdwg.mxu0
  %v379 = vlaneseq
  %v380 = vshrl.u32 %v379, 7
  %v381 = vadd.s32 %v380, 8
  %v382 = vlaneseq
  %v383 = vand.u32 %v382, 127
  %v384 = vshra.s32 %v380, 3
  %v385 = vshra.s32 %v381, 3
  %v386 = vshra.s32 %v383, 3
  %vm387 = vcmp.eq.s32.totalorder %v384, %v386
  %vm388 = vcmp.eq.s32.totalorder %v385, %v386
  %v389 = vand.u32 %v383, 7
  %vm390 = vcmp.lt.s32.totalorder %v389, 5
  %vm391 = vmand %vm387, %vm390
  %vm392 = vmand %vm388, %vm390
  %v393 = vsel %vm391, 0.0, -1e+30
  %v394 = vsel %vm392, 0.0, -1e+30
  %vm395 = vcmask 261120
  %v396 = vsel %vm395, %v371, 0.0
  %397 = vadd.xlane.f32.xlu0 %v396
  %v398 = vpop.xlane.xlu0 %397
  %v399 = vsel %vm395, %v376, 0.0
  %400 = vadd.xlane.f32.xlu0 %v399
  %v401 = vpop.xlane.xlu0 %400
  %v402 = vrcp.pop 32.0
  %v403 = vmul.f32 %v398, %v402
  %v404 = vmul.f32 %v401, %v402
  %v405 = vsub.f32 %v371, %v403
  %v406 = vsub.f32 %v376, %v404
  %v407 = vmul.f32 %v405, %v405
  %v408 = vmul.f32 %v406, %v406
  %v409 = vsel %vm395, %v407, 0.0
  %410 = vadd.xlane.f32.xlu0 %v409
  %v411 = vpop.xlane.xlu0 %410
  %v412 = vsel %vm395, %v408, 0.0
  %413 = vadd.xlane.f32.xlu0 %v412
  %v414 = vpop.xlane.xlu0 %413
  %v415 = vmul.f32 %v411, %v402
  %v416 = vmul.f32 %v414, %v402
  %v417 = vadd.f32 %v415, 1e-06
  %v418 = vadd.f32 %v416, 1e-06
  %v419 = vrsqrt.pop %v417
  %v420 = vrsqrt.pop %v418
  %v421 = vmul.f32 %v405, %v419
  %v422 = vmul.f32 %v406, %v420
  %v423 = vld [vmem:[%s3] sm:$0xff]
  %v424 = vld [vmem:[%s3 + $0x8] sm:$0xff]
  %v425 = vld [vmem:[%s3 + $0x10] sm:$0xff]
  %v426 = vld [vmem:[%s3 + $0x18] sm:$0xff]
  %v427 = vld [vmem:[%s4] sm:$0x1]
  %v429 = vlaneseq
  %v430 = vshrl.u32 %v429, 7
  %v431 = vsub.s32 0, %v430
  %v432 = vrot.slane %v427, %v431
  %v435 = vsel %vm395, %v421, 0
  %v438 = vsel %vm395, %v422, 0
  %440 = vmatprep.subr.mxu0 0.0
  %441 = vmatpush1.msra.mxu0 %v423
  %442 = vmatprep.subr.mxu0 0.0
  %443 = vmatpush1.msra.mxu0 %v424
  %444 = vmatprep.subr.mxu0 0.0
  %445 = vmatpush1.msra.mxu0 %v425
  %446 = vmatprep.subr.mxu0 0.0
  %447 = vmatpush1.msra.mxu0 %v426
  %448 = vmatprep.subr.mxu0 0.0
  %449 = vmatpush1.msra.mxu0 0.0
  %450 = vmatprep.subr.mxu0 0.0
  %451 = vmatpush1.msra.mxu0 0.0
  %452 = vmatprep.subr.mxu0 0.0
  %453 = vmatpush1.msra.mxu0 0.0
  %454 = vmatprep.subr.mxu0 0.0
  %455 = vmatpush1.msra.mxu0 0.0
  %456 = vmatprep.subr.mxu0 0.0
  %457 = vmatpush1.msra.mxu0 0.0
  %458 = vmatprep.subr.mxu0 0.0
  %459 = vmatpush1.msra.mxu0 0.0
  %460 = vmatprep.subr.mxu0 0.0
  %461 = vmatpush1.msra.mxu0 0.0
  %462 = vmatprep.subr.mxu0 0.0
  %463 = vmatpush1.msra.mxu0 0.0
  %464 = vmatprep.subr.mxu0 0.0
  %465 = vmatpush1.msra.mxu0 0.0
  %466 = vmatprep.subr.mxu0 0.0
  %467 = vmatpush1.msra.mxu0 0.0
  %468 = vmatprep.subr.mxu0 0.0
  %469 = vmatpush1.msra.mxu0 0.0
  %470 = vmatprep.subr.mxu0 0.0
  %471 = vmatpush1.msra.mxu0 0.0
  %472 = vmatprep.subr.mxu0 0.0
  %473 = vmatpush1.msra.mxu0 0.0
  %474 = vmatprep.subr.mxu0 0.0
  %475 = vmatpush1.msra.mxu0 0.0
  %476 = vmatprep.subr.mxu0 0.0
  %477 = vmatpush1.msra.mxu0 0.0
  %478 = vmatprep.subr.mxu0 0.0
  %479 = vmatpush1.msra.mxu0 0.0
  %480 = vmatprep.subr.mxu0 0.0
  %481 = vmatpush1.msra.mxu0 0.0
  %482 = vmatprep.subr.mxu0 0.0
  %483 = vmatpush1.msra.mxu0 0.0
  %484 = vmatprep.subr.mxu0 0.0
  %485 = vmatpush1.msra.mxu0 0.0
  %486 = vmatprep.subr.mxu0 0.0
  %487 = vmatpush1.msra.mxu0 0.0
  %488 = vmatprep.subr.mxu0 0.0
  %489 = vmatpush1.msra.mxu0 0.0
  %490 = vmatprep.subr.mxu0 0.0
  %491 = vmatpush1.msra.mxu0 0.0
  %492 = vmatprep.subr.mxu0 0.0
  %493 = vmatpush1.msra.mxu0 0.0
  %494 = vmatprep.subr.mxu0 0.0
  %495 = vmatpush1.msra.mxu0 0.0
  %496 = vmatprep.subr.mxu0 0.0
  %497 = vmatpush1.msra.mxu0 0.0
  %498 = vmatprep.subr.mxu0 0.0
  %499 = vmatpush1.msra.mxu0 0.0
  %500 = vmatprep.subr.mxu0 0.0
  %501 = vmatpush1.msra.mxu0 0.0
  %502 = vmatprep.subr.mxu0 0.0
  %503 = vmatpush1.msra.mxu0 0.0
  %504 = vmatprep.mubr.f32.mxu0 0.0
  %505 = vmatmul.mubr.f32.gmra.mrb[0].mxu0 %v435
  %v506 = vpop.f32.mrb[0].mxu0
  %v507 = vadd.f32 %v432, %v506
  %v508 = vpop.f32.mrb[0].mxu0
  %509 = vmatprep.mubr.f32.mxu0 0.0
  %510 = vmatmul.mubr.f32.gmra.mrb[0].mxu0 %v438
  %v511 = vpop.f32.mrb[0].mxu0
  %v512 = vadd.f32 %v432, %v511
  %v513 = vpop.f32.mrb[0].mxu0
  %514 = vdwg.mxu0
  %517 = vrot.lane.b32.xlu0 %v507, 96
  %v518 = vpop.permute.xlu0 %517
  %519 = vrot.lane.b32.xlu0 %v512, 96
  %v520 = vpop.permute.xlu0 %519
  %vm521 = vcmask 64512
  %v522 = vsel %vm521, %v507, 0
  %v524 = vsel %vm521, %v512, 0
  %v526 = vsel %vm521, %v518, 0
  %v528 = vsel %vm521, %v520, 0
  %530 = vmatprep.subr.mxu0 0.0
  %531 = vmatpush1.xpose.msra.mxu0 %v526
  %532 = vmatprep.subr.mxu0 0.0
  %533 = vmatpush1.xpose.msra.mxu0 %v528
  %534 = vmatprep.subr.mxu0 0.0
  %535 = vmatpush1.xpose.msra.mxu0 0.0
  %536 = vmatprep.subr.mxu0 0.0
  %537 = vmatpush1.xpose.msra.mxu0 0.0
  %538 = vmatprep.subr.mxu0 0.0
  %539 = vmatpush1.xpose.msra.mxu0 0.0
  %540 = vmatprep.subr.mxu0 0.0
  %541 = vmatpush1.xpose.msra.mxu0 0.0
  %542 = vmatprep.subr.mxu0 0.0
  %543 = vmatpush1.xpose.msra.mxu0 0.0
  %544 = vmatprep.subr.mxu0 0.0
  %545 = vmatpush1.xpose.msra.mxu0 0.0
  %546 = vmatprep.subr.mxu0 0.0
  %547 = vmatpush1.xpose.msra.mxu0 0.0
  %548 = vmatprep.subr.mxu0 0.0
  %549 = vmatpush1.xpose.msra.mxu0 0.0
  %550 = vmatprep.subr.mxu0 0.0
  %551 = vmatpush1.xpose.msra.mxu0 0.0
  %552 = vmatprep.subr.mxu0 0.0
  %553 = vmatpush1.xpose.msra.mxu0 0.0
  %554 = vmatprep.subr.mxu0 0.0
  %555 = vmatpush1.xpose.msra.mxu0 0.0
  %556 = vmatprep.subr.mxu0 0.0
  %557 = vmatpush1.xpose.msra.mxu0 0.0
  %558 = vmatprep.subr.mxu0 0.0
  %559 = vmatpush1.xpose.msra.mxu0 0.0
  %560 = vmatprep.subr.mxu0 0.0
  %561 = vmatpush1.xpose.msra.mxu0 0.0
  %562 = vmatprep.subr.mxu0 0.0
  %563 = vmatpush1.xpose.msra.mxu0 0.0
  %564 = vmatprep.subr.mxu0 0.0
  %565 = vmatpush1.xpose.msra.mxu0 0.0
  %566 = vmatprep.subr.mxu0 0.0
  %567 = vmatpush1.xpose.msra.mxu0 0.0
  %568 = vmatprep.subr.mxu0 0.0
  %569 = vmatpush1.xpose.msra.mxu0 0.0
  %570 = vmatprep.subr.mxu0 0.0
  %571 = vmatpush1.xpose.msra.mxu0 0.0
  %572 = vmatprep.subr.mxu0 0.0
  %573 = vmatpush1.xpose.msra.mxu0 0.0
  %574 = vmatprep.subr.mxu0 0.0
  %575 = vmatpush1.xpose.msra.mxu0 0.0
  %576 = vmatprep.subr.mxu0 0.0
  %577 = vmatpush1.xpose.msra.mxu0 0.0
  %578 = vmatprep.subr.mxu0 0.0
  %579 = vmatpush1.xpose.msra.mxu0 0.0
  %580 = vmatprep.subr.mxu0 0.0
  %581 = vmatpush1.xpose.msra.mxu0 0.0
  %582 = vmatprep.subr.mxu0 0.0
  %583 = vmatpush1.xpose.msra.mxu0 0.0
  %584 = vmatprep.subr.mxu0 0.0
  %585 = vmatpush1.xpose.msra.mxu0 0.0
  %586 = vmatprep.subr.mxu0 0.0
  %587 = vmatpush1.xpose.msra.mxu0 0.0
  %588 = vmatprep.subr.mxu0 0.0
  %589 = vmatpush1.xpose.msra.mxu0 0.0
  %590 = vmatprep.subr.mxu0 0.0
  %591 = vmatpush1.xpose.msra.mxu0 0.0
  %592 = vmatprep.subr.mxu0 0.0
  %593 = vmatpush1.xpose.msra.mxu0 0.0
  %594 = vmatprep.mubr.f32.mxu0 0.0
  %595 = vmatmul.mubr.f32.gmra.mrb[0].mxu0 %v522
  %v596 = vpop.f32.mrb[0].mxu0
  %v597 = vadd.f32 %v393, %v596
  %v598 = vpop.f32.mrb[0].mxu0
  %599 = vmatprep.mubr.f32.mxu0 0.0
  %600 = vmatmul.mubr.f32.gmra.mrb[0].mxu0 %v524
  %v601 = vpop.f32.mrb[0].mxu0
  %v602 = vadd.f32 %v394, %v601
  %v603 = vpop.f32.mrb[0].mxu0
  %604 = vdwg.mxu0
  %vm605 = vcmask 130048
  %v606 = vsel %vm605, %v597, -inf
  %607 = vmax.xlane.f32.xlu0 %v606
  %v608 = vpop.xlane.xlu0 %607
  %v609 = vsel %vm605, %v602, -inf
  %610 = vmax.xlane.f32.xlu0 %v609
  %v611 = vpop.xlane.xlu0 %610
  %v612 = vsub.f32 %v597, %v608
  %v613 = vsub.f32 %v602, %v611
  %v614 = vmul.f32 %v612, 1.442695
  %v615 = vpow.pop %v614
  %v616 = vmul.f32 %v613, 1.442695
  %v617 = vpow.pop %v616
  %v618 = vsel %vm605, %v615, 0.0
  %619 = vadd.xlane.f32.xlu0 %v618
  %v620 = vpop.xlane.xlu0 %619
  %v621 = vsel %vm605, %v617, 0.0
  %622 = vadd.xlane.f32.xlu0 %v621
  %v623 = vpop.xlane.xlu0 %622
  %v624 = vrcp.pop %v620
  %v625 = vrcp.pop %v623
  %v626 = vmul.f32 %v615, %v624
  %v627 = vmul.f32 %v617, %v625
  %628 = vrot.lane.b32.xlu0 %v507, 64
  %v629 = vpop.permute.xlu0 %628
  %630 = vrot.lane.b32.xlu0 %v512, 64
  %v631 = vpop.permute.xlu0 %630
  %v635 = vsel %vm605, %v626, 0
  %v638 = vsel %vm605, %v627, 0
  %640 = vmatprep.subr.mxu0 0.0
  %641 = vmatpush1.msra.mxu0 %v629
  %642 = vmatprep.subr.mxu0 0.0
  %643 = vmatpush1.msra.mxu0 %v631
  %644 = vmatprep.subr.mxu0 0.0
  %645 = vmatpush1.msra.mxu0 0.0
  %646 = vmatprep.subr.mxu0 0.0
  %647 = vmatpush1.msra.mxu0 0.0
  %648 = vmatprep.subr.mxu0 0.0
  %649 = vmatpush1.msra.mxu0 0.0
  %650 = vmatprep.subr.mxu0 0.0
  %651 = vmatpush1.msra.mxu0 0.0
  %652 = vmatprep.subr.mxu0 0.0
  %653 = vmatpush1.msra.mxu0 0.0
  %654 = vmatprep.subr.mxu0 0.0
  %655 = vmatpush1.msra.mxu0 0.0
  %656 = vmatprep.subr.mxu0 0.0
  %657 = vmatpush1.msra.mxu0 0.0
  %658 = vmatprep.subr.mxu0 0.0
  %659 = vmatpush1.msra.mxu0 0.0
  %660 = vmatprep.subr.mxu0 0.0
  %661 = vmatpush1.msra.mxu0 0.0
  %662 = vmatprep.subr.mxu0 0.0
  %663 = vmatpush1.msra.mxu0 0.0
  %664 = vmatprep.subr.mxu0 0.0
  %665 = vmatpush1.msra.mxu0 0.0
  %666 = vmatprep.subr.mxu0 0.0
  %667 = vmatpush1.msra.mxu0 0.0
  %668 = vmatprep.subr.mxu0 0.0
  %669 = vmatpush1.msra.mxu0 0.0
  %670 = vmatprep.subr.mxu0 0.0
  %671 = vmatpush1.msra.mxu0 0.0
  %672 = vmatprep.subr.mxu0 0.0
  %673 = vmatpush1.msra.mxu0 0.0
  %674 = vmatprep.subr.mxu0 0.0
  %675 = vmatpush1.msra.mxu0 0.0
  %676 = vmatprep.subr.mxu0 0.0
  %677 = vmatpush1.msra.mxu0 0.0
  %678 = vmatprep.subr.mxu0 0.0
  %679 = vmatpush1.msra.mxu0 0.0
  %680 = vmatprep.subr.mxu0 0.0
  %681 = vmatpush1.msra.mxu0 0.0
  %682 = vmatprep.subr.mxu0 0.0
  %683 = vmatpush1.msra.mxu0 0.0
  %684 = vmatprep.subr.mxu0 0.0
  %685 = vmatpush1.msra.mxu0 0.0
  %686 = vmatprep.subr.mxu0 0.0
  %687 = vmatpush1.msra.mxu0 0.0
  %688 = vmatprep.subr.mxu0 0.0
  %689 = vmatpush1.msra.mxu0 0.0
  %690 = vmatprep.subr.mxu0 0.0
  %691 = vmatpush1.msra.mxu0 0.0
  %692 = vmatprep.subr.mxu0 0.0
  %693 = vmatpush1.msra.mxu0 0.0
  %694 = vmatprep.subr.mxu0 0.0
  %695 = vmatpush1.msra.mxu0 0.0
  %696 = vmatprep.subr.mxu0 0.0
  %697 = vmatpush1.msra.mxu0 0.0
  %698 = vmatprep.subr.mxu0 0.0
  %699 = vmatpush1.msra.mxu0 0.0
  %700 = vmatprep.subr.mxu0 0.0
  %701 = vmatpush1.msra.mxu0 0.0
  %702 = vmatprep.subr.mxu0 0.0
  %703 = vmatpush1.msra.mxu0 0.0
  %704 = vmatprep.mubr.f32.mxu0 0.0
  %705 = vmatmul.mubr.f32.gmra.mrb[0].mxu0 %v635
  %v706 = vpop.f32.mrb[0].mxu0
  %v707 = vadd.f32 0.0, %v706
  %v708 = vpop.f32.mrb[0].mxu0
  %709 = vmatprep.mubr.f32.mxu0 0.0
  %710 = vmatmul.mubr.f32.gmra.mrb[0].mxu0 %v638
  %v711 = vpop.f32.mrb[0].mxu0
  %v712 = vadd.f32 0.0, %v711
  %v713 = vpop.f32.mrb[0].mxu0
  %714 = vdwg.mxu0
  %v715 = vld [vmem:[%s5] sm:$0xff]
  %716 = vrot.lane.b32.xlu0 %v507, 120
  %v717 = vpop.permute.xlu0 %716
  %718 = vrot.lane.b32.xlu0 %v512, 120
  %v719 = vpop.permute.xlu0 %718
  %720 = vrot.lane.b32.xlu0 %v507, 88
  %v721 = vpop.permute.xlu0 %720
  %722 = vrot.lane.b32.xlu0 %v512, 88
  %v723 = vpop.permute.xlu0 %722
  %v724 = vsel %vm521, %v717, 0
  %v726 = vsel %vm521, %v719, 0
  %v728 = vsel %vm521, %v721, 0
  %v730 = vsel %vm521, %v723, 0
  %732 = vmatprep.subr.mxu0 0.0
  %733 = vmatpush1.xpose.msra.mxu0 %v728
  %734 = vmatprep.subr.mxu0 0.0
  %735 = vmatpush1.xpose.msra.mxu0 %v730
  %736 = vmatprep.subr.mxu0 0.0
  %737 = vmatpush1.xpose.msra.mxu0 0.0
  %738 = vmatprep.subr.mxu0 0.0
  %739 = vmatpush1.xpose.msra.mxu0 0.0
  %740 = vmatprep.subr.mxu0 0.0
  %741 = vmatpush1.xpose.msra.mxu0 0.0
  %742 = vmatprep.subr.mxu0 0.0
  %743 = vmatpush1.xpose.msra.mxu0 0.0
  %744 = vmatprep.subr.mxu0 0.0
  %745 = vmatpush1.xpose.msra.mxu0 0.0
  %746 = vmatprep.subr.mxu0 0.0
  %747 = vmatpush1.xpose.msra.mxu0 0.0
  %748 = vmatprep.subr.mxu0 0.0
  %749 = vmatpush1.xpose.msra.mxu0 0.0
  %750 = vmatprep.subr.mxu0 0.0
  %751 = vmatpush1.xpose.msra.mxu0 0.0
  %752 = vmatprep.subr.mxu0 0.0
  %753 = vmatpush1.xpose.msra.mxu0 0.0
  %754 = vmatprep.subr.mxu0 0.0
  %755 = vmatpush1.xpose.msra.mxu0 0.0
  %756 = vmatprep.subr.mxu0 0.0
  %757 = vmatpush1.xpose.msra.mxu0 0.0
  %758 = vmatprep.subr.mxu0 0.0
  %759 = vmatpush1.xpose.msra.mxu0 0.0
  %760 = vmatprep.subr.mxu0 0.0
  %761 = vmatpush1.xpose.msra.mxu0 0.0
  %762 = vmatprep.subr.mxu0 0.0
  %763 = vmatpush1.xpose.msra.mxu0 0.0
  %764 = vmatprep.subr.mxu0 0.0
  %765 = vmatpush1.xpose.msra.mxu0 0.0
  %766 = vmatprep.subr.mxu0 0.0
  %767 = vmatpush1.xpose.msra.mxu0 0.0
  %768 = vmatprep.subr.mxu0 0.0
  %769 = vmatpush1.xpose.msra.mxu0 0.0
  %770 = vmatprep.subr.mxu0 0.0
  %771 = vmatpush1.xpose.msra.mxu0 0.0
  %772 = vmatprep.subr.mxu0 0.0
  %773 = vmatpush1.xpose.msra.mxu0 0.0
  %774 = vmatprep.subr.mxu0 0.0
  %775 = vmatpush1.xpose.msra.mxu0 0.0
  %776 = vmatprep.subr.mxu0 0.0
  %777 = vmatpush1.xpose.msra.mxu0 0.0
  %778 = vmatprep.subr.mxu0 0.0
  %779 = vmatpush1.xpose.msra.mxu0 0.0
  %780 = vmatprep.subr.mxu0 0.0
  %781 = vmatpush1.xpose.msra.mxu0 0.0
  %782 = vmatprep.subr.mxu0 0.0
  %783 = vmatpush1.xpose.msra.mxu0 0.0
  %784 = vmatprep.subr.mxu0 0.0
  %785 = vmatpush1.xpose.msra.mxu0 0.0
  %786 = vmatprep.subr.mxu0 0.0
  %787 = vmatpush1.xpose.msra.mxu0 0.0
  %788 = vmatprep.subr.mxu0 0.0
  %789 = vmatpush1.xpose.msra.mxu0 0.0
  %790 = vmatprep.subr.mxu0 0.0
  %791 = vmatpush1.xpose.msra.mxu0 0.0
  %792 = vmatprep.subr.mxu0 0.0
  %793 = vmatpush1.xpose.msra.mxu0 0.0
  %794 = vmatprep.subr.mxu0 0.0
  %795 = vmatpush1.xpose.msra.mxu0 0.0
  %796 = vmatprep.mubr.f32.mxu0 0.0
  %797 = vmatmul.mubr.f32.gmra.mrb[0].mxu0 %v724
  %v798 = vpop.f32.mrb[0].mxu0
  %v799 = vadd.f32 %v393, %v798
  %v800 = vpop.f32.mrb[0].mxu0
  %801 = vmatprep.mubr.f32.mxu0 0.0
  %802 = vmatmul.mubr.f32.gmra.mrb[0].mxu0 %v726
  %v803 = vpop.f32.mrb[0].mxu0
  %v804 = vadd.f32 %v394, %v803
  %v805 = vpop.f32.mrb[0].mxu0
  %806 = vdwg.mxu0
  %v807 = vsel %vm605, %v799, -inf
  %808 = vmax.xlane.f32.xlu0 %v807
  %v809 = vpop.xlane.xlu0 %808
  %v810 = vsel %vm605, %v804, -inf
  %811 = vmax.xlane.f32.xlu0 %v810
  %v812 = vpop.xlane.xlu0 %811
  %v813 = vsub.f32 %v799, %v809
  %v814 = vsub.f32 %v804, %v812
  %v815 = vmul.f32 %v813, 1.442695
  %v816 = vpow.pop %v815
  %v817 = vmul.f32 %v814, 1.442695
  %v818 = vpow.pop %v817
  %v819 = vsel %vm605, %v816, 0.0
  %820 = vadd.xlane.f32.xlu0 %v819
  %v821 = vpop.xlane.xlu0 %820
  %v822 = vsel %vm605, %v818, 0.0
  %823 = vadd.xlane.f32.xlu0 %v822
  %v824 = vpop.xlane.xlu0 %823
  %v825 = vrcp.pop %v821
  %v826 = vrcp.pop %v824
  %v827 = vmul.f32 %v816, %v825
  %v828 = vmul.f32 %v818, %v826
  %829 = vrot.lane.b32.xlu0 %v507, 56
  %v830 = vpop.permute.xlu0 %829
  %831 = vrot.lane.b32.xlu0 %v512, 56
  %v832 = vpop.permute.xlu0 %831
  %v836 = vsel %vm605, %v827, 0
  %v839 = vsel %vm605, %v828, 0
  %841 = vmatprep.subr.mxu0 0.0
  %842 = vmatpush1.msra.mxu0 %v830
  %843 = vmatprep.subr.mxu0 0.0
  %844 = vmatpush1.msra.mxu0 %v832
  %845 = vmatprep.subr.mxu0 0.0
  %846 = vmatpush1.msra.mxu0 0.0
  %847 = vmatprep.subr.mxu0 0.0
  %848 = vmatpush1.msra.mxu0 0.0
  %849 = vmatprep.subr.mxu0 0.0
  %850 = vmatpush1.msra.mxu0 0.0
  %851 = vmatprep.subr.mxu0 0.0
  %852 = vmatpush1.msra.mxu0 0.0
  %853 = vmatprep.subr.mxu0 0.0
  %854 = vmatpush1.msra.mxu0 0.0
  %855 = vmatprep.subr.mxu0 0.0
  %856 = vmatpush1.msra.mxu0 0.0
  %857 = vmatprep.subr.mxu0 0.0
  %858 = vmatpush1.msra.mxu0 0.0
  %859 = vmatprep.subr.mxu0 0.0
  %860 = vmatpush1.msra.mxu0 0.0
  %861 = vmatprep.subr.mxu0 0.0
  %862 = vmatpush1.msra.mxu0 0.0
  %863 = vmatprep.subr.mxu0 0.0
  %864 = vmatpush1.msra.mxu0 0.0
  %865 = vmatprep.subr.mxu0 0.0
  %866 = vmatpush1.msra.mxu0 0.0
  %867 = vmatprep.subr.mxu0 0.0
  %868 = vmatpush1.msra.mxu0 0.0
  %869 = vmatprep.subr.mxu0 0.0
  %870 = vmatpush1.msra.mxu0 0.0
  %871 = vmatprep.subr.mxu0 0.0
  %872 = vmatpush1.msra.mxu0 0.0
  %873 = vmatprep.subr.mxu0 0.0
  %874 = vmatpush1.msra.mxu0 0.0
  %875 = vmatprep.subr.mxu0 0.0
  %876 = vmatpush1.msra.mxu0 0.0
  %877 = vmatprep.subr.mxu0 0.0
  %878 = vmatpush1.msra.mxu0 0.0
  %879 = vmatprep.subr.mxu0 0.0
  %880 = vmatpush1.msra.mxu0 0.0
  %881 = vmatprep.subr.mxu0 0.0
  %882 = vmatpush1.msra.mxu0 0.0
  %883 = vmatprep.subr.mxu0 0.0
  %884 = vmatpush1.msra.mxu0 0.0
  %885 = vmatprep.subr.mxu0 0.0
  %886 = vmatpush1.msra.mxu0 0.0
  %887 = vmatprep.subr.mxu0 0.0
  %888 = vmatpush1.msra.mxu0 0.0
  %889 = vmatprep.subr.mxu0 0.0
  %890 = vmatpush1.msra.mxu0 0.0
  %891 = vmatprep.subr.mxu0 0.0
  %892 = vmatpush1.msra.mxu0 0.0
  %893 = vmatprep.subr.mxu0 0.0
  %894 = vmatpush1.msra.mxu0 0.0
  %895 = vmatprep.subr.mxu0 0.0
  %896 = vmatpush1.msra.mxu0 0.0
  %897 = vmatprep.subr.mxu0 0.0
  %898 = vmatpush1.msra.mxu0 0.0
  %899 = vmatprep.subr.mxu0 0.0
  %900 = vmatpush1.msra.mxu0 0.0
  %901 = vmatprep.subr.mxu0 0.0
  %902 = vmatpush1.msra.mxu0 0.0
  %903 = vmatprep.subr.mxu0 0.0
  %904 = vmatpush1.msra.mxu0 0.0
  %905 = vmatprep.mubr.f32.mxu0 0.0
  %906 = vmatmul.mubr.f32.gmra.mrb[0].mxu0 %v836
  %v907 = vpop.f32.mrb[0].mxu0
  %v908 = vadd.f32 0.0, %v907
  %v909 = vpop.f32.mrb[0].mxu0
  %910 = vmatprep.mubr.f32.mxu0 0.0
  %911 = vmatmul.mubr.f32.gmra.mrb[0].mxu0 %v839
  %v912 = vpop.f32.mrb[0].mxu0
  %v913 = vadd.f32 0.0, %v912
  %v914 = vpop.f32.mrb[0].mxu0
  %915 = vdwg.mxu0
  %s916 = scalar_lea.vmem %s5, 8
  %v917 = vld [vmem:[%s916] sm:$0xff]
  %v919 = vsel %vm521, %v908, 0
  %v922 = vsel %vm521, %v913, 0
  %924 = vmatprep.subr.mxu0 0.0
  %925 = vmatpush1.msra.mxu0 %v917
  %926 = vmatprep.subr.mxu0 0.0
  %927 = vmatpush1.msra.mxu0 0.0
  %928 = vmatprep.subr.mxu0 0.0
  %929 = vmatpush1.msra.mxu0 0.0
  %930 = vmatprep.subr.mxu0 0.0
  %931 = vmatpush1.msra.mxu0 0.0
  %932 = vmatprep.subr.mxu0 0.0
  %933 = vmatpush1.msra.mxu0 0.0
  %934 = vmatprep.subr.mxu0 0.0
  %935 = vmatpush1.msra.mxu0 0.0
  %936 = vmatprep.subr.mxu0 0.0
  %937 = vmatpush1.msra.mxu0 0.0
  %938 = vmatprep.subr.mxu0 0.0
  %939 = vmatpush1.msra.mxu0 0.0
  %940 = vmatprep.subr.mxu0 0.0
  %941 = vmatpush1.msra.mxu0 0.0
  %942 = vmatprep.subr.mxu0 0.0
  %943 = vmatpush1.msra.mxu0 0.0
  %944 = vmatprep.subr.mxu0 0.0
  %945 = vmatpush1.msra.mxu0 0.0
  %946 = vmatprep.subr.mxu0 0.0
  %947 = vmatpush1.msra.mxu0 0.0
  %948 = vmatprep.subr.mxu0 0.0
  %949 = vmatpush1.msra.mxu0 0.0
  %950 = vmatprep.subr.mxu0 0.0
  %951 = vmatpush1.msra.mxu0 0.0
  %952 = vmatprep.subr.mxu0 0.0
  %953 = vmatpush1.msra.mxu0 0.0
  %954 = vmatprep.subr.mxu0 0.0
  %955 = vmatpush1.msra.mxu0 0.0
  %956 = vmatprep.subr.mxu0 0.0
  %957 = vmatpush1.msra.mxu0 0.0
  %958 = vmatprep.subr.mxu0 0.0
  %959 = vmatpush1.msra.mxu0 0.0
  %960 = vmatprep.subr.mxu0 0.0
  %961 = vmatpush1.msra.mxu0 0.0
  %962 = vmatprep.subr.mxu0 0.0
  %963 = vmatpush1.msra.mxu0 0.0
  %964 = vmatprep.subr.mxu0 0.0
  %965 = vmatpush1.msra.mxu0 0.0
  %966 = vmatprep.subr.mxu0 0.0
  %967 = vmatpush1.msra.mxu0 0.0
  %968 = vmatprep.subr.mxu0 0.0
  %969 = vmatpush1.msra.mxu0 0.0
  %970 = vmatprep.subr.mxu0 0.0
  %971 = vmatpush1.msra.mxu0 0.0
  %972 = vmatprep.subr.mxu0 0.0
  %973 = vmatpush1.msra.mxu0 0.0
  %974 = vmatprep.subr.mxu0 0.0
  %975 = vmatpush1.msra.mxu0 0.0
  %976 = vmatprep.subr.mxu0 0.0
  %977 = vmatpush1.msra.mxu0 0.0
  %978 = vmatprep.subr.mxu0 0.0
  %979 = vmatpush1.msra.mxu0 0.0
  %980 = vmatprep.subr.mxu0 0.0
  %981 = vmatpush1.msra.mxu0 0.0
  %982 = vmatprep.subr.mxu0 0.0
  %983 = vmatpush1.msra.mxu0 0.0
  %984 = vmatprep.subr.mxu0 0.0
  %985 = vmatpush1.msra.mxu0 0.0
  %986 = vmatprep.subr.mxu0 0.0
  %987 = vmatpush1.msra.mxu0 0.0
  %988 = vmatprep.mubr.f32.mxu0 0.0
  %989 = vmatmul.mubr.f32.gmra.mrb[0].mxu0 %v919
  %v990 = vpop.f32.mrb[0].mxu0
  %v991 = vadd.f32 0.0, %v990
  %v992 = vpop.f32.mrb[0].mxu0
  %993 = vmatprep.mubr.f32.mxu0 0.0
  %994 = vmatmul.mubr.f32.gmra.mrb[0].mxu0 %v922
  %v995 = vpop.f32.mrb[0].mxu0
  %v996 = vadd.f32 0.0, %v995
  %v997 = vpop.f32.mrb[0].mxu0
  %998 = vdwg.mxu0
  %v1000 = vsel %vm521, %v707, 0
  %v1003 = vsel %vm521, %v712, 0
  %1005 = vmatprep.subr.mxu0 0.0
  %1006 = vmatpush1.msra.mxu0 %v715
  %1007 = vmatprep.subr.mxu0 0.0
  %1008 = vmatpush1.msra.mxu0 0.0
  %1009 = vmatprep.subr.mxu0 0.0
  %1010 = vmatpush1.msra.mxu0 0.0
  %1011 = vmatprep.subr.mxu0 0.0
  %1012 = vmatpush1.msra.mxu0 0.0
  %1013 = vmatprep.subr.mxu0 0.0
  %1014 = vmatpush1.msra.mxu0 0.0
  %1015 = vmatprep.subr.mxu0 0.0
  %1016 = vmatpush1.msra.mxu0 0.0
  %1017 = vmatprep.subr.mxu0 0.0
  %1018 = vmatpush1.msra.mxu0 0.0
  %1019 = vmatprep.subr.mxu0 0.0
  %1020 = vmatpush1.msra.mxu0 0.0
  %1021 = vmatprep.subr.mxu0 0.0
  %1022 = vmatpush1.msra.mxu0 0.0
  %1023 = vmatprep.subr.mxu0 0.0
  %1024 = vmatpush1.msra.mxu0 0.0
  %1025 = vmatprep.subr.mxu0 0.0
  %1026 = vmatpush1.msra.mxu0 0.0
  %1027 = vmatprep.subr.mxu0 0.0
  %1028 = vmatpush1.msra.mxu0 0.0
  %1029 = vmatprep.subr.mxu0 0.0
  %1030 = vmatpush1.msra.mxu0 0.0
  %1031 = vmatprep.subr.mxu0 0.0
  %1032 = vmatpush1.msra.mxu0 0.0
  %1033 = vmatprep.subr.mxu0 0.0
  %1034 = vmatpush1.msra.mxu0 0.0
  %1035 = vmatprep.subr.mxu0 0.0
  %1036 = vmatpush1.msra.mxu0 0.0
  %1037 = vmatprep.subr.mxu0 0.0
  %1038 = vmatpush1.msra.mxu0 0.0
  %1039 = vmatprep.subr.mxu0 0.0
  %1040 = vmatpush1.msra.mxu0 0.0
  %1041 = vmatprep.subr.mxu0 0.0
  %1042 = vmatpush1.msra.mxu0 0.0
  %1043 = vmatprep.subr.mxu0 0.0
  %1044 = vmatpush1.msra.mxu0 0.0
  %1045 = vmatprep.subr.mxu0 0.0
  %1046 = vmatpush1.msra.mxu0 0.0
  %1047 = vmatprep.subr.mxu0 0.0
  %1048 = vmatpush1.msra.mxu0 0.0
  %1049 = vmatprep.subr.mxu0 0.0
  %1050 = vmatpush1.msra.mxu0 0.0
  %1051 = vmatprep.subr.mxu0 0.0
  %1052 = vmatpush1.msra.mxu0 0.0
  %1053 = vmatprep.subr.mxu0 0.0
  %1054 = vmatpush1.msra.mxu0 0.0
  %1055 = vmatprep.subr.mxu0 0.0
  %1056 = vmatpush1.msra.mxu0 0.0
  %1057 = vmatprep.subr.mxu0 0.0
  %1058 = vmatpush1.msra.mxu0 0.0
  %1059 = vmatprep.subr.mxu0 0.0
  %1060 = vmatpush1.msra.mxu0 0.0
  %1061 = vmatprep.subr.mxu0 0.0
  %1062 = vmatpush1.msra.mxu0 0.0
  %1063 = vmatprep.subr.mxu0 0.0
  %1064 = vmatpush1.msra.mxu0 0.0
  %1065 = vmatprep.subr.mxu0 0.0
  %1066 = vmatpush1.msra.mxu0 0.0
  %1067 = vmatprep.subr.mxu0 0.0
  %1068 = vmatpush1.msra.mxu0 0.0
  %1069 = vmatprep.mubr.f32.mxu0 0.0
  %1070 = vmatmul.mubr.f32.gmra.mrb[0].mxu0 %v1000
  %v1071 = vpop.f32.mrb[0].mxu0
  %v1072 = vadd.f32 %v991, %v1071
  %v1073 = vpop.f32.mrb[0].mxu0
  %1074 = vmatprep.mubr.f32.mxu0 0.0
  %1075 = vmatmul.mubr.f32.gmra.mrb[0].mxu0 %v1003
  %v1076 = vpop.f32.mrb[0].mxu0
  %v1077 = vadd.f32 %v996, %v1076
  %v1078 = vpop.f32.mrb[0].mxu0
  %1079 = vdwg.mxu0
  %1080 = vrot.lane.b32.xlu0 %v507, 112
  %v1081 = vpop.permute.xlu0 %1080
  %1082 = vrot.lane.b32.xlu0 %v512, 112
  %v1083 = vpop.permute.xlu0 %1082
  %1084 = vrot.lane.b32.xlu0 %v507, 80
  %v1085 = vpop.permute.xlu0 %1084
  %1086 = vrot.lane.b32.xlu0 %v512, 80
  %v1087 = vpop.permute.xlu0 %1086
  %v1088 = vsel %vm521, %v1081, 0
  %v1090 = vsel %vm521, %v1083, 0
  %v1092 = vsel %vm521, %v1085, 0
  %v1094 = vsel %vm521, %v1087, 0
  %1096 = vmatprep.subr.mxu0 0.0
  %1097 = vmatpush1.xpose.msra.mxu0 %v1092
  %1098 = vmatprep.subr.mxu0 0.0
  %1099 = vmatpush1.xpose.msra.mxu0 %v1094
  %1100 = vmatprep.subr.mxu0 0.0
  %1101 = vmatpush1.xpose.msra.mxu0 0.0
  %1102 = vmatprep.subr.mxu0 0.0
  %1103 = vmatpush1.xpose.msra.mxu0 0.0
  %1104 = vmatprep.subr.mxu0 0.0
  %1105 = vmatpush1.xpose.msra.mxu0 0.0
  %1106 = vmatprep.subr.mxu0 0.0
  %1107 = vmatpush1.xpose.msra.mxu0 0.0
  %1108 = vmatprep.subr.mxu0 0.0
  %1109 = vmatpush1.xpose.msra.mxu0 0.0
  %1110 = vmatprep.subr.mxu0 0.0
  %1111 = vmatpush1.xpose.msra.mxu0 0.0
  %1112 = vmatprep.subr.mxu0 0.0
  %1113 = vmatpush1.xpose.msra.mxu0 0.0
  %1114 = vmatprep.subr.mxu0 0.0
  %1115 = vmatpush1.xpose.msra.mxu0 0.0
  %1116 = vmatprep.subr.mxu0 0.0
  %1117 = vmatpush1.xpose.msra.mxu0 0.0
  %1118 = vmatprep.subr.mxu0 0.0
  %1119 = vmatpush1.xpose.msra.mxu0 0.0
  %1120 = vmatprep.subr.mxu0 0.0
  %1121 = vmatpush1.xpose.msra.mxu0 0.0
  %1122 = vmatprep.subr.mxu0 0.0
  %1123 = vmatpush1.xpose.msra.mxu0 0.0
  %1124 = vmatprep.subr.mxu0 0.0
  %1125 = vmatpush1.xpose.msra.mxu0 0.0
  %1126 = vmatprep.subr.mxu0 0.0
  %1127 = vmatpush1.xpose.msra.mxu0 0.0
  %1128 = vmatprep.subr.mxu0 0.0
  %1129 = vmatpush1.xpose.msra.mxu0 0.0
  %1130 = vmatprep.subr.mxu0 0.0
  %1131 = vmatpush1.xpose.msra.mxu0 0.0
  %1132 = vmatprep.subr.mxu0 0.0
  %1133 = vmatpush1.xpose.msra.mxu0 0.0
  %1134 = vmatprep.subr.mxu0 0.0
  %1135 = vmatpush1.xpose.msra.mxu0 0.0
  %1136 = vmatprep.subr.mxu0 0.0
  %1137 = vmatpush1.xpose.msra.mxu0 0.0
  %1138 = vmatprep.subr.mxu0 0.0
  %1139 = vmatpush1.xpose.msra.mxu0 0.0
  %1140 = vmatprep.subr.mxu0 0.0
  %1141 = vmatpush1.xpose.msra.mxu0 0.0
  %1142 = vmatprep.subr.mxu0 0.0
  %1143 = vmatpush1.xpose.msra.mxu0 0.0
  %1144 = vmatprep.subr.mxu0 0.0
  %1145 = vmatpush1.xpose.msra.mxu0 0.0
  %1146 = vmatprep.subr.mxu0 0.0
  %1147 = vmatpush1.xpose.msra.mxu0 0.0
  %1148 = vmatprep.subr.mxu0 0.0
  %1149 = vmatpush1.xpose.msra.mxu0 0.0
  %1150 = vmatprep.subr.mxu0 0.0
  %1151 = vmatpush1.xpose.msra.mxu0 0.0
  %1152 = vmatprep.subr.mxu0 0.0
  %1153 = vmatpush1.xpose.msra.mxu0 0.0
  %1154 = vmatprep.subr.mxu0 0.0
  %1155 = vmatpush1.xpose.msra.mxu0 0.0
  %1156 = vmatprep.subr.mxu0 0.0
  %1157 = vmatpush1.xpose.msra.mxu0 0.0
  %1158 = vmatprep.subr.mxu0 0.0
  %1159 = vmatpush1.xpose.msra.mxu0 0.0
  %1160 = vmatprep.mubr.f32.mxu0 0.0
  %1161 = vmatmul.mubr.f32.gmra.mrb[0].mxu0 %v1088
  %v1162 = vpop.f32.mrb[0].mxu0
  %v1163 = vadd.f32 %v393, %v1162
  %v1164 = vpop.f32.mrb[0].mxu0
  %1165 = vmatprep.mubr.f32.mxu0 0.0
  %1166 = vmatmul.mubr.f32.gmra.mrb[0].mxu0 %v1090
  %v1167 = vpop.f32.mrb[0].mxu0
  %v1168 = vadd.f32 %v394, %v1167
  %v1169 = vpop.f32.mrb[0].mxu0
  %1170 = vdwg.mxu0
  %v1171 = vsel %vm605, %v1163, -inf
  %1172 = vmax.xlane.f32.xlu0 %v1171
  %v1173 = vpop.xlane.xlu0 %1172
  %v1174 = vsel %vm605, %v1168, -inf
  %1175 = vmax.xlane.f32.xlu0 %v1174
  %v1176 = vpop.xlane.xlu0 %1175
  %v1177 = vsub.f32 %v1163, %v1173
  %v1178 = vsub.f32 %v1168, %v1176
  %v1179 = vmul.f32 %v1177, 1.442695
  %v1180 = vpow.pop %v1179
  %v1181 = vmul.f32 %v1178, 1.442695
  %v1182 = vpow.pop %v1181
  %v1183 = vsel %vm605, %v1180, 0.0
  %1184 = vadd.xlane.f32.xlu0 %v1183
  %v1185 = vpop.xlane.xlu0 %1184
  %v1186 = vsel %vm605, %v1182, 0.0
  %1187 = vadd.xlane.f32.xlu0 %v1186
  %v1188 = vpop.xlane.xlu0 %1187
  %v1189 = vrcp.pop %v1185
  %v1190 = vrcp.pop %v1188
  %v1191 = vmul.f32 %v1180, %v1189
  %v1192 = vmul.f32 %v1182, %v1190
  %1193 = vrot.lane.b32.xlu0 %v507, 48
  %v1194 = vpop.permute.xlu0 %1193
  %1195 = vrot.lane.b32.xlu0 %v512, 48
  %v1196 = vpop.permute.xlu0 %1195
  %v1200 = vsel %vm605, %v1191, 0
  %v1203 = vsel %vm605, %v1192, 0
  %1205 = vmatprep.subr.mxu0 0.0
  %1206 = vmatpush1.msra.mxu0 %v1194
  %1207 = vmatprep.subr.mxu0 0.0
  %1208 = vmatpush1.msra.mxu0 %v1196
  %1209 = vmatprep.subr.mxu0 0.0
  %1210 = vmatpush1.msra.mxu0 0.0
  %1211 = vmatprep.subr.mxu0 0.0
  %1212 = vmatpush1.msra.mxu0 0.0
  %1213 = vmatprep.subr.mxu0 0.0
  %1214 = vmatpush1.msra.mxu0 0.0
  %1215 = vmatprep.subr.mxu0 0.0
  %1216 = vmatpush1.msra.mxu0 0.0
  %1217 = vmatprep.subr.mxu0 0.0
  %1218 = vmatpush1.msra.mxu0 0.0
  %1219 = vmatprep.subr.mxu0 0.0
  %1220 = vmatpush1.msra.mxu0 0.0
  %1221 = vmatprep.subr.mxu0 0.0
  %1222 = vmatpush1.msra.mxu0 0.0
  %1223 = vmatprep.subr.mxu0 0.0
  %1224 = vmatpush1.msra.mxu0 0.0
  %1225 = vmatprep.subr.mxu0 0.0
  %1226 = vmatpush1.msra.mxu0 0.0
  %1227 = vmatprep.subr.mxu0 0.0
  %1228 = vmatpush1.msra.mxu0 0.0
  %1229 = vmatprep.subr.mxu0 0.0
  %1230 = vmatpush1.msra.mxu0 0.0
  %1231 = vmatprep.subr.mxu0 0.0
  %1232 = vmatpush1.msra.mxu0 0.0
  %1233 = vmatprep.subr.mxu0 0.0
  %1234 = vmatpush1.msra.mxu0 0.0
  %1235 = vmatprep.subr.mxu0 0.0
  %1236 = vmatpush1.msra.mxu0 0.0
  %1237 = vmatprep.subr.mxu0 0.0
  %1238 = vmatpush1.msra.mxu0 0.0
  %1239 = vmatprep.subr.mxu0 0.0
  %1240 = vmatpush1.msra.mxu0 0.0
  %1241 = vmatprep.subr.mxu0 0.0
  %1242 = vmatpush1.msra.mxu0 0.0
  %1243 = vmatprep.subr.mxu0 0.0
  %1244 = vmatpush1.msra.mxu0 0.0
  %1245 = vmatprep.subr.mxu0 0.0
  %1246 = vmatpush1.msra.mxu0 0.0
  %1247 = vmatprep.subr.mxu0 0.0
  %1248 = vmatpush1.msra.mxu0 0.0
  %1249 = vmatprep.subr.mxu0 0.0
  %1250 = vmatpush1.msra.mxu0 0.0
  %1251 = vmatprep.subr.mxu0 0.0
  %1252 = vmatpush1.msra.mxu0 0.0
  %1253 = vmatprep.subr.mxu0 0.0
  %1254 = vmatpush1.msra.mxu0 0.0
  %1255 = vmatprep.subr.mxu0 0.0
  %1256 = vmatpush1.msra.mxu0 0.0
  %1257 = vmatprep.subr.mxu0 0.0
  %1258 = vmatpush1.msra.mxu0 0.0
  %1259 = vmatprep.subr.mxu0 0.0
  %1260 = vmatpush1.msra.mxu0 0.0
  %1261 = vmatprep.subr.mxu0 0.0
  %1262 = vmatpush1.msra.mxu0 0.0
  %1263 = vmatprep.subr.mxu0 0.0
  %1264 = vmatpush1.msra.mxu0 0.0
  %1265 = vmatprep.subr.mxu0 0.0
  %1266 = vmatpush1.msra.mxu0 0.0
  %1267 = vmatprep.subr.mxu0 0.0
  %1268 = vmatpush1.msra.mxu0 0.0
  %1269 = vmatprep.mubr.f32.mxu0 0.0
  %1270 = vmatmul.mubr.f32.gmra.mrb[0].mxu0 %v1200
  %v1271 = vpop.f32.mrb[0].mxu0
  %v1272 = vadd.f32 0.0, %v1271
  %v1273 = vpop.f32.mrb[0].mxu0
  %1274 = vmatprep.mubr.f32.mxu0 0.0
  %1275 = vmatmul.mubr.f32.gmra.mrb[0].mxu0 %v1203
  %v1276 = vpop.f32.mrb[0].mxu0
  %v1277 = vadd.f32 0.0, %v1276
  %v1278 = vpop.f32.mrb[0].mxu0
  %1279 = vdwg.mxu0
  %s1280 = scalar_lea.vmem %s5, 16
  %v1281 = vld [vmem:[%s1280] sm:$0xff]
  %v1283 = vsel %vm521, %v1272, 0
  %v1286 = vsel %vm521, %v1277, 0
  %1288 = vmatprep.subr.mxu0 0.0
  %1289 = vmatpush1.msra.mxu0 %v1281
  %1290 = vmatprep.subr.mxu0 0.0
  %1291 = vmatpush1.msra.mxu0 0.0
  %1292 = vmatprep.subr.mxu0 0.0
  %1293 = vmatpush1.msra.mxu0 0.0
  %1294 = vmatprep.subr.mxu0 0.0
  %1295 = vmatpush1.msra.mxu0 0.0
  %1296 = vmatprep.subr.mxu0 0.0
  %1297 = vmatpush1.msra.mxu0 0.0
  %1298 = vmatprep.subr.mxu0 0.0
  %1299 = vmatpush1.msra.mxu0 0.0
  %1300 = vmatprep.subr.mxu0 0.0
  %1301 = vmatpush1.msra.mxu0 0.0
  %1302 = vmatprep.subr.mxu0 0.0
  %1303 = vmatpush1.msra.mxu0 0.0
  %1304 = vmatprep.subr.mxu0 0.0
  %1305 = vmatpush1.msra.mxu0 0.0
  %1306 = vmatprep.subr.mxu0 0.0
  %1307 = vmatpush1.msra.mxu0 0.0
  %1308 = vmatprep.subr.mxu0 0.0
  %1309 = vmatpush1.msra.mxu0 0.0
  %1310 = vmatprep.subr.mxu0 0.0
  %1311 = vmatpush1.msra.mxu0 0.0
  %1312 = vmatprep.subr.mxu0 0.0
  %1313 = vmatpush1.msra.mxu0 0.0
  %1314 = vmatprep.subr.mxu0 0.0
  %1315 = vmatpush1.msra.mxu0 0.0
  %1316 = vmatprep.subr.mxu0 0.0
  %1317 = vmatpush1.msra.mxu0 0.0
  %1318 = vmatprep.subr.mxu0 0.0
  %1319 = vmatpush1.msra.mxu0 0.0
  %1320 = vmatprep.subr.mxu0 0.0
  %1321 = vmatpush1.msra.mxu0 0.0
  %1322 = vmatprep.subr.mxu0 0.0
  %1323 = vmatpush1.msra.mxu0 0.0
  %1324 = vmatprep.subr.mxu0 0.0
  %1325 = vmatpush1.msra.mxu0 0.0
  %1326 = vmatprep.subr.mxu0 0.0
  %1327 = vmatpush1.msra.mxu0 0.0
  %1328 = vmatprep.subr.mxu0 0.0
  %1329 = vmatpush1.msra.mxu0 0.0
  %1330 = vmatprep.subr.mxu0 0.0
  %1331 = vmatpush1.msra.mxu0 0.0
  %1332 = vmatprep.subr.mxu0 0.0
  %1333 = vmatpush1.msra.mxu0 0.0
  %1334 = vmatprep.subr.mxu0 0.0
  %1335 = vmatpush1.msra.mxu0 0.0
  %1336 = vmatprep.subr.mxu0 0.0
  %1337 = vmatpush1.msra.mxu0 0.0
  %1338 = vmatprep.subr.mxu0 0.0
  %1339 = vmatpush1.msra.mxu0 0.0
  %1340 = vmatprep.subr.mxu0 0.0
  %1341 = vmatpush1.msra.mxu0 0.0
  %1342 = vmatprep.subr.mxu0 0.0
  %1343 = vmatpush1.msra.mxu0 0.0
  %1344 = vmatprep.subr.mxu0 0.0
  %1345 = vmatpush1.msra.mxu0 0.0
  %1346 = vmatprep.subr.mxu0 0.0
  %1347 = vmatpush1.msra.mxu0 0.0
  %1348 = vmatprep.subr.mxu0 0.0
  %1349 = vmatpush1.msra.mxu0 0.0
  %1350 = vmatprep.subr.mxu0 0.0
  %1351 = vmatpush1.msra.mxu0 0.0
  %1352 = vmatprep.mubr.f32.mxu0 0.0
  %1353 = vmatmul.mubr.f32.gmra.mrb[0].mxu0 %v1283
  %v1354 = vpop.f32.mrb[0].mxu0
  %v1355 = vadd.f32 0.0, %v1354
  %v1356 = vpop.f32.mrb[0].mxu0
  %1357 = vmatprep.mubr.f32.mxu0 0.0
  %1358 = vmatmul.mubr.f32.gmra.mrb[0].mxu0 %v1286
  %v1359 = vpop.f32.mrb[0].mxu0
  %v1360 = vadd.f32 0.0, %v1359
  %v1361 = vpop.f32.mrb[0].mxu0
  %1362 = vdwg.mxu0
  %v1363 = vadd.f32 %v1072, %v1355
  %v1364 = vadd.f32 %v1077, %v1360
  %1365 = vrot.lane.b32.xlu0 %v507, 104
  %v1366 = vpop.permute.xlu0 %1365
  %1367 = vrot.lane.b32.xlu0 %v512, 104
  %v1368 = vpop.permute.xlu0 %1367
  %1369 = vrot.lane.b32.xlu0 %v507, 72
  %v1370 = vpop.permute.xlu0 %1369
  %1371 = vrot.lane.b32.xlu0 %v512, 72
  %v1372 = vpop.permute.xlu0 %1371
  %v1373 = vsel %vm521, %v1366, 0
  %v1375 = vsel %vm521, %v1368, 0
  %v1377 = vsel %vm521, %v1370, 0
  %v1379 = vsel %vm521, %v1372, 0
  %1381 = vmatprep.subr.mxu0 0.0
  %1382 = vmatpush1.xpose.msra.mxu0 %v1377
  %1383 = vmatprep.subr.mxu0 0.0
  %1384 = vmatpush1.xpose.msra.mxu0 %v1379
  %1385 = vmatprep.subr.mxu0 0.0
  %1386 = vmatpush1.xpose.msra.mxu0 0.0
  %1387 = vmatprep.subr.mxu0 0.0
  %1388 = vmatpush1.xpose.msra.mxu0 0.0
  %1389 = vmatprep.subr.mxu0 0.0
  %1390 = vmatpush1.xpose.msra.mxu0 0.0
  %1391 = vmatprep.subr.mxu0 0.0
  %1392 = vmatpush1.xpose.msra.mxu0 0.0
  %1393 = vmatprep.subr.mxu0 0.0
  %1394 = vmatpush1.xpose.msra.mxu0 0.0
  %1395 = vmatprep.subr.mxu0 0.0
  %1396 = vmatpush1.xpose.msra.mxu0 0.0
  %1397 = vmatprep.subr.mxu0 0.0
  %1398 = vmatpush1.xpose.msra.mxu0 0.0
  %1399 = vmatprep.subr.mxu0 0.0
  %1400 = vmatpush1.xpose.msra.mxu0 0.0
  %1401 = vmatprep.subr.mxu0 0.0
  %1402 = vmatpush1.xpose.msra.mxu0 0.0
  %1403 = vmatprep.subr.mxu0 0.0
  %1404 = vmatpush1.xpose.msra.mxu0 0.0
  %1405 = vmatprep.subr.mxu0 0.0
  %1406 = vmatpush1.xpose.msra.mxu0 0.0
  %1407 = vmatprep.subr.mxu0 0.0
  %1408 = vmatpush1.xpose.msra.mxu0 0.0
  %1409 = vmatprep.subr.mxu0 0.0
  %1410 = vmatpush1.xpose.msra.mxu0 0.0
  %1411 = vmatprep.subr.mxu0 0.0
  %1412 = vmatpush1.xpose.msra.mxu0 0.0
  %1413 = vmatprep.subr.mxu0 0.0
  %1414 = vmatpush1.xpose.msra.mxu0 0.0
  %1415 = vmatprep.subr.mxu0 0.0
  %1416 = vmatpush1.xpose.msra.mxu0 0.0
  %1417 = vmatprep.subr.mxu0 0.0
  %1418 = vmatpush1.xpose.msra.mxu0 0.0
  %1419 = vmatprep.subr.mxu0 0.0
  %1420 = vmatpush1.xpose.msra.mxu0 0.0
  %1421 = vmatprep.subr.mxu0 0.0
  %1422 = vmatpush1.xpose.msra.mxu0 0.0
  %1423 = vmatprep.subr.mxu0 0.0
  %1424 = vmatpush1.xpose.msra.mxu0 0.0
  %1425 = vmatprep.subr.mxu0 0.0
  %1426 = vmatpush1.xpose.msra.mxu0 0.0
  %1427 = vmatprep.subr.mxu0 0.0
  %1428 = vmatpush1.xpose.msra.mxu0 0.0
  %1429 = vmatprep.subr.mxu0 0.0
  %1430 = vmatpush1.xpose.msra.mxu0 0.0
  %1431 = vmatprep.subr.mxu0 0.0
  %1432 = vmatpush1.xpose.msra.mxu0 0.0
  %1433 = vmatprep.subr.mxu0 0.0
  %1434 = vmatpush1.xpose.msra.mxu0 0.0
  %1435 = vmatprep.subr.mxu0 0.0
  %1436 = vmatpush1.xpose.msra.mxu0 0.0
  %1437 = vmatprep.subr.mxu0 0.0
  %1438 = vmatpush1.xpose.msra.mxu0 0.0
  %1439 = vmatprep.subr.mxu0 0.0
  %1440 = vmatpush1.xpose.msra.mxu0 0.0
  %1441 = vmatprep.subr.mxu0 0.0
  %1442 = vmatpush1.xpose.msra.mxu0 0.0
  %1443 = vmatprep.subr.mxu0 0.0
  %1444 = vmatpush1.xpose.msra.mxu0 0.0
  %1445 = vmatprep.mubr.f32.mxu0 0.0
  %1446 = vmatmul.mubr.f32.gmra.mrb[0].mxu0 %v1373
  %v1447 = vpop.f32.mrb[0].mxu0
  %v1448 = vadd.f32 %v393, %v1447
  %v1449 = vpop.f32.mrb[0].mxu0
  %1450 = vmatprep.mubr.f32.mxu0 0.0
  %1451 = vmatmul.mubr.f32.gmra.mrb[0].mxu0 %v1375
  %v1452 = vpop.f32.mrb[0].mxu0
  %v1453 = vadd.f32 %v394, %v1452
  %v1454 = vpop.f32.mrb[0].mxu0
  %1455 = vdwg.mxu0
  %v1456 = vsel %vm605, %v1448, -inf
  %1457 = vmax.xlane.f32.xlu0 %v1456
  %v1458 = vpop.xlane.xlu0 %1457
  %v1459 = vsel %vm605, %v1453, -inf
  %1460 = vmax.xlane.f32.xlu0 %v1459
  %v1461 = vpop.xlane.xlu0 %1460
  %v1462 = vsub.f32 %v1448, %v1458
  %v1463 = vsub.f32 %v1453, %v1461
  %v1464 = vmul.f32 %v1462, 1.442695
  %v1465 = vpow.pop %v1464
  %v1466 = vmul.f32 %v1463, 1.442695
  %v1467 = vpow.pop %v1466
  %v1468 = vsel %vm605, %v1465, 0.0
  %1469 = vadd.xlane.f32.xlu0 %v1468
  %v1470 = vpop.xlane.xlu0 %1469
  %v1471 = vsel %vm605, %v1467, 0.0
  %1472 = vadd.xlane.f32.xlu0 %v1471
  %v1473 = vpop.xlane.xlu0 %1472
  %v1474 = vrcp.pop %v1470
  %v1475 = vrcp.pop %v1473
  %v1476 = vmul.f32 %v1465, %v1474
  %v1477 = vmul.f32 %v1467, %v1475
  %1478 = vrot.lane.b32.xlu0 %v507, 40
  %v1479 = vpop.permute.xlu0 %1478
  %1480 = vrot.lane.b32.xlu0 %v512, 40
  %v1481 = vpop.permute.xlu0 %1480
  %v1485 = vsel %vm605, %v1476, 0
  %v1488 = vsel %vm605, %v1477, 0
  %1490 = vmatprep.subr.mxu0 0.0
  %1491 = vmatpush1.msra.mxu0 %v1479
  %1492 = vmatprep.subr.mxu0 0.0
  %1493 = vmatpush1.msra.mxu0 %v1481
  %1494 = vmatprep.subr.mxu0 0.0
  %1495 = vmatpush1.msra.mxu0 0.0
  %1496 = vmatprep.subr.mxu0 0.0
  %1497 = vmatpush1.msra.mxu0 0.0
  %1498 = vmatprep.subr.mxu0 0.0
  %1499 = vmatpush1.msra.mxu0 0.0
  %1500 = vmatprep.subr.mxu0 0.0
  %1501 = vmatpush1.msra.mxu0 0.0
  %1502 = vmatprep.subr.mxu0 0.0
  %1503 = vmatpush1.msra.mxu0 0.0
  %1504 = vmatprep.subr.mxu0 0.0
  %1505 = vmatpush1.msra.mxu0 0.0
  %1506 = vmatprep.subr.mxu0 0.0
  %1507 = vmatpush1.msra.mxu0 0.0
  %1508 = vmatprep.subr.mxu0 0.0
  %1509 = vmatpush1.msra.mxu0 0.0
  %1510 = vmatprep.subr.mxu0 0.0
  %1511 = vmatpush1.msra.mxu0 0.0
  %1512 = vmatprep.subr.mxu0 0.0
  %1513 = vmatpush1.msra.mxu0 0.0
  %1514 = vmatprep.subr.mxu0 0.0
  %1515 = vmatpush1.msra.mxu0 0.0
  %1516 = vmatprep.subr.mxu0 0.0
  %1517 = vmatpush1.msra.mxu0 0.0
  %1518 = vmatprep.subr.mxu0 0.0
  %1519 = vmatpush1.msra.mxu0 0.0
  %1520 = vmatprep.subr.mxu0 0.0
  %1521 = vmatpush1.msra.mxu0 0.0
  %1522 = vmatprep.subr.mxu0 0.0
  %1523 = vmatpush1.msra.mxu0 0.0
  %1524 = vmatprep.subr.mxu0 0.0
  %1525 = vmatpush1.msra.mxu0 0.0
  %1526 = vmatprep.subr.mxu0 0.0
  %1527 = vmatpush1.msra.mxu0 0.0
  %1528 = vmatprep.subr.mxu0 0.0
  %1529 = vmatpush1.msra.mxu0 0.0
  %1530 = vmatprep.subr.mxu0 0.0
  %1531 = vmatpush1.msra.mxu0 0.0
  %1532 = vmatprep.subr.mxu0 0.0
  %1533 = vmatpush1.msra.mxu0 0.0
  %1534 = vmatprep.subr.mxu0 0.0
  %1535 = vmatpush1.msra.mxu0 0.0
  %1536 = vmatprep.subr.mxu0 0.0
  %1537 = vmatpush1.msra.mxu0 0.0
  %1538 = vmatprep.subr.mxu0 0.0
  %1539 = vmatpush1.msra.mxu0 0.0
  %1540 = vmatprep.subr.mxu0 0.0
  %1541 = vmatpush1.msra.mxu0 0.0
  %1542 = vmatprep.subr.mxu0 0.0
  %1543 = vmatpush1.msra.mxu0 0.0
  %1544 = vmatprep.subr.mxu0 0.0
  %1545 = vmatpush1.msra.mxu0 0.0
  %1546 = vmatprep.subr.mxu0 0.0
  %1547 = vmatpush1.msra.mxu0 0.0
  %1548 = vmatprep.subr.mxu0 0.0
  %1549 = vmatpush1.msra.mxu0 0.0
  %1550 = vmatprep.subr.mxu0 0.0
  %1551 = vmatpush1.msra.mxu0 0.0
  %1552 = vmatprep.subr.mxu0 0.0
  %1553 = vmatpush1.msra.mxu0 0.0
  %1554 = vmatprep.mubr.f32.mxu0 0.0
  %1555 = vmatmul.mubr.f32.gmra.mrb[0].mxu0 %v1485
  %v1556 = vpop.f32.mrb[0].mxu0
  %v1557 = vadd.f32 0.0, %v1556
  %v1558 = vpop.f32.mrb[0].mxu0
  %1559 = vmatprep.mubr.f32.mxu0 0.0
  %1560 = vmatmul.mubr.f32.gmra.mrb[0].mxu0 %v1488
  %v1561 = vpop.f32.mrb[0].mxu0
  %v1562 = vadd.f32 0.0, %v1561
  %v1563 = vpop.f32.mrb[0].mxu0
  %1564 = vdwg.mxu0
  %s1565 = scalar_lea.vmem %s5, 24
  %v1566 = vld [vmem:[%s1565] sm:$0xff]
  %v1568 = vsel %vm521, %v1557, 0
  %v1571 = vsel %vm521, %v1562, 0
  %1573 = vmatprep.subr.mxu0 0.0
  %1574 = vmatpush1.msra.mxu0 %v1566
  %1575 = vmatprep.subr.mxu0 0.0
  %1576 = vmatpush1.msra.mxu0 0.0
  %1577 = vmatprep.subr.mxu0 0.0
  %1578 = vmatpush1.msra.mxu0 0.0
  %1579 = vmatprep.subr.mxu0 0.0
  %1580 = vmatpush1.msra.mxu0 0.0
  %1581 = vmatprep.subr.mxu0 0.0
  %1582 = vmatpush1.msra.mxu0 0.0
  %1583 = vmatprep.subr.mxu0 0.0
  %1584 = vmatpush1.msra.mxu0 0.0
  %1585 = vmatprep.subr.mxu0 0.0
  %1586 = vmatpush1.msra.mxu0 0.0
  %1587 = vmatprep.subr.mxu0 0.0
  %1588 = vmatpush1.msra.mxu0 0.0
  %1589 = vmatprep.subr.mxu0 0.0
  %1590 = vmatpush1.msra.mxu0 0.0
  %1591 = vmatprep.subr.mxu0 0.0
  %1592 = vmatpush1.msra.mxu0 0.0
  %1593 = vmatprep.subr.mxu0 0.0
  %1594 = vmatpush1.msra.mxu0 0.0
  %1595 = vmatprep.subr.mxu0 0.0
  %1596 = vmatpush1.msra.mxu0 0.0
  %1597 = vmatprep.subr.mxu0 0.0
  %1598 = vmatpush1.msra.mxu0 0.0
  %1599 = vmatprep.subr.mxu0 0.0
  %1600 = vmatpush1.msra.mxu0 0.0
  %1601 = vmatprep.subr.mxu0 0.0
  %1602 = vmatpush1.msra.mxu0 0.0
  %1603 = vmatprep.subr.mxu0 0.0
  %1604 = vmatpush1.msra.mxu0 0.0
  %1605 = vmatprep.subr.mxu0 0.0
  %1606 = vmatpush1.msra.mxu0 0.0
  %1607 = vmatprep.subr.mxu0 0.0
  %1608 = vmatpush1.msra.mxu0 0.0
  %1609 = vmatprep.subr.mxu0 0.0
  %1610 = vmatpush1.msra.mxu0 0.0
  %1611 = vmatprep.subr.mxu0 0.0
  %1612 = vmatpush1.msra.mxu0 0.0
  %1613 = vmatprep.subr.mxu0 0.0
  %1614 = vmatpush1.msra.mxu0 0.0
  %1615 = vmatprep.subr.mxu0 0.0
  %1616 = vmatpush1.msra.mxu0 0.0
  %1617 = vmatprep.subr.mxu0 0.0
  %1618 = vmatpush1.msra.mxu0 0.0
  %1619 = vmatprep.subr.mxu0 0.0
  %1620 = vmatpush1.msra.mxu0 0.0
  %1621 = vmatprep.subr.mxu0 0.0
  %1622 = vmatpush1.msra.mxu0 0.0
  %1623 = vmatprep.subr.mxu0 0.0
  %1624 = vmatpush1.msra.mxu0 0.0
  %1625 = vmatprep.subr.mxu0 0.0
  %1626 = vmatpush1.msra.mxu0 0.0
  %1627 = vmatprep.subr.mxu0 0.0
  %1628 = vmatpush1.msra.mxu0 0.0
  %1629 = vmatprep.subr.mxu0 0.0
  %1630 = vmatpush1.msra.mxu0 0.0
  %1631 = vmatprep.subr.mxu0 0.0
  %1632 = vmatpush1.msra.mxu0 0.0
  %1633 = vmatprep.subr.mxu0 0.0
  %1634 = vmatpush1.msra.mxu0 0.0
  %1635 = vmatprep.subr.mxu0 0.0
  %1636 = vmatpush1.msra.mxu0 0.0
  %1637 = vmatprep.mubr.f32.mxu0 0.0
  %1638 = vmatmul.mubr.f32.gmra.mrb[0].mxu0 %v1568
  %v1639 = vpop.f32.mrb[0].mxu0
  %v1640 = vadd.f32 0.0, %v1639
  %v1641 = vpop.f32.mrb[0].mxu0
  %1642 = vmatprep.mubr.f32.mxu0 0.0
  %1643 = vmatmul.mubr.f32.gmra.mrb[0].mxu0 %v1571
  %v1644 = vpop.f32.mrb[0].mxu0
  %v1645 = vadd.f32 0.0, %v1644
  %v1646 = vpop.f32.mrb[0].mxu0
  %1647 = vdwg.mxu0
  %v1648 = vadd.f32 %v1363, %v1640
  %v1649 = vadd.f32 %v1364, %v1645
  %v1650 = vadd.f32 %v371, %v1648
  %v1651 = vadd.f32 %v376, %v1649
  %v1652 = vld [vmem:[%s6] sm:$0x1]
  %v1654 = vlaneseq
  %v1655 = vshrl.u32 %v1654, 7
  %v1656 = vsub.s32 0, %v1655
  %v1657 = vrot.slane %v1652, %v1656
  %v1659 = vadd.f32 %v1650, %v1657
  %v1660 = vadd.f32 %v1651, %v1657
  %v1661 = vsel %vm395, %v1659, 0.0
  %1662 = vadd.xlane.f32.xlu0 %v1661
  %v1663 = vpop.xlane.xlu0 %1662
  %v1664 = vsel %vm395, %v1660, 0.0
  %1665 = vadd.xlane.f32.xlu0 %v1664
  %v1666 = vpop.xlane.xlu0 %1665
  %v1667 = vmul.f32 %v1663, %v402
  %v1668 = vmul.f32 %v1666, %v402
  %v1669 = vsub.f32 %v1659, %v1667
  %v1670 = vsub.f32 %v1660, %v1668
  %v1671 = vmul.f32 %v1669, %v1669
  %v1672 = vmul.f32 %v1670, %v1670
  %v1673 = vsel %vm395, %v1671, 0.0
  %1674 = vadd.xlane.f32.xlu0 %v1673
  %v1675 = vpop.xlane.xlu0 %1674
  %v1676 = vsel %vm395, %v1672, 0.0
  %1677 = vadd.xlane.f32.xlu0 %v1676
  %v1678 = vpop.xlane.xlu0 %1677
  %v1679 = vmul.f32 %v1675, %v402
  %v1680 = vmul.f32 %v1678, %v402
  %v1681 = vadd.f32 %v1679, 1e-06
  %v1682 = vadd.f32 %v1680, 1e-06
  %v1683 = vrsqrt.pop %v1681
  %v1684 = vrsqrt.pop %v1682
  %v1685 = vmul.f32 %v1669, %v1683
  %v1686 = vmul.f32 %v1670, %v1684
  %v1687 = vld [vmem:[%s7] sm:$0xff]
  %v1688 = vld [vmem:[%s7 + $0x8] sm:$0xff]
  %v1689 = vld [vmem:[%s7 + $0x10] sm:$0xff]
  %v1690 = vld [vmem:[%s7 + $0x18] sm:$0xff]
  %v1691 = vld [vmem:[%s8] sm:$0x1]
  %v1693 = vlaneseq
  %v1694 = vshrl.u32 %v1693, 7
  %v1695 = vsub.s32 0, %v1694
  %v1696 = vrot.slane %v1691, %v1695
  %v1699 = vsel %vm395, %v1685, 0
  %v1702 = vsel %vm395, %v1686, 0
  %1704 = vmatprep.subr.mxu0 0.0
  %1705 = vmatpush1.msra.mxu0 %v1687
  %1706 = vmatprep.subr.mxu0 0.0
  %1707 = vmatpush1.msra.mxu0 %v1688
  %1708 = vmatprep.subr.mxu0 0.0
  %1709 = vmatpush1.msra.mxu0 %v1689
  %1710 = vmatprep.subr.mxu0 0.0
  %1711 = vmatpush1.msra.mxu0 %v1690
  %1712 = vmatprep.subr.mxu0 0.0
  %1713 = vmatpush1.msra.mxu0 0.0
  %1714 = vmatprep.subr.mxu0 0.0
  %1715 = vmatpush1.msra.mxu0 0.0
  %1716 = vmatprep.subr.mxu0 0.0
  %1717 = vmatpush1.msra.mxu0 0.0
  %1718 = vmatprep.subr.mxu0 0.0
  %1719 = vmatpush1.msra.mxu0 0.0
  %1720 = vmatprep.subr.mxu0 0.0
  %1721 = vmatpush1.msra.mxu0 0.0
  %1722 = vmatprep.subr.mxu0 0.0
  %1723 = vmatpush1.msra.mxu0 0.0
  %1724 = vmatprep.subr.mxu0 0.0
  %1725 = vmatpush1.msra.mxu0 0.0
  %1726 = vmatprep.subr.mxu0 0.0
  %1727 = vmatpush1.msra.mxu0 0.0
  %1728 = vmatprep.subr.mxu0 0.0
  %1729 = vmatpush1.msra.mxu0 0.0
  %1730 = vmatprep.subr.mxu0 0.0
  %1731 = vmatpush1.msra.mxu0 0.0
  %1732 = vmatprep.subr.mxu0 0.0
  %1733 = vmatpush1.msra.mxu0 0.0
  %1734 = vmatprep.subr.mxu0 0.0
  %1735 = vmatpush1.msra.mxu0 0.0
  %1736 = vmatprep.subr.mxu0 0.0
  %1737 = vmatpush1.msra.mxu0 0.0
  %1738 = vmatprep.subr.mxu0 0.0
  %1739 = vmatpush1.msra.mxu0 0.0
  %1740 = vmatprep.subr.mxu0 0.0
  %1741 = vmatpush1.msra.mxu0 0.0
  %1742 = vmatprep.subr.mxu0 0.0
  %1743 = vmatpush1.msra.mxu0 0.0
  %1744 = vmatprep.subr.mxu0 0.0
  %1745 = vmatpush1.msra.mxu0 0.0
  %1746 = vmatprep.subr.mxu0 0.0
  %1747 = vmatpush1.msra.mxu0 0.0
  %1748 = vmatprep.subr.mxu0 0.0
  %1749 = vmatpush1.msra.mxu0 0.0
  %1750 = vmatprep.subr.mxu0 0.0
  %1751 = vmatpush1.msra.mxu0 0.0
  %1752 = vmatprep.subr.mxu0 0.0
  %1753 = vmatpush1.msra.mxu0 0.0
  %1754 = vmatprep.subr.mxu0 0.0
  %1755 = vmatpush1.msra.mxu0 0.0
  %1756 = vmatprep.subr.mxu0 0.0
  %1757 = vmatpush1.msra.mxu0 0.0
  %1758 = vmatprep.subr.mxu0 0.0
  %1759 = vmatpush1.msra.mxu0 0.0
  %1760 = vmatprep.subr.mxu0 0.0
  %1761 = vmatpush1.msra.mxu0 0.0
  %1762 = vmatprep.subr.mxu0 0.0
  %1763 = vmatpush1.msra.mxu0 0.0
  %1764 = vmatprep.subr.mxu0 0.0
  %1765 = vmatpush1.msra.mxu0 0.0
  %1766 = vmatprep.subr.mxu0 0.0
  %1767 = vmatpush1.msra.mxu0 0.0
  %1768 = vmatprep.mubr.f32.mxu0 0.0
  %1769 = vmatmul.mubr.f32.gmra.mrb[0].mxu0 %v1699
  %v1770 = vpop.f32.mrb[0].mxu0
  %v1771 = vadd.f32 %v1696, %v1770
  %v1772 = vpop.f32.mrb[0].mxu0
  %1773 = vmatprep.mubr.f32.mxu0 0.0
  %1774 = vmatmul.mubr.f32.gmra.mrb[0].mxu0 %v1702
  %v1775 = vpop.f32.mrb[0].mxu0
  %v1776 = vadd.f32 %v1696, %v1775
  %v1777 = vpop.f32.mrb[0].mxu0
  %1778 = vdwg.mxu0
  %v1779 = vmul.f32 %v1771, 0.5
  %v1780 = vmul.f32 %v1776, 0.5
  %v1781 = vmul.f32 %v1771, 0.70710677
  %v1782 = vmul.f32 %v1776, 0.70710677
  %v1783 = verf.f32.pop %v1781
  %v1784 = verf.f32.pop %v1782
  %v1785 = vadd.f32 %v1783, 1.0
  %v1786 = vadd.f32 %v1784, 1.0
  %v1787 = vmul.f32 %v1779, %v1785
  %v1788 = vmul.f32 %v1780, %v1786
  %v1789 = vld [vmem:[%s9] sm:$0xff]
  %v1790 = vld [vmem:[%s9 + $0x8] sm:$0xff]
  %v1791 = vld [vmem:[%s9 + $0x10] sm:$0xff]
  %v1792 = vld [vmem:[%s9 + $0x18] sm:$0xff]
  %v1793 = vld [vmem:[%s9 + $0x20] sm:$0xff]
  %v1794 = vld [vmem:[%s9 + $0x28] sm:$0xff]
  %v1795 = vld [vmem:[%s9 + $0x30] sm:$0xff]
  %v1796 = vld [vmem:[%s9 + $0x38] sm:$0xff]
  %vm1797 = vcmask 523264
  %v1799 = vsel %vm1797, %v1787, 0
  %v1802 = vsel %vm1797, %v1788, 0
  %1804 = vmatprep.subr.mxu0 0.0
  %1805 = vmatpush1.msra.mxu0 %v1789
  %1806 = vmatprep.subr.mxu0 0.0
  %1807 = vmatpush1.msra.mxu0 %v1790
  %1808 = vmatprep.subr.mxu0 0.0
  %1809 = vmatpush1.msra.mxu0 %v1791
  %1810 = vmatprep.subr.mxu0 0.0
  %1811 = vmatpush1.msra.mxu0 %v1792
  %1812 = vmatprep.subr.mxu0 0.0
  %1813 = vmatpush1.msra.mxu0 %v1793
  %1814 = vmatprep.subr.mxu0 0.0
  %1815 = vmatpush1.msra.mxu0 %v1794
  %1816 = vmatprep.subr.mxu0 0.0
  %1817 = vmatpush1.msra.mxu0 %v1795
  %1818 = vmatprep.subr.mxu0 0.0
  %1819 = vmatpush1.msra.mxu0 %v1796
  %1820 = vmatprep.subr.mxu0 0.0
  %1821 = vmatpush1.msra.mxu0 0.0
  %1822 = vmatprep.subr.mxu0 0.0
  %1823 = vmatpush1.msra.mxu0 0.0
  %1824 = vmatprep.subr.mxu0 0.0
  %1825 = vmatpush1.msra.mxu0 0.0
  %1826 = vmatprep.subr.mxu0 0.0
  %1827 = vmatpush1.msra.mxu0 0.0
  %1828 = vmatprep.subr.mxu0 0.0
  %1829 = vmatpush1.msra.mxu0 0.0
  %1830 = vmatprep.subr.mxu0 0.0
  %1831 = vmatpush1.msra.mxu0 0.0
  %1832 = vmatprep.subr.mxu0 0.0
  %1833 = vmatpush1.msra.mxu0 0.0
  %1834 = vmatprep.subr.mxu0 0.0
  %1835 = vmatpush1.msra.mxu0 0.0
  %1836 = vmatprep.subr.mxu0 0.0
  %1837 = vmatpush1.msra.mxu0 0.0
  %1838 = vmatprep.subr.mxu0 0.0
  %1839 = vmatpush1.msra.mxu0 0.0
  %1840 = vmatprep.subr.mxu0 0.0
  %1841 = vmatpush1.msra.mxu0 0.0
  %1842 = vmatprep.subr.mxu0 0.0
  %1843 = vmatpush1.msra.mxu0 0.0
  %1844 = vmatprep.subr.mxu0 0.0
  %1845 = vmatpush1.msra.mxu0 0.0
  %1846 = vmatprep.subr.mxu0 0.0
  %1847 = vmatpush1.msra.mxu0 0.0
  %1848 = vmatprep.subr.mxu0 0.0
  %1849 = vmatpush1.msra.mxu0 0.0
  %1850 = vmatprep.subr.mxu0 0.0
  %1851 = vmatpush1.msra.mxu0 0.0
  %1852 = vmatprep.subr.mxu0 0.0
  %1853 = vmatpush1.msra.mxu0 0.0
  %1854 = vmatprep.subr.mxu0 0.0
  %1855 = vmatpush1.msra.mxu0 0.0
  %1856 = vmatprep.subr.mxu0 0.0
  %1857 = vmatpush1.msra.mxu0 0.0
  %1858 = vmatprep.subr.mxu0 0.0
  %1859 = vmatpush1.msra.mxu0 0.0
  %1860 = vmatprep.subr.mxu0 0.0
  %1861 = vmatpush1.msra.mxu0 0.0
  %1862 = vmatprep.subr.mxu0 0.0
  %1863 = vmatpush1.msra.mxu0 0.0
  %1864 = vmatprep.subr.mxu0 0.0
  %1865 = vmatpush1.msra.mxu0 0.0
  %1866 = vmatprep.subr.mxu0 0.0
  %1867 = vmatpush1.msra.mxu0 0.0
  %1868 = vmatprep.mubr.f32.mxu0 0.0
  %1869 = vmatmul.mubr.f32.gmra.mrb[0].mxu0 %v1799
  %v1870 = vpop.f32.mrb[0].mxu0
  %v1871 = vadd.f32 0.0, %v1870
  %v1872 = vpop.f32.mrb[0].mxu0
  %1873 = vmatprep.mubr.f32.mxu0 0.0
  %1874 = vmatmul.mubr.f32.gmra.mrb[0].mxu0 %v1802
  %v1875 = vpop.f32.mrb[0].mxu0
  %v1876 = vadd.f32 0.0, %v1875
  %v1877 = vpop.f32.mrb[0].mxu0
  %1878 = vdwg.mxu0
  %v1879 = vadd.f32 %v1659, %v1871
  %v1880 = vadd.f32 %v1660, %v1876
  %v1881 = vld [vmem:[%s10] sm:$0x1]
  %v1883 = vlaneseq
  %v1884 = vshrl.u32 %v1883, 7
  %v1885 = vsub.s32 0, %v1884
  %v1886 = vrot.slane %v1881, %v1885
  %v1888 = vadd.f32 %v1879, %v1886
  %v1889 = vadd.f32 %v1880, %v1886
  %v1890 = vsel %vm395, %v1888, 0.0
  %1891 = vadd.xlane.f32.xlu0 %v1890
  %v1892 = vpop.xlane.xlu0 %1891
  %v1893 = vsel %vm395, %v1889, 0.0
  %1894 = vadd.xlane.f32.xlu0 %v1893
  %v1895 = vpop.xlane.xlu0 %1894
  %v1896 = vmul.f32 %v1892, %v402
  %v1897 = vmul.f32 %v1895, %v402
  %v1898 = vsub.f32 %v1888, %v1896
  %v1899 = vsub.f32 %v1889, %v1897
  %v1900 = vmul.f32 %v1898, %v1898
  %v1901 = vmul.f32 %v1899, %v1899
  %v1902 = vsel %vm395, %v1900, 0.0
  %1903 = vadd.xlane.f32.xlu0 %v1902
  %v1904 = vpop.xlane.xlu0 %1903
  %v1905 = vsel %vm395, %v1901, 0.0
  %1906 = vadd.xlane.f32.xlu0 %v1905
  %v1907 = vpop.xlane.xlu0 %1906
  %v1908 = vmul.f32 %v1904, %v402
  %v1909 = vmul.f32 %v1907, %v402
  %v1910 = vadd.f32 %v1908, 1e-06
  %v1911 = vadd.f32 %v1909, 1e-06
  %v1912 = vrsqrt.pop %v1910
  %v1913 = vrsqrt.pop %v1911
  %v1914 = vmul.f32 %v1898, %v1912
  %v1915 = vmul.f32 %v1899, %v1913
  %s1916 = scalar_lea.vmem %s3, 32
  %v1917 = vld [vmem:[%s1916] sm:$0xff]
  %v1918 = vld [vmem:[%s1916 + $0x8] sm:$0xff]
  %v1919 = vld [vmem:[%s1916 + $0x10] sm:$0xff]
  %v1920 = vld [vmem:[%s1916 + $0x18] sm:$0xff]
  %s1921 = scalar_lea.vmem %s4, 1
  %v1922 = vld [vmem:[%s1921] sm:$0x1]
  %v1924 = vlaneseq
  %v1925 = vshrl.u32 %v1924, 7
  %v1926 = vsub.s32 0, %v1925
  %v1927 = vrot.slane %v1922, %v1926
  %v1930 = vsel %vm395, %v1914, 0
  %v1933 = vsel %vm395, %v1915, 0
  %1935 = vmatprep.subr.mxu0 0.0
  %1936 = vmatpush1.msra.mxu0 %v1917
  %1937 = vmatprep.subr.mxu0 0.0
  %1938 = vmatpush1.msra.mxu0 %v1918
  %1939 = vmatprep.subr.mxu0 0.0
  %1940 = vmatpush1.msra.mxu0 %v1919
  %1941 = vmatprep.subr.mxu0 0.0
  %1942 = vmatpush1.msra.mxu0 %v1920
  %1943 = vmatprep.subr.mxu0 0.0
  %1944 = vmatpush1.msra.mxu0 0.0
  %1945 = vmatprep.subr.mxu0 0.0
  %1946 = vmatpush1.msra.mxu0 0.0
  %1947 = vmatprep.subr.mxu0 0.0
  %1948 = vmatpush1.msra.mxu0 0.0
  %1949 = vmatprep.subr.mxu0 0.0
  %1950 = vmatpush1.msra.mxu0 0.0
  %1951 = vmatprep.subr.mxu0 0.0
  %1952 = vmatpush1.msra.mxu0 0.0
  %1953 = vmatprep.subr.mxu0 0.0
  %1954 = vmatpush1.msra.mxu0 0.0
  %1955 = vmatprep.subr.mxu0 0.0
  %1956 = vmatpush1.msra.mxu0 0.0
  %1957 = vmatprep.subr.mxu0 0.0
  %1958 = vmatpush1.msra.mxu0 0.0
  %1959 = vmatprep.subr.mxu0 0.0
  %1960 = vmatpush1.msra.mxu0 0.0
  %1961 = vmatprep.subr.mxu0 0.0
  %1962 = vmatpush1.msra.mxu0 0.0
  %1963 = vmatprep.subr.mxu0 0.0
  %1964 = vmatpush1.msra.mxu0 0.0
  %1965 = vmatprep.subr.mxu0 0.0
  %1966 = vmatpush1.msra.mxu0 0.0
  %1967 = vmatprep.subr.mxu0 0.0
  %1968 = vmatpush1.msra.mxu0 0.0
  %1969 = vmatprep.subr.mxu0 0.0
  %1970 = vmatpush1.msra.mxu0 0.0
  %1971 = vmatprep.subr.mxu0 0.0
  %1972 = vmatpush1.msra.mxu0 0.0
  %1973 = vmatprep.subr.mxu0 0.0
  %1974 = vmatpush1.msra.mxu0 0.0
  %1975 = vmatprep.subr.mxu0 0.0
  %1976 = vmatpush1.msra.mxu0 0.0
  %1977 = vmatprep.subr.mxu0 0.0
  %1978 = vmatpush1.msra.mxu0 0.0
  %1979 = vmatprep.subr.mxu0 0.0
  %1980 = vmatpush1.msra.mxu0 0.0
  %1981 = vmatprep.subr.mxu0 0.0
  %1982 = vmatpush1.msra.mxu0 0.0
  %1983 = vmatprep.subr.mxu0 0.0
  %1984 = vmatpush1.msra.mxu0 0.0
  %1985 = vmatprep.subr.mxu0 0.0
  %1986 = vmatpush1.msra.mxu0 0.0
  %1987 = vmatprep.subr.mxu0 0.0
  %1988 = vmatpush1.msra.mxu0 0.0
  %1989 = vmatprep.subr.mxu0 0.0
  %1990 = vmatpush1.msra.mxu0 0.0
  %1991 = vmatprep.subr.mxu0 0.0
  %1992 = vmatpush1.msra.mxu0 0.0
  %1993 = vmatprep.subr.mxu0 0.0
  %1994 = vmatpush1.msra.mxu0 0.0
  %1995 = vmatprep.subr.mxu0 0.0
  %1996 = vmatpush1.msra.mxu0 0.0
  %1997 = vmatprep.subr.mxu0 0.0
  %1998 = vmatpush1.msra.mxu0 0.0
  %1999 = vmatprep.mubr.f32.mxu0 0.0
  %2000 = vmatmul.mubr.f32.gmra.mrb[0].mxu0 %v1930
  %v2001 = vpop.f32.mrb[0].mxu0
  %v2002 = vadd.f32 %v1927, %v2001
  %v2003 = vpop.f32.mrb[0].mxu0
  %2004 = vmatprep.mubr.f32.mxu0 0.0
  %2005 = vmatmul.mubr.f32.gmra.mrb[0].mxu0 %v1933
  %v2006 = vpop.f32.mrb[0].mxu0
  %v2007 = vadd.f32 %v1927, %v2006
  %v2008 = vpop.f32.mrb[0].mxu0
  %2009 = vdwg.mxu0
  %2012 = vrot.lane.b32.xlu0 %v2002, 96
  %v2013 = vpop.permute.xlu0 %2012
  %2014 = vrot.lane.b32.xlu0 %v2007, 96
  %v2015 = vpop.permute.xlu0 %2014
  %v2016 = vsel %vm521, %v2002, 0
  %v2018 = vsel %vm521, %v2007, 0
  %v2020 = vsel %vm521, %v2013, 0
  %v2022 = vsel %vm521, %v2015, 0
  %2024 = vmatprep.subr.mxu0 0.0
  %2025 = vmatpush1.xpose.msra.mxu0 %v2020
  %2026 = vmatprep.subr.mxu0 0.0
  %2027 = vmatpush1.xpose.msra.mxu0 %v2022
  %2028 = vmatprep.subr.mxu0 0.0
  %2029 = vmatpush1.xpose.msra.mxu0 0.0
  %2030 = vmatprep.subr.mxu0 0.0
  %2031 = vmatpush1.xpose.msra.mxu0 0.0
  %2032 = vmatprep.subr.mxu0 0.0
  %2033 = vmatpush1.xpose.msra.mxu0 0.0
  %2034 = vmatprep.subr.mxu0 0.0
  %2035 = vmatpush1.xpose.msra.mxu0 0.0
  %2036 = vmatprep.subr.mxu0 0.0
  %2037 = vmatpush1.xpose.msra.mxu0 0.0
  %2038 = vmatprep.subr.mxu0 0.0
  %2039 = vmatpush1.xpose.msra.mxu0 0.0
  %2040 = vmatprep.subr.mxu0 0.0
  %2041 = vmatpush1.xpose.msra.mxu0 0.0
  %2042 = vmatprep.subr.mxu0 0.0
  %2043 = vmatpush1.xpose.msra.mxu0 0.0
  %2044 = vmatprep.subr.mxu0 0.0
  %2045 = vmatpush1.xpose.msra.mxu0 0.0
  %2046 = vmatprep.subr.mxu0 0.0
  %2047 = vmatpush1.xpose.msra.mxu0 0.0
  %2048 = vmatprep.subr.mxu0 0.0
  %2049 = vmatpush1.xpose.msra.mxu0 0.0
  %2050 = vmatprep.subr.mxu0 0.0
  %2051 = vmatpush1.xpose.msra.mxu0 0.0
  %2052 = vmatprep.subr.mxu0 0.0
  %2053 = vmatpush1.xpose.msra.mxu0 0.0
  %2054 = vmatprep.subr.mxu0 0.0
  %2055 = vmatpush1.xpose.msra.mxu0 0.0
  %2056 = vmatprep.subr.mxu0 0.0
  %2057 = vmatpush1.xpose.msra.mxu0 0.0
  %2058 = vmatprep.subr.mxu0 0.0
  %2059 = vmatpush1.xpose.msra.mxu0 0.0
  %2060 = vmatprep.subr.mxu0 0.0
  %2061 = vmatpush1.xpose.msra.mxu0 0.0
  %2062 = vmatprep.subr.mxu0 0.0
  %2063 = vmatpush1.xpose.msra.mxu0 0.0
  %2064 = vmatprep.subr.mxu0 0.0
  %2065 = vmatpush1.xpose.msra.mxu0 0.0
  %2066 = vmatprep.subr.mxu0 0.0
  %2067 = vmatpush1.xpose.msra.mxu0 0.0
  %2068 = vmatprep.subr.mxu0 0.0
  %2069 = vmatpush1.xpose.msra.mxu0 0.0
  %2070 = vmatprep.subr.mxu0 0.0
  %2071 = vmatpush1.xpose.msra.mxu0 0.0
  %2072 = vmatprep.subr.mxu0 0.0
  %2073 = vmatpush1.xpose.msra.mxu0 0.0
  %2074 = vmatprep.subr.mxu0 0.0
  %2075 = vmatpush1.xpose.msra.mxu0 0.0
  %2076 = vmatprep.subr.mxu0 0.0
  %2077 = vmatpush1.xpose.msra.mxu0 0.0
  %2078 = vmatprep.subr.mxu0 0.0
  %2079 = vmatpush1.xpose.msra.mxu0 0.0
  %2080 = vmatprep.subr.mxu0 0.0
  %2081 = vmatpush1.xpose.msra.mxu0 0.0
  %2082 = vmatprep.subr.mxu0 0.0
  %2083 = vmatpush1.xpose.msra.mxu0 0.0
  %2084 = vmatprep.subr.mxu0 0.0
  %2085 = vmatpush1.xpose.msra.mxu0 0.0
  %2086 = vmatprep.subr.mxu0 0.0
  %2087 = vmatpush1.xpose.msra.mxu0 0.0
  %2088 = vmatprep.mubr.f32.mxu0 0.0
  %2089 = vmatmul.mubr.f32.gmra.mrb[0].mxu0 %v2016
  %v2090 = vpop.f32.mrb[0].mxu0
  %v2091 = vadd.f32 %v393, %v2090
  %v2092 = vpop.f32.mrb[0].mxu0
  %2093 = vmatprep.mubr.f32.mxu0 0.0
  %2094 = vmatmul.mubr.f32.gmra.mrb[0].mxu0 %v2018
  %v2095 = vpop.f32.mrb[0].mxu0
  %v2096 = vadd.f32 %v394, %v2095
  %v2097 = vpop.f32.mrb[0].mxu0
  %2098 = vdwg.mxu0
  %v2099 = vsel %vm605, %v2091, -inf
  %2100 = vmax.xlane.f32.xlu0 %v2099
  %v2101 = vpop.xlane.xlu0 %2100
  %v2102 = vsel %vm605, %v2096, -inf
  %2103 = vmax.xlane.f32.xlu0 %v2102
  %v2104 = vpop.xlane.xlu0 %2103
  %v2105 = vsub.f32 %v2091, %v2101
  %v2106 = vsub.f32 %v2096, %v2104
  %v2107 = vmul.f32 %v2105, 1.442695
  %v2108 = vpow.pop %v2107
  %v2109 = vmul.f32 %v2106, 1.442695
  %v2110 = vpow.pop %v2109
  %v2111 = vsel %vm605, %v2108, 0.0
  %2112 = vadd.xlane.f32.xlu0 %v2111
  %v2113 = vpop.xlane.xlu0 %2112
  %v2114 = vsel %vm605, %v2110, 0.0
  %2115 = vadd.xlane.f32.xlu0 %v2114
  %v2116 = vpop.xlane.xlu0 %2115
  %v2117 = vrcp.pop %v2113
  %v2118 = vrcp.pop %v2116
  %v2119 = vmul.f32 %v2108, %v2117
  %v2120 = vmul.f32 %v2110, %v2118
  %2121 = vrot.lane.b32.xlu0 %v2002, 64
  %v2122 = vpop.permute.xlu0 %2121
  %2123 = vrot.lane.b32.xlu0 %v2007, 64
  %v2124 = vpop.permute.xlu0 %2123
  %v2128 = vsel %vm605, %v2119, 0
  %v2131 = vsel %vm605, %v2120, 0
  %2133 = vmatprep.subr.mxu0 0.0
  %2134 = vmatpush1.msra.mxu0 %v2122
  %2135 = vmatprep.subr.mxu0 0.0
  %2136 = vmatpush1.msra.mxu0 %v2124
  %2137 = vmatprep.subr.mxu0 0.0
  %2138 = vmatpush1.msra.mxu0 0.0
  %2139 = vmatprep.subr.mxu0 0.0
  %2140 = vmatpush1.msra.mxu0 0.0
  %2141 = vmatprep.subr.mxu0 0.0
  %2142 = vmatpush1.msra.mxu0 0.0
  %2143 = vmatprep.subr.mxu0 0.0
  %2144 = vmatpush1.msra.mxu0 0.0
  %2145 = vmatprep.subr.mxu0 0.0
  %2146 = vmatpush1.msra.mxu0 0.0
  %2147 = vmatprep.subr.mxu0 0.0
  %2148 = vmatpush1.msra.mxu0 0.0
  %2149 = vmatprep.subr.mxu0 0.0
  %2150 = vmatpush1.msra.mxu0 0.0
  %2151 = vmatprep.subr.mxu0 0.0
  %2152 = vmatpush1.msra.mxu0 0.0
  %2153 = vmatprep.subr.mxu0 0.0
  %2154 = vmatpush1.msra.mxu0 0.0
  %2155 = vmatprep.subr.mxu0 0.0
  %2156 = vmatpush1.msra.mxu0 0.0
  %2157 = vmatprep.subr.mxu0 0.0
  %2158 = vmatpush1.msra.mxu0 0.0
  %2159 = vmatprep.subr.mxu0 0.0
  %2160 = vmatpush1.msra.mxu0 0.0
  %2161 = vmatprep.subr.mxu0 0.0
  %2162 = vmatpush1.msra.mxu0 0.0
  %2163 = vmatprep.subr.mxu0 0.0
  %2164 = vmatpush1.msra.mxu0 0.0
  %2165 = vmatprep.subr.mxu0 0.0
  %2166 = vmatpush1.msra.mxu0 0.0
  %2167 = vmatprep.subr.mxu0 0.0
  %2168 = vmatpush1.msra.mxu0 0.0
  %2169 = vmatprep.subr.mxu0 0.0
  %2170 = vmatpush1.msra.mxu0 0.0
  %2171 = vmatprep.subr.mxu0 0.0
  %2172 = vmatpush1.msra.mxu0 0.0
  %2173 = vmatprep.subr.mxu0 0.0
  %2174 = vmatpush1.msra.mxu0 0.0
  %2175 = vmatprep.subr.mxu0 0.0
  %2176 = vmatpush1.msra.mxu0 0.0
  %2177 = vmatprep.subr.mxu0 0.0
  %2178 = vmatpush1.msra.mxu0 0.0
  %2179 = vmatprep.subr.mxu0 0.0
  %2180 = vmatpush1.msra.mxu0 0.0
  %2181 = vmatprep.subr.mxu0 0.0
  %2182 = vmatpush1.msra.mxu0 0.0
  %2183 = vmatprep.subr.mxu0 0.0
  %2184 = vmatpush1.msra.mxu0 0.0
  %2185 = vmatprep.subr.mxu0 0.0
  %2186 = vmatpush1.msra.mxu0 0.0
  %2187 = vmatprep.subr.mxu0 0.0
  %2188 = vmatpush1.msra.mxu0 0.0
  %2189 = vmatprep.subr.mxu0 0.0
  %2190 = vmatpush1.msra.mxu0 0.0
  %2191 = vmatprep.subr.mxu0 0.0
  %2192 = vmatpush1.msra.mxu0 0.0
  %2193 = vmatprep.subr.mxu0 0.0
  %2194 = vmatpush1.msra.mxu0 0.0
  %2195 = vmatprep.subr.mxu0 0.0
  %2196 = vmatpush1.msra.mxu0 0.0
  %2197 = vmatprep.mubr.f32.mxu0 0.0
  %2198 = vmatmul.mubr.f32.gmra.mrb[0].mxu0 %v2128
  %v2199 = vpop.f32.mrb[0].mxu0
  %v2200 = vadd.f32 0.0, %v2199
  %v2201 = vpop.f32.mrb[0].mxu0
  %2202 = vmatprep.mubr.f32.mxu0 0.0
  %2203 = vmatmul.mubr.f32.gmra.mrb[0].mxu0 %v2131
  %v2204 = vpop.f32.mrb[0].mxu0
  %v2205 = vadd.f32 0.0, %v2204
  %v2206 = vpop.f32.mrb[0].mxu0
  %2207 = vdwg.mxu0
  %s2208 = scalar_lea.vmem %s5, 32
  %v2209 = vld [vmem:[%s2208] sm:$0xff]
  %2210 = vrot.lane.b32.xlu0 %v2002, 120
  %v2211 = vpop.permute.xlu0 %2210
  %2212 = vrot.lane.b32.xlu0 %v2007, 120
  %v2213 = vpop.permute.xlu0 %2212
  %2214 = vrot.lane.b32.xlu0 %v2002, 88
  %v2215 = vpop.permute.xlu0 %2214
  %2216 = vrot.lane.b32.xlu0 %v2007, 88
  %v2217 = vpop.permute.xlu0 %2216
  %v2218 = vsel %vm521, %v2211, 0
  %v2220 = vsel %vm521, %v2213, 0
  %v2222 = vsel %vm521, %v2215, 0
  %v2224 = vsel %vm521, %v2217, 0
  %2226 = vmatprep.subr.mxu0 0.0
  %2227 = vmatpush1.xpose.msra.mxu0 %v2222
  %2228 = vmatprep.subr.mxu0 0.0
  %2229 = vmatpush1.xpose.msra.mxu0 %v2224
  %2230 = vmatprep.subr.mxu0 0.0
  %2231 = vmatpush1.xpose.msra.mxu0 0.0
  %2232 = vmatprep.subr.mxu0 0.0
  %2233 = vmatpush1.xpose.msra.mxu0 0.0
  %2234 = vmatprep.subr.mxu0 0.0
  %2235 = vmatpush1.xpose.msra.mxu0 0.0
  %2236 = vmatprep.subr.mxu0 0.0
  %2237 = vmatpush1.xpose.msra.mxu0 0.0
  %2238 = vmatprep.subr.mxu0 0.0
  %2239 = vmatpush1.xpose.msra.mxu0 0.0
  %2240 = vmatprep.subr.mxu0 0.0
  %2241 = vmatpush1.xpose.msra.mxu0 0.0
  %2242 = vmatprep.subr.mxu0 0.0
  %2243 = vmatpush1.xpose.msra.mxu0 0.0
  %2244 = vmatprep.subr.mxu0 0.0
  %2245 = vmatpush1.xpose.msra.mxu0 0.0
  %2246 = vmatprep.subr.mxu0 0.0
  %2247 = vmatpush1.xpose.msra.mxu0 0.0
  %2248 = vmatprep.subr.mxu0 0.0
  %2249 = vmatpush1.xpose.msra.mxu0 0.0
  %2250 = vmatprep.subr.mxu0 0.0
  %2251 = vmatpush1.xpose.msra.mxu0 0.0
  %2252 = vmatprep.subr.mxu0 0.0
  %2253 = vmatpush1.xpose.msra.mxu0 0.0
  %2254 = vmatprep.subr.mxu0 0.0
  %2255 = vmatpush1.xpose.msra.mxu0 0.0
  %2256 = vmatprep.subr.mxu0 0.0
  %2257 = vmatpush1.xpose.msra.mxu0 0.0
  %2258 = vmatprep.subr.mxu0 0.0
  %2259 = vmatpush1.xpose.msra.mxu0 0.0
  %2260 = vmatprep.subr.mxu0 0.0
  %2261 = vmatpush1.xpose.msra.mxu0 0.0
  %2262 = vmatprep.subr.mxu0 0.0
  %2263 = vmatpush1.xpose.msra.mxu0 0.0
  %2264 = vmatprep.subr.mxu0 0.0
  %2265 = vmatpush1.xpose.msra.mxu0 0.0
  %2266 = vmatprep.subr.mxu0 0.0
  %2267 = vmatpush1.xpose.msra.mxu0 0.0
  %2268 = vmatprep.subr.mxu0 0.0
  %2269 = vmatpush1.xpose.msra.mxu0 0.0
  %2270 = vmatprep.subr.mxu0 0.0
  %2271 = vmatpush1.xpose.msra.mxu0 0.0
  %2272 = vmatprep.subr.mxu0 0.0
  %2273 = vmatpush1.xpose.msra.mxu0 0.0
  %2274 = vmatprep.subr.mxu0 0.0
  %2275 = vmatpush1.xpose.msra.mxu0 0.0
  %2276 = vmatprep.subr.mxu0 0.0
  %2277 = vmatpush1.xpose.msra.mxu0 0.0
  %2278 = vmatprep.subr.mxu0 0.0
  %2279 = vmatpush1.xpose.msra.mxu0 0.0
  %2280 = vmatprep.subr.mxu0 0.0
  %2281 = vmatpush1.xpose.msra.mxu0 0.0
  %2282 = vmatprep.subr.mxu0 0.0
  %2283 = vmatpush1.xpose.msra.mxu0 0.0
  %2284 = vmatprep.subr.mxu0 0.0
  %2285 = vmatpush1.xpose.msra.mxu0 0.0
  %2286 = vmatprep.subr.mxu0 0.0
  %2287 = vmatpush1.xpose.msra.mxu0 0.0
  %2288 = vmatprep.subr.mxu0 0.0
  %2289 = vmatpush1.xpose.msra.mxu0 0.0
  %2290 = vmatprep.mubr.f32.mxu0 0.0
  %2291 = vmatmul.mubr.f32.gmra.mrb[0].mxu0 %v2218
  %v2292 = vpop.f32.mrb[0].mxu0
  %v2293 = vadd.f32 %v393, %v2292
  %v2294 = vpop.f32.mrb[0].mxu0
  %2295 = vmatprep.mubr.f32.mxu0 0.0
  %2296 = vmatmul.mubr.f32.gmra.mrb[0].mxu0 %v2220
  %v2297 = vpop.f32.mrb[0].mxu0
  %v2298 = vadd.f32 %v394, %v2297
  %v2299 = vpop.f32.mrb[0].mxu0
  %2300 = vdwg.mxu0
  %v2301 = vsel %vm605, %v2293, -inf
  %2302 = vmax.xlane.f32.xlu0 %v2301
  %v2303 = vpop.xlane.xlu0 %2302
  %v2304 = vsel %vm605, %v2298, -inf
  %2305 = vmax.xlane.f32.xlu0 %v2304
  %v2306 = vpop.xlane.xlu0 %2305
  %v2307 = vsub.f32 %v2293, %v2303
  %v2308 = vsub.f32 %v2298, %v2306
  %v2309 = vmul.f32 %v2307, 1.442695
  %v2310 = vpow.pop %v2309
  %v2311 = vmul.f32 %v2308, 1.442695
  %v2312 = vpow.pop %v2311
  %v2313 = vsel %vm605, %v2310, 0.0
  %2314 = vadd.xlane.f32.xlu0 %v2313
  %v2315 = vpop.xlane.xlu0 %2314
  %v2316 = vsel %vm605, %v2312, 0.0
  %2317 = vadd.xlane.f32.xlu0 %v2316
  %v2318 = vpop.xlane.xlu0 %2317
  %v2319 = vrcp.pop %v2315
  %v2320 = vrcp.pop %v2318
  %v2321 = vmul.f32 %v2310, %v2319
  %v2322 = vmul.f32 %v2312, %v2320
  %2323 = vrot.lane.b32.xlu0 %v2002, 56
  %v2324 = vpop.permute.xlu0 %2323
  %2325 = vrot.lane.b32.xlu0 %v2007, 56
  %v2326 = vpop.permute.xlu0 %2325
  %v2330 = vsel %vm605, %v2321, 0
  %v2333 = vsel %vm605, %v2322, 0
  %2335 = vmatprep.subr.mxu0 0.0
  %2336 = vmatpush1.msra.mxu0 %v2324
  %2337 = vmatprep.subr.mxu0 0.0
  %2338 = vmatpush1.msra.mxu0 %v2326
  %2339 = vmatprep.subr.mxu0 0.0
  %2340 = vmatpush1.msra.mxu0 0.0
  %2341 = vmatprep.subr.mxu0 0.0
  %2342 = vmatpush1.msra.mxu0 0.0
  %2343 = vmatprep.subr.mxu0 0.0
  %2344 = vmatpush1.msra.mxu0 0.0
  %2345 = vmatprep.subr.mxu0 0.0
  %2346 = vmatpush1.msra.mxu0 0.0
  %2347 = vmatprep.subr.mxu0 0.0
  %2348 = vmatpush1.msra.mxu0 0.0
  %2349 = vmatprep.subr.mxu0 0.0
  %2350 = vmatpush1.msra.mxu0 0.0
  %2351 = vmatprep.subr.mxu0 0.0
  %2352 = vmatpush1.msra.mxu0 0.0
  %2353 = vmatprep.subr.mxu0 0.0
  %2354 = vmatpush1.msra.mxu0 0.0
  %2355 = vmatprep.subr.mxu0 0.0
  %2356 = vmatpush1.msra.mxu0 0.0
  %2357 = vmatprep.subr.mxu0 0.0
  %2358 = vmatpush1.msra.mxu0 0.0
  %2359 = vmatprep.subr.mxu0 0.0
  %2360 = vmatpush1.msra.mxu0 0.0
  %2361 = vmatprep.subr.mxu0 0.0
  %2362 = vmatpush1.msra.mxu0 0.0
  %2363 = vmatprep.subr.mxu0 0.0
  %2364 = vmatpush1.msra.mxu0 0.0
  %2365 = vmatprep.subr.mxu0 0.0
  %2366 = vmatpush1.msra.mxu0 0.0
  %2367 = vmatprep.subr.mxu0 0.0
  %2368 = vmatpush1.msra.mxu0 0.0
  %2369 = vmatprep.subr.mxu0 0.0
  %2370 = vmatpush1.msra.mxu0 0.0
  %2371 = vmatprep.subr.mxu0 0.0
  %2372 = vmatpush1.msra.mxu0 0.0
  %2373 = vmatprep.subr.mxu0 0.0
  %2374 = vmatpush1.msra.mxu0 0.0
  %2375 = vmatprep.subr.mxu0 0.0
  %2376 = vmatpush1.msra.mxu0 0.0
  %2377 = vmatprep.subr.mxu0 0.0
  %2378 = vmatpush1.msra.mxu0 0.0
  %2379 = vmatprep.subr.mxu0 0.0
  %2380 = vmatpush1.msra.mxu0 0.0
  %2381 = vmatprep.subr.mxu0 0.0
  %2382 = vmatpush1.msra.mxu0 0.0
  %2383 = vmatprep.subr.mxu0 0.0
  %2384 = vmatpush1.msra.mxu0 0.0
  %2385 = vmatprep.subr.mxu0 0.0
  %2386 = vmatpush1.msra.mxu0 0.0
  %2387 = vmatprep.subr.mxu0 0.0
  %2388 = vmatpush1.msra.mxu0 0.0
  %2389 = vmatprep.subr.mxu0 0.0
  %2390 = vmatpush1.msra.mxu0 0.0
  %2391 = vmatprep.subr.mxu0 0.0
  %2392 = vmatpush1.msra.mxu0 0.0
  %2393 = vmatprep.subr.mxu0 0.0
  %2394 = vmatpush1.msra.mxu0 0.0
  %2395 = vmatprep.subr.mxu0 0.0
  %2396 = vmatpush1.msra.mxu0 0.0
  %2397 = vmatprep.subr.mxu0 0.0
  %2398 = vmatpush1.msra.mxu0 0.0
  %2399 = vmatprep.mubr.f32.mxu0 0.0
  %2400 = vmatmul.mubr.f32.gmra.mrb[0].mxu0 %v2330
  %v2401 = vpop.f32.mrb[0].mxu0
  %v2402 = vadd.f32 0.0, %v2401
  %v2403 = vpop.f32.mrb[0].mxu0
  %2404 = vmatprep.mubr.f32.mxu0 0.0
  %2405 = vmatmul.mubr.f32.gmra.mrb[0].mxu0 %v2333
  %v2406 = vpop.f32.mrb[0].mxu0
  %v2407 = vadd.f32 0.0, %v2406
  %v2408 = vpop.f32.mrb[0].mxu0
  %2409 = vdwg.mxu0
  %s2410 = scalar_lea.vmem %s5, 40
  %v2411 = vld [vmem:[%s2410] sm:$0xff]
  %v2413 = vsel %vm521, %v2402, 0
  %v2416 = vsel %vm521, %v2407, 0
  %2418 = vmatprep.subr.mxu0 0.0
  %2419 = vmatpush1.msra.mxu0 %v2411
  %2420 = vmatprep.subr.mxu0 0.0
  %2421 = vmatpush1.msra.mxu0 0.0
  %2422 = vmatprep.subr.mxu0 0.0
  %2423 = vmatpush1.msra.mxu0 0.0
  %2424 = vmatprep.subr.mxu0 0.0
  %2425 = vmatpush1.msra.mxu0 0.0
  %2426 = vmatprep.subr.mxu0 0.0
  %2427 = vmatpush1.msra.mxu0 0.0
  %2428 = vmatprep.subr.mxu0 0.0
  %2429 = vmatpush1.msra.mxu0 0.0
  %2430 = vmatprep.subr.mxu0 0.0
  %2431 = vmatpush1.msra.mxu0 0.0
  %2432 = vmatprep.subr.mxu0 0.0
  %2433 = vmatpush1.msra.mxu0 0.0
  %2434 = vmatprep.subr.mxu0 0.0
  %2435 = vmatpush1.msra.mxu0 0.0
  %2436 = vmatprep.subr.mxu0 0.0
  %2437 = vmatpush1.msra.mxu0 0.0
  %2438 = vmatprep.subr.mxu0 0.0
  %2439 = vmatpush1.msra.mxu0 0.0
  %2440 = vmatprep.subr.mxu0 0.0
  %2441 = vmatpush1.msra.mxu0 0.0
  %2442 = vmatprep.subr.mxu0 0.0
  %2443 = vmatpush1.msra.mxu0 0.0
  %2444 = vmatprep.subr.mxu0 0.0
  %2445 = vmatpush1.msra.mxu0 0.0
  %2446 = vmatprep.subr.mxu0 0.0
  %2447 = vmatpush1.msra.mxu0 0.0
  %2448 = vmatprep.subr.mxu0 0.0
  %2449 = vmatpush1.msra.mxu0 0.0
  %2450 = vmatprep.subr.mxu0 0.0
  %2451 = vmatpush1.msra.mxu0 0.0
  %2452 = vmatprep.subr.mxu0 0.0
  %2453 = vmatpush1.msra.mxu0 0.0
  %2454 = vmatprep.subr.mxu0 0.0
  %2455 = vmatpush1.msra.mxu0 0.0
  %2456 = vmatprep.subr.mxu0 0.0
  %2457 = vmatpush1.msra.mxu0 0.0
  %2458 = vmatprep.subr.mxu0 0.0
  %2459 = vmatpush1.msra.mxu0 0.0
  %2460 = vmatprep.subr.mxu0 0.0
  %2461 = vmatpush1.msra.mxu0 0.0
  %2462 = vmatprep.subr.mxu0 0.0
  %2463 = vmatpush1.msra.mxu0 0.0
  %2464 = vmatprep.subr.mxu0 0.0
  %2465 = vmatpush1.msra.mxu0 0.0
  %2466 = vmatprep.subr.mxu0 0.0
  %2467 = vmatpush1.msra.mxu0 0.0
  %2468 = vmatprep.subr.mxu0 0.0
  %2469 = vmatpush1.msra.mxu0 0.0
  %2470 = vmatprep.subr.mxu0 0.0
  %2471 = vmatpush1.msra.mxu0 0.0
  %2472 = vmatprep.subr.mxu0 0.0
  %2473 = vmatpush1.msra.mxu0 0.0
  %2474 = vmatprep.subr.mxu0 0.0
  %2475 = vmatpush1.msra.mxu0 0.0
  %2476 = vmatprep.subr.mxu0 0.0
  %2477 = vmatpush1.msra.mxu0 0.0
  %2478 = vmatprep.subr.mxu0 0.0
  %2479 = vmatpush1.msra.mxu0 0.0
  %2480 = vmatprep.subr.mxu0 0.0
  %2481 = vmatpush1.msra.mxu0 0.0
  %2482 = vmatprep.mubr.f32.mxu0 0.0
  %2483 = vmatmul.mubr.f32.gmra.mrb[0].mxu0 %v2413
  %v2484 = vpop.f32.mrb[0].mxu0
  %v2485 = vadd.f32 0.0, %v2484
  %v2486 = vpop.f32.mrb[0].mxu0
  %2487 = vmatprep.mubr.f32.mxu0 0.0
  %2488 = vmatmul.mubr.f32.gmra.mrb[0].mxu0 %v2416
  %v2489 = vpop.f32.mrb[0].mxu0
  %v2490 = vadd.f32 0.0, %v2489
  %v2491 = vpop.f32.mrb[0].mxu0
  %2492 = vdwg.mxu0
  %v2494 = vsel %vm521, %v2200, 0
  %v2497 = vsel %vm521, %v2205, 0
  %2499 = vmatprep.subr.mxu0 0.0
  %2500 = vmatpush1.msra.mxu0 %v2209
  %2501 = vmatprep.subr.mxu0 0.0
  %2502 = vmatpush1.msra.mxu0 0.0
  %2503 = vmatprep.subr.mxu0 0.0
  %2504 = vmatpush1.msra.mxu0 0.0
  %2505 = vmatprep.subr.mxu0 0.0
  %2506 = vmatpush1.msra.mxu0 0.0
  %2507 = vmatprep.subr.mxu0 0.0
  %2508 = vmatpush1.msra.mxu0 0.0
  %2509 = vmatprep.subr.mxu0 0.0
  %2510 = vmatpush1.msra.mxu0 0.0
  %2511 = vmatprep.subr.mxu0 0.0
  %2512 = vmatpush1.msra.mxu0 0.0
  %2513 = vmatprep.subr.mxu0 0.0
  %2514 = vmatpush1.msra.mxu0 0.0
  %2515 = vmatprep.subr.mxu0 0.0
  %2516 = vmatpush1.msra.mxu0 0.0
  %2517 = vmatprep.subr.mxu0 0.0
  %2518 = vmatpush1.msra.mxu0 0.0
  %2519 = vmatprep.subr.mxu0 0.0
  %2520 = vmatpush1.msra.mxu0 0.0
  %2521 = vmatprep.subr.mxu0 0.0
  %2522 = vmatpush1.msra.mxu0 0.0
  %2523 = vmatprep.subr.mxu0 0.0
  %2524 = vmatpush1.msra.mxu0 0.0
  %2525 = vmatprep.subr.mxu0 0.0
  %2526 = vmatpush1.msra.mxu0 0.0
  %2527 = vmatprep.subr.mxu0 0.0
  %2528 = vmatpush1.msra.mxu0 0.0
  %2529 = vmatprep.subr.mxu0 0.0
  %2530 = vmatpush1.msra.mxu0 0.0
  %2531 = vmatprep.subr.mxu0 0.0
  %2532 = vmatpush1.msra.mxu0 0.0
  %2533 = vmatprep.subr.mxu0 0.0
  %2534 = vmatpush1.msra.mxu0 0.0
  %2535 = vmatprep.subr.mxu0 0.0
  %2536 = vmatpush1.msra.mxu0 0.0
  %2537 = vmatprep.subr.mxu0 0.0
  %2538 = vmatpush1.msra.mxu0 0.0
  %2539 = vmatprep.subr.mxu0 0.0
  %2540 = vmatpush1.msra.mxu0 0.0
  %2541 = vmatprep.subr.mxu0 0.0
  %2542 = vmatpush1.msra.mxu0 0.0
  %2543 = vmatprep.subr.mxu0 0.0
  %2544 = vmatpush1.msra.mxu0 0.0
  %2545 = vmatprep.subr.mxu0 0.0
  %2546 = vmatpush1.msra.mxu0 0.0
  %2547 = vmatprep.subr.mxu0 0.0
  %2548 = vmatpush1.msra.mxu0 0.0
  %2549 = vmatprep.subr.mxu0 0.0
  %2550 = vmatpush1.msra.mxu0 0.0
  %2551 = vmatprep.subr.mxu0 0.0
  %2552 = vmatpush1.msra.mxu0 0.0
  %2553 = vmatprep.subr.mxu0 0.0
  %2554 = vmatpush1.msra.mxu0 0.0
  %2555 = vmatprep.subr.mxu0 0.0
  %2556 = vmatpush1.msra.mxu0 0.0
  %2557 = vmatprep.subr.mxu0 0.0
  %2558 = vmatpush1.msra.mxu0 0.0
  %2559 = vmatprep.subr.mxu0 0.0
  %2560 = vmatpush1.msra.mxu0 0.0
  %2561 = vmatprep.subr.mxu0 0.0
  %2562 = vmatpush1.msra.mxu0 0.0
  %2563 = vmatprep.mubr.f32.mxu0 0.0
  %2564 = vmatmul.mubr.f32.gmra.mrb[0].mxu0 %v2494
  %v2565 = vpop.f32.mrb[0].mxu0
  %v2566 = vadd.f32 %v2485, %v2565
  %v2567 = vpop.f32.mrb[0].mxu0
  %2568 = vmatprep.mubr.f32.mxu0 0.0
  %2569 = vmatmul.mubr.f32.gmra.mrb[0].mxu0 %v2497
  %v2570 = vpop.f32.mrb[0].mxu0
  %v2571 = vadd.f32 %v2490, %v2570
  %v2572 = vpop.f32.mrb[0].mxu0
  %2573 = vdwg.mxu0
  %2574 = vrot.lane.b32.xlu0 %v2002, 112
  %v2575 = vpop.permute.xlu0 %2574
  %2576 = vrot.lane.b32.xlu0 %v2007, 112
  %v2577 = vpop.permute.xlu0 %2576
  %2578 = vrot.lane.b32.xlu0 %v2002, 80
  %v2579 = vpop.permute.xlu0 %2578
  %2580 = vrot.lane.b32.xlu0 %v2007, 80
  %v2581 = vpop.permute.xlu0 %2580
  %v2582 = vsel %vm521, %v2575, 0
  %v2584 = vsel %vm521, %v2577, 0
  %v2586 = vsel %vm521, %v2579, 0
  %v2588 = vsel %vm521, %v2581, 0
  %2590 = vmatprep.subr.mxu0 0.0
  %2591 = vmatpush1.xpose.msra.mxu0 %v2586
  %2592 = vmatprep.subr.mxu0 0.0
  %2593 = vmatpush1.xpose.msra.mxu0 %v2588
  %2594 = vmatprep.subr.mxu0 0.0
  %2595 = vmatpush1.xpose.msra.mxu0 0.0
  %2596 = vmatprep.subr.mxu0 0.0
  %2597 = vmatpush1.xpose.msra.mxu0 0.0
  %2598 = vmatprep.subr.mxu0 0.0
  %2599 = vmatpush1.xpose.msra.mxu0 0.0
  %2600 = vmatprep.subr.mxu0 0.0
  %2601 = vmatpush1.xpose.msra.mxu0 0.0
  %2602 = vmatprep.subr.mxu0 0.0
  %2603 = vmatpush1.xpose.msra.mxu0 0.0
  %2604 = vmatprep.subr.mxu0 0.0
  %2605 = vmatpush1.xpose.msra.mxu0 0.0
  %2606 = vmatprep.subr.mxu0 0.0
  %2607 = vmatpush1.xpose.msra.mxu0 0.0
  %2608 = vmatprep.subr.mxu0 0.0
  %2609 = vmatpush1.xpose.msra.mxu0 0.0
  %2610 = vmatprep.subr.mxu0 0.0
  %2611 = vmatpush1.xpose.msra.mxu0 0.0
  %2612 = vmatprep.subr.mxu0 0.0
  %2613 = vmatpush1.xpose.msra.mxu0 0.0
  %2614 = vmatprep.subr.mxu0 0.0
  %2615 = vmatpush1.xpose.msra.mxu0 0.0
  %2616 = vmatprep.subr.mxu0 0.0
  %2617 = vmatpush1.xpose.msra.mxu0 0.0
  %2618 = vmatprep.subr.mxu0 0.0
  %2619 = vmatpush1.xpose.msra.mxu0 0.0
  %2620 = vmatprep.subr.mxu0 0.0
  %2621 = vmatpush1.xpose.msra.mxu0 0.0
  %2622 = vmatprep.subr.mxu0 0.0
  %2623 = vmatpush1.xpose.msra.mxu0 0.0
  %2624 = vmatprep.subr.mxu0 0.0
  %2625 = vmatpush1.xpose.msra.mxu0 0.0
  %2626 = vmatprep.subr.mxu0 0.0
  %2627 = vmatpush1.xpose.msra.mxu0 0.0
  %2628 = vmatprep.subr.mxu0 0.0
  %2629 = vmatpush1.xpose.msra.mxu0 0.0
  %2630 = vmatprep.subr.mxu0 0.0
  %2631 = vmatpush1.xpose.msra.mxu0 0.0
  %2632 = vmatprep.subr.mxu0 0.0
  %2633 = vmatpush1.xpose.msra.mxu0 0.0
  %2634 = vmatprep.subr.mxu0 0.0
  %2635 = vmatpush1.xpose.msra.mxu0 0.0
  %2636 = vmatprep.subr.mxu0 0.0
  %2637 = vmatpush1.xpose.msra.mxu0 0.0
  %2638 = vmatprep.subr.mxu0 0.0
  %2639 = vmatpush1.xpose.msra.mxu0 0.0
  %2640 = vmatprep.subr.mxu0 0.0
  %2641 = vmatpush1.xpose.msra.mxu0 0.0
  %2642 = vmatprep.subr.mxu0 0.0
  %2643 = vmatpush1.xpose.msra.mxu0 0.0
  %2644 = vmatprep.subr.mxu0 0.0
  %2645 = vmatpush1.xpose.msra.mxu0 0.0
  %2646 = vmatprep.subr.mxu0 0.0
  %2647 = vmatpush1.xpose.msra.mxu0 0.0
  %2648 = vmatprep.subr.mxu0 0.0
  %2649 = vmatpush1.xpose.msra.mxu0 0.0
  %2650 = vmatprep.subr.mxu0 0.0
  %2651 = vmatpush1.xpose.msra.mxu0 0.0
  %2652 = vmatprep.subr.mxu0 0.0
  %2653 = vmatpush1.xpose.msra.mxu0 0.0
  %2654 = vmatprep.mubr.f32.mxu0 0.0
  %2655 = vmatmul.mubr.f32.gmra.mrb[0].mxu0 %v2582
  %v2656 = vpop.f32.mrb[0].mxu0
  %v2657 = vadd.f32 %v393, %v2656
  %v2658 = vpop.f32.mrb[0].mxu0
  %2659 = vmatprep.mubr.f32.mxu0 0.0
  %2660 = vmatmul.mubr.f32.gmra.mrb[0].mxu0 %v2584
  %v2661 = vpop.f32.mrb[0].mxu0
  %v2662 = vadd.f32 %v394, %v2661
  %v2663 = vpop.f32.mrb[0].mxu0
  %2664 = vdwg.mxu0
  %v2665 = vsel %vm605, %v2657, -inf
  %2666 = vmax.xlane.f32.xlu0 %v2665
  %v2667 = vpop.xlane.xlu0 %2666
  %v2668 = vsel %vm605, %v2662, -inf
  %2669 = vmax.xlane.f32.xlu0 %v2668
  %v2670 = vpop.xlane.xlu0 %2669
  %v2671 = vsub.f32 %v2657, %v2667
  %v2672 = vsub.f32 %v2662, %v2670
  %v2673 = vmul.f32 %v2671, 1.442695
  %v2674 = vpow.pop %v2673
  %v2675 = vmul.f32 %v2672, 1.442695
  %v2676 = vpow.pop %v2675
  %v2677 = vsel %vm605, %v2674, 0.0
  %2678 = vadd.xlane.f32.xlu0 %v2677
  %v2679 = vpop.xlane.xlu0 %2678
  %v2680 = vsel %vm605, %v2676, 0.0
  %2681 = vadd.xlane.f32.xlu0 %v2680
  %v2682 = vpop.xlane.xlu0 %2681
  %v2683 = vrcp.pop %v2679
  %v2684 = vrcp.pop %v2682
  %v2685 = vmul.f32 %v2674, %v2683
  %v2686 = vmul.f32 %v2676, %v2684
  %2687 = vrot.lane.b32.xlu0 %v2002, 48
  %v2688 = vpop.permute.xlu0 %2687
  %2689 = vrot.lane.b32.xlu0 %v2007, 48
  %v2690 = vpop.permute.xlu0 %2689
  %v2694 = vsel %vm605, %v2685, 0
  %v2697 = vsel %vm605, %v2686, 0
  %2699 = vmatprep.subr.mxu0 0.0
  %2700 = vmatpush1.msra.mxu0 %v2688
  %2701 = vmatprep.subr.mxu0 0.0
  %2702 = vmatpush1.msra.mxu0 %v2690
  %2703 = vmatprep.subr.mxu0 0.0
  %2704 = vmatpush1.msra.mxu0 0.0
  %2705 = vmatprep.subr.mxu0 0.0
  %2706 = vmatpush1.msra.mxu0 0.0
  %2707 = vmatprep.subr.mxu0 0.0
  %2708 = vmatpush1.msra.mxu0 0.0
  %2709 = vmatprep.subr.mxu0 0.0
  %2710 = vmatpush1.msra.mxu0 0.0
  %2711 = vmatprep.subr.mxu0 0.0
  %2712 = vmatpush1.msra.mxu0 0.0
  %2713 = vmatprep.subr.mxu0 0.0
  %2714 = vmatpush1.msra.mxu0 0.0
  %2715 = vmatprep.subr.mxu0 0.0
  %2716 = vmatpush1.msra.mxu0 0.0
  %2717 = vmatprep.subr.mxu0 0.0
  %2718 = vmatpush1.msra.mxu0 0.0
  %2719 = vmatprep.subr.mxu0 0.0
  %2720 = vmatpush1.msra.mxu0 0.0
  %2721 = vmatprep.subr.mxu0 0.0
  %2722 = vmatpush1.msra.mxu0 0.0
  %2723 = vmatprep.subr.mxu0 0.0
  %2724 = vmatpush1.msra.mxu0 0.0
  %2725 = vmatprep.subr.mxu0 0.0
  %2726 = vmatpush1.msra.mxu0 0.0
  %2727 = vmatprep.subr.mxu0 0.0
  %2728 = vmatpush1.msra.mxu0 0.0
  %2729 = vmatprep.subr.mxu0 0.0
  %2730 = vmatpush1.msra.mxu0 0.0
  %2731 = vmatprep.subr.mxu0 0.0
  %2732 = vmatpush1.msra.mxu0 0.0
  %2733 = vmatprep.subr.mxu0 0.0
  %2734 = vmatpush1.msra.mxu0 0.0
  %2735 = vmatprep.subr.mxu0 0.0
  %2736 = vmatpush1.msra.mxu0 0.0
  %2737 = vmatprep.subr.mxu0 0.0
  %2738 = vmatpush1.msra.mxu0 0.0
  %2739 = vmatprep.subr.mxu0 0.0
  %2740 = vmatpush1.msra.mxu0 0.0
  %2741 = vmatprep.subr.mxu0 0.0
  %2742 = vmatpush1.msra.mxu0 0.0
  %2743 = vmatprep.subr.mxu0 0.0
  %2744 = vmatpush1.msra.mxu0 0.0
  %2745 = vmatprep.subr.mxu0 0.0
  %2746 = vmatpush1.msra.mxu0 0.0
  %2747 = vmatprep.subr.mxu0 0.0
  %2748 = vmatpush1.msra.mxu0 0.0
  %2749 = vmatprep.subr.mxu0 0.0
  %2750 = vmatpush1.msra.mxu0 0.0
  %2751 = vmatprep.subr.mxu0 0.0
  %2752 = vmatpush1.msra.mxu0 0.0
  %2753 = vmatprep.subr.mxu0 0.0
  %2754 = vmatpush1.msra.mxu0 0.0
  %2755 = vmatprep.subr.mxu0 0.0
  %2756 = vmatpush1.msra.mxu0 0.0
  %2757 = vmatprep.subr.mxu0 0.0
  %2758 = vmatpush1.msra.mxu0 0.0
  %2759 = vmatprep.subr.mxu0 0.0
  %2760 = vmatpush1.msra.mxu0 0.0
  %2761 = vmatprep.subr.mxu0 0.0
  %2762 = vmatpush1.msra.mxu0 0.0
  %2763 = vmatprep.mubr.f32.mxu0 0.0
  %2764 = vmatmul.mubr.f32.gmra.mrb[0].mxu0 %v2694
  %v2765 = vpop.f32.mrb[0].mxu0
  %v2766 = vadd.f32 0.0, %v2765
  %v2767 = vpop.f32.mrb[0].mxu0
  %2768 = vmatprep.mubr.f32.mxu0 0.0
  %2769 = vmatmul.mubr.f32.gmra.mrb[0].mxu0 %v2697
  %v2770 = vpop.f32.mrb[0].mxu0
  %v2771 = vadd.f32 0.0, %v2770
  %v2772 = vpop.f32.mrb[0].mxu0
  %2773 = vdwg.mxu0
  %s2774 = scalar_lea.vmem %s5, 48
  %v2775 = vld [vmem:[%s2774] sm:$0xff]
  %v2777 = vsel %vm521, %v2766, 0
  %v2780 = vsel %vm521, %v2771, 0
  %2782 = vmatprep.subr.mxu0 0.0
  %2783 = vmatpush1.msra.mxu0 %v2775
  %2784 = vmatprep.subr.mxu0 0.0
  %2785 = vmatpush1.msra.mxu0 0.0
  %2786 = vmatprep.subr.mxu0 0.0
  %2787 = vmatpush1.msra.mxu0 0.0
  %2788 = vmatprep.subr.mxu0 0.0
  %2789 = vmatpush1.msra.mxu0 0.0
  %2790 = vmatprep.subr.mxu0 0.0
  %2791 = vmatpush1.msra.mxu0 0.0
  %2792 = vmatprep.subr.mxu0 0.0
  %2793 = vmatpush1.msra.mxu0 0.0
  %2794 = vmatprep.subr.mxu0 0.0
  %2795 = vmatpush1.msra.mxu0 0.0
  %2796 = vmatprep.subr.mxu0 0.0
  %2797 = vmatpush1.msra.mxu0 0.0
  %2798 = vmatprep.subr.mxu0 0.0
  %2799 = vmatpush1.msra.mxu0 0.0
  %2800 = vmatprep.subr.mxu0 0.0
  %2801 = vmatpush1.msra.mxu0 0.0
  %2802 = vmatprep.subr.mxu0 0.0
  %2803 = vmatpush1.msra.mxu0 0.0
  %2804 = vmatprep.subr.mxu0 0.0
  %2805 = vmatpush1.msra.mxu0 0.0
  %2806 = vmatprep.subr.mxu0 0.0
  %2807 = vmatpush1.msra.mxu0 0.0
  %2808 = vmatprep.subr.mxu0 0.0
  %2809 = vmatpush1.msra.mxu0 0.0
  %2810 = vmatprep.subr.mxu0 0.0
  %2811 = vmatpush1.msra.mxu0 0.0
  %2812 = vmatprep.subr.mxu0 0.0
  %2813 = vmatpush1.msra.mxu0 0.0
  %2814 = vmatprep.subr.mxu0 0.0
  %2815 = vmatpush1.msra.mxu0 0.0
  %2816 = vmatprep.subr.mxu0 0.0
  %2817 = vmatpush1.msra.mxu0 0.0
  %2818 = vmatprep.subr.mxu0 0.0
  %2819 = vmatpush1.msra.mxu0 0.0
  %2820 = vmatprep.subr.mxu0 0.0
  %2821 = vmatpush1.msra.mxu0 0.0
  %2822 = vmatprep.subr.mxu0 0.0
  %2823 = vmatpush1.msra.mxu0 0.0
  %2824 = vmatprep.subr.mxu0 0.0
  %2825 = vmatpush1.msra.mxu0 0.0
  %2826 = vmatprep.subr.mxu0 0.0
  %2827 = vmatpush1.msra.mxu0 0.0
  %2828 = vmatprep.subr.mxu0 0.0
  %2829 = vmatpush1.msra.mxu0 0.0
  %2830 = vmatprep.subr.mxu0 0.0
  %2831 = vmatpush1.msra.mxu0 0.0
  %2832 = vmatprep.subr.mxu0 0.0
  %2833 = vmatpush1.msra.mxu0 0.0
  %2834 = vmatprep.subr.mxu0 0.0
  %2835 = vmatpush1.msra.mxu0 0.0
  %2836 = vmatprep.subr.mxu0 0.0
  %2837 = vmatpush1.msra.mxu0 0.0
  %2838 = vmatprep.subr.mxu0 0.0
  %2839 = vmatpush1.msra.mxu0 0.0
  %2840 = vmatprep.subr.mxu0 0.0
  %2841 = vmatpush1.msra.mxu0 0.0
  %2842 = vmatprep.subr.mxu0 0.0
  %2843 = vmatpush1.msra.mxu0 0.0
  %2844 = vmatprep.subr.mxu0 0.0
  %2845 = vmatpush1.msra.mxu0 0.0
  %2846 = vmatprep.mubr.f32.mxu0 0.0
  %2847 = vmatmul.mubr.f32.gmra.mrb[0].mxu0 %v2777
  %v2848 = vpop.f32.mrb[0].mxu0
  %v2849 = vadd.f32 0.0, %v2848
  %v2850 = vpop.f32.mrb[0].mxu0
  %2851 = vmatprep.mubr.f32.mxu0 0.0
  %2852 = vmatmul.mubr.f32.gmra.mrb[0].mxu0 %v2780
  %v2853 = vpop.f32.mrb[0].mxu0
  %v2854 = vadd.f32 0.0, %v2853
  %v2855 = vpop.f32.mrb[0].mxu0
  %2856 = vdwg.mxu0
  %v2857 = vadd.f32 %v2566, %v2849
  %v2858 = vadd.f32 %v2571, %v2854
  %2859 = vrot.lane.b32.xlu0 %v2002, 104
  %v2860 = vpop.permute.xlu0 %2859
  %2861 = vrot.lane.b32.xlu0 %v2007, 104
  %v2862 = vpop.permute.xlu0 %2861
  %2863 = vrot.lane.b32.xlu0 %v2002, 72
  %v2864 = vpop.permute.xlu0 %2863
  %2865 = vrot.lane.b32.xlu0 %v2007, 72
  %v2866 = vpop.permute.xlu0 %2865
  %v2867 = vsel %vm521, %v2860, 0
  %v2869 = vsel %vm521, %v2862, 0
  %v2871 = vsel %vm521, %v2864, 0
  %v2873 = vsel %vm521, %v2866, 0
  %2875 = vmatprep.subr.mxu0 0.0
  %2876 = vmatpush1.xpose.msra.mxu0 %v2871
  %2877 = vmatprep.subr.mxu0 0.0
  %2878 = vmatpush1.xpose.msra.mxu0 %v2873
  %2879 = vmatprep.subr.mxu0 0.0
  %2880 = vmatpush1.xpose.msra.mxu0 0.0
  %2881 = vmatprep.subr.mxu0 0.0
  %2882 = vmatpush1.xpose.msra.mxu0 0.0
  %2883 = vmatprep.subr.mxu0 0.0
  %2884 = vmatpush1.xpose.msra.mxu0 0.0
  %2885 = vmatprep.subr.mxu0 0.0
  %2886 = vmatpush1.xpose.msra.mxu0 0.0
  %2887 = vmatprep.subr.mxu0 0.0
  %2888 = vmatpush1.xpose.msra.mxu0 0.0
  %2889 = vmatprep.subr.mxu0 0.0
  %2890 = vmatpush1.xpose.msra.mxu0 0.0
  %2891 = vmatprep.subr.mxu0 0.0
  %2892 = vmatpush1.xpose.msra.mxu0 0.0
  %2893 = vmatprep.subr.mxu0 0.0
  %2894 = vmatpush1.xpose.msra.mxu0 0.0
  %2895 = vmatprep.subr.mxu0 0.0
  %2896 = vmatpush1.xpose.msra.mxu0 0.0
  %2897 = vmatprep.subr.mxu0 0.0
  %2898 = vmatpush1.xpose.msra.mxu0 0.0
  %2899 = vmatprep.subr.mxu0 0.0
  %2900 = vmatpush1.xpose.msra.mxu0 0.0
  %2901 = vmatprep.subr.mxu0 0.0
  %2902 = vmatpush1.xpose.msra.mxu0 0.0
  %2903 = vmatprep.subr.mxu0 0.0
  %2904 = vmatpush1.xpose.msra.mxu0 0.0
  %2905 = vmatprep.subr.mxu0 0.0
  %2906 = vmatpush1.xpose.msra.mxu0 0.0
  %2907 = vmatprep.subr.mxu0 0.0
  %2908 = vmatpush1.xpose.msra.mxu0 0.0
  %2909 = vmatprep.subr.mxu0 0.0
  %2910 = vmatpush1.xpose.msra.mxu0 0.0
  %2911 = vmatprep.subr.mxu0 0.0
  %2912 = vmatpush1.xpose.msra.mxu0 0.0
  %2913 = vmatprep.subr.mxu0 0.0
  %2914 = vmatpush1.xpose.msra.mxu0 0.0
  %2915 = vmatprep.subr.mxu0 0.0
  %2916 = vmatpush1.xpose.msra.mxu0 0.0
  %2917 = vmatprep.subr.mxu0 0.0
  %2918 = vmatpush1.xpose.msra.mxu0 0.0
  %2919 = vmatprep.subr.mxu0 0.0
  %2920 = vmatpush1.xpose.msra.mxu0 0.0
  %2921 = vmatprep.subr.mxu0 0.0
  %2922 = vmatpush1.xpose.msra.mxu0 0.0
  %2923 = vmatprep.subr.mxu0 0.0
  %2924 = vmatpush1.xpose.msra.mxu0 0.0
  %2925 = vmatprep.subr.mxu0 0.0
  %2926 = vmatpush1.xpose.msra.mxu0 0.0
  %2927 = vmatprep.subr.mxu0 0.0
  %2928 = vmatpush1.xpose.msra.mxu0 0.0
  %2929 = vmatprep.subr.mxu0 0.0
  %2930 = vmatpush1.xpose.msra.mxu0 0.0
  %2931 = vmatprep.subr.mxu0 0.0
  %2932 = vmatpush1.xpose.msra.mxu0 0.0
  %2933 = vmatprep.subr.mxu0 0.0
  %2934 = vmatpush1.xpose.msra.mxu0 0.0
  %2935 = vmatprep.subr.mxu0 0.0
  %2936 = vmatpush1.xpose.msra.mxu0 0.0
  %2937 = vmatprep.subr.mxu0 0.0
  %2938 = vmatpush1.xpose.msra.mxu0 0.0
  %2939 = vmatprep.mubr.f32.mxu0 0.0
  %2940 = vmatmul.mubr.f32.gmra.mrb[0].mxu0 %v2867
  %v2941 = vpop.f32.mrb[0].mxu0
  %v2942 = vadd.f32 %v393, %v2941
  %v2943 = vpop.f32.mrb[0].mxu0
  %2944 = vmatprep.mubr.f32.mxu0 0.0
  %2945 = vmatmul.mubr.f32.gmra.mrb[0].mxu0 %v2869
  %v2946 = vpop.f32.mrb[0].mxu0
  %v2947 = vadd.f32 %v394, %v2946
  %v2948 = vpop.f32.mrb[0].mxu0
  %2949 = vdwg.mxu0
  %v2950 = vsel %vm605, %v2942, -inf
  %2951 = vmax.xlane.f32.xlu0 %v2950
  %v2952 = vpop.xlane.xlu0 %2951
  %v2953 = vsel %vm605, %v2947, -inf
  %2954 = vmax.xlane.f32.xlu0 %v2953
  %v2955 = vpop.xlane.xlu0 %2954
  %v2956 = vsub.f32 %v2942, %v2952
  %v2957 = vsub.f32 %v2947, %v2955
  %v2958 = vmul.f32 %v2956, 1.442695
  %v2959 = vpow.pop %v2958
  %v2960 = vmul.f32 %v2957, 1.442695
  %v2961 = vpow.pop %v2960
  %v2962 = vsel %vm605, %v2959, 0.0
  %2963 = vadd.xlane.f32.xlu0 %v2962
  %v2964 = vpop.xlane.xlu0 %2963
  %v2965 = vsel %vm605, %v2961, 0.0
  %2966 = vadd.xlane.f32.xlu0 %v2965
  %v2967 = vpop.xlane.xlu0 %2966
  %v2968 = vrcp.pop %v2964
  %v2969 = vrcp.pop %v2967
  %v2970 = vmul.f32 %v2959, %v2968
  %v2971 = vmul.f32 %v2961, %v2969
  %2972 = vrot.lane.b32.xlu0 %v2002, 40
  %v2973 = vpop.permute.xlu0 %2972
  %2974 = vrot.lane.b32.xlu0 %v2007, 40
  %v2975 = vpop.permute.xlu0 %2974
  %v2979 = vsel %vm605, %v2970, 0
  %v2982 = vsel %vm605, %v2971, 0
  %2984 = vmatprep.subr.mxu0 0.0
  %2985 = vmatpush1.msra.mxu0 %v2973
  %2986 = vmatprep.subr.mxu0 0.0
  %2987 = vmatpush1.msra.mxu0 %v2975
  %2988 = vmatprep.subr.mxu0 0.0
  %2989 = vmatpush1.msra.mxu0 0.0
  %2990 = vmatprep.subr.mxu0 0.0
  %2991 = vmatpush1.msra.mxu0 0.0
  %2992 = vmatprep.subr.mxu0 0.0
  %2993 = vmatpush1.msra.mxu0 0.0
  %2994 = vmatprep.subr.mxu0 0.0
  %2995 = vmatpush1.msra.mxu0 0.0
  %2996 = vmatprep.subr.mxu0 0.0
  %2997 = vmatpush1.msra.mxu0 0.0
  %2998 = vmatprep.subr.mxu0 0.0
  %2999 = vmatpush1.msra.mxu0 0.0
  %3000 = vmatprep.subr.mxu0 0.0
  %3001 = vmatpush1.msra.mxu0 0.0
  %3002 = vmatprep.subr.mxu0 0.0
  %3003 = vmatpush1.msra.mxu0 0.0
  %3004 = vmatprep.subr.mxu0 0.0
  %3005 = vmatpush1.msra.mxu0 0.0
  %3006 = vmatprep.subr.mxu0 0.0
  %3007 = vmatpush1.msra.mxu0 0.0
  %3008 = vmatprep.subr.mxu0 0.0
  %3009 = vmatpush1.msra.mxu0 0.0
  %3010 = vmatprep.subr.mxu0 0.0
  %3011 = vmatpush1.msra.mxu0 0.0
  %3012 = vmatprep.subr.mxu0 0.0
  %3013 = vmatpush1.msra.mxu0 0.0
  %3014 = vmatprep.subr.mxu0 0.0
  %3015 = vmatpush1.msra.mxu0 0.0
  %3016 = vmatprep.subr.mxu0 0.0
  %3017 = vmatpush1.msra.mxu0 0.0
  %3018 = vmatprep.subr.mxu0 0.0
  %3019 = vmatpush1.msra.mxu0 0.0
  %3020 = vmatprep.subr.mxu0 0.0
  %3021 = vmatpush1.msra.mxu0 0.0
  %3022 = vmatprep.subr.mxu0 0.0
  %3023 = vmatpush1.msra.mxu0 0.0
  %3024 = vmatprep.subr.mxu0 0.0
  %3025 = vmatpush1.msra.mxu0 0.0
  %3026 = vmatprep.subr.mxu0 0.0
  %3027 = vmatpush1.msra.mxu0 0.0
  %3028 = vmatprep.subr.mxu0 0.0
  %3029 = vmatpush1.msra.mxu0 0.0
  %3030 = vmatprep.subr.mxu0 0.0
  %3031 = vmatpush1.msra.mxu0 0.0
  %3032 = vmatprep.subr.mxu0 0.0
  %3033 = vmatpush1.msra.mxu0 0.0
  %3034 = vmatprep.subr.mxu0 0.0
  %3035 = vmatpush1.msra.mxu0 0.0
  %3036 = vmatprep.subr.mxu0 0.0
  %3037 = vmatpush1.msra.mxu0 0.0
  %3038 = vmatprep.subr.mxu0 0.0
  %3039 = vmatpush1.msra.mxu0 0.0
  %3040 = vmatprep.subr.mxu0 0.0
  %3041 = vmatpush1.msra.mxu0 0.0
  %3042 = vmatprep.subr.mxu0 0.0
  %3043 = vmatpush1.msra.mxu0 0.0
  %3044 = vmatprep.subr.mxu0 0.0
  %3045 = vmatpush1.msra.mxu0 0.0
  %3046 = vmatprep.subr.mxu0 0.0
  %3047 = vmatpush1.msra.mxu0 0.0
  %3048 = vmatprep.mubr.f32.mxu0 0.0
  %3049 = vmatmul.mubr.f32.gmra.mrb[0].mxu0 %v2979
  %v3050 = vpop.f32.mrb[0].mxu0
  %v3051 = vadd.f32 0.0, %v3050
  %v3052 = vpop.f32.mrb[0].mxu0
  %3053 = vmatprep.mubr.f32.mxu0 0.0
  %3054 = vmatmul.mubr.f32.gmra.mrb[0].mxu0 %v2982
  %v3055 = vpop.f32.mrb[0].mxu0
  %v3056 = vadd.f32 0.0, %v3055
  %v3057 = vpop.f32.mrb[0].mxu0
  %3058 = vdwg.mxu0
  %s3059 = scalar_lea.vmem %s5, 56
  %v3060 = vld [vmem:[%s3059] sm:$0xff]
  %v3062 = vsel %vm521, %v3051, 0
  %v3065 = vsel %vm521, %v3056, 0
  %3067 = vmatprep.subr.mxu0 0.0
  %3068 = vmatpush1.msra.mxu0 %v3060
  %3069 = vmatprep.subr.mxu0 0.0
  %3070 = vmatpush1.msra.mxu0 0.0
  %3071 = vmatprep.subr.mxu0 0.0
  %3072 = vmatpush1.msra.mxu0 0.0
  %3073 = vmatprep.subr.mxu0 0.0
  %3074 = vmatpush1.msra.mxu0 0.0
  %3075 = vmatprep.subr.mxu0 0.0
  %3076 = vmatpush1.msra.mxu0 0.0
  %3077 = vmatprep.subr.mxu0 0.0
  %3078 = vmatpush1.msra.mxu0 0.0
  %3079 = vmatprep.subr.mxu0 0.0
  %3080 = vmatpush1.msra.mxu0 0.0
  %3081 = vmatprep.subr.mxu0 0.0
  %3082 = vmatpush1.msra.mxu0 0.0
  %3083 = vmatprep.subr.mxu0 0.0
  %3084 = vmatpush1.msra.mxu0 0.0
  %3085 = vmatprep.subr.mxu0 0.0
  %3086 = vmatpush1.msra.mxu0 0.0
  %3087 = vmatprep.subr.mxu0 0.0
  %3088 = vmatpush1.msra.mxu0 0.0
  %3089 = vmatprep.subr.mxu0 0.0
  %3090 = vmatpush1.msra.mxu0 0.0
  %3091 = vmatprep.subr.mxu0 0.0
  %3092 = vmatpush1.msra.mxu0 0.0
  %3093 = vmatprep.subr.mxu0 0.0
  %3094 = vmatpush1.msra.mxu0 0.0
  %3095 = vmatprep.subr.mxu0 0.0
  %3096 = vmatpush1.msra.mxu0 0.0
  %3097 = vmatprep.subr.mxu0 0.0
  %3098 = vmatpush1.msra.mxu0 0.0
  %3099 = vmatprep.subr.mxu0 0.0
  %3100 = vmatpush1.msra.mxu0 0.0
  %3101 = vmatprep.subr.mxu0 0.0
  %3102 = vmatpush1.msra.mxu0 0.0
  %3103 = vmatprep.subr.mxu0 0.0
  %3104 = vmatpush1.msra.mxu0 0.0
  %3105 = vmatprep.subr.mxu0 0.0
  %3106 = vmatpush1.msra.mxu0 0.0
  %3107 = vmatprep.subr.mxu0 0.0
  %3108 = vmatpush1.msra.mxu0 0.0
  %3109 = vmatprep.subr.mxu0 0.0
  %3110 = vmatpush1.msra.mxu0 0.0
  %3111 = vmatprep.subr.mxu0 0.0
  %3112 = vmatpush1.msra.mxu0 0.0
  %3113 = vmatprep.subr.mxu0 0.0
  %3114 = vmatpush1.msra.mxu0 0.0
  %3115 = vmatprep.subr.mxu0 0.0
  %3116 = vmatpush1.msra.mxu0 0.0
  %3117 = vmatprep.subr.mxu0 0.0
  %3118 = vmatpush1.msra.mxu0 0.0
  %3119 = vmatprep.subr.mxu0 0.0
  %3120 = vmatpush1.msra.mxu0 0.0
  %3121 = vmatprep.subr.mxu0 0.0
  %3122 = vmatpush1.msra.mxu0 0.0
  %3123 = vmatprep.subr.mxu0 0.0
  %3124 = vmatpush1.msra.mxu0 0.0
  %3125 = vmatprep.subr.mxu0 0.0
  %3126 = vmatpush1.msra.mxu0 0.0
  %3127 = vmatprep.subr.mxu0 0.0
  %3128 = vmatpush1.msra.mxu0 0.0
  %3129 = vmatprep.subr.mxu0 0.0
  %3130 = vmatpush1.msra.mxu0 0.0
  %3131 = vmatprep.mubr.f32.mxu0 0.0
  %3132 = vmatmul.mubr.f32.gmra.mrb[0].mxu0 %v3062
  %v3133 = vpop.f32.mrb[0].mxu0
  %v3134 = vadd.f32 0.0, %v3133
  %v3135 = vpop.f32.mrb[0].mxu0
  %3136 = vmatprep.mubr.f32.mxu0 0.0
  %3137 = vmatmul.mubr.f32.gmra.mrb[0].mxu0 %v3065
  %v3138 = vpop.f32.mrb[0].mxu0
  %v3139 = vadd.f32 0.0, %v3138
  %v3140 = vpop.f32.mrb[0].mxu0
  %3141 = vdwg.mxu0
  %v3142 = vadd.f32 %v2857, %v3134
  %v3143 = vadd.f32 %v2858, %v3139
  %v3144 = vadd.f32 %v1888, %v3142
  %v3145 = vadd.f32 %v1889, %v3143
  %s3146 = scalar_lea.vmem %s6, 1
  %v3147 = vld [vmem:[%s3146] sm:$0x1]
  %v3149 = vlaneseq
  %v3150 = vshrl.u32 %v3149, 7
  %v3151 = vsub.s32 0, %v3150
  %v3152 = vrot.slane %v3147, %v3151
  %v3154 = vadd.f32 %v3144, %v3152
  %v3155 = vadd.f32 %v3145, %v3152
  %v3156 = vsel %vm395, %v3154, 0.0
  %3157 = vadd.xlane.f32.xlu0 %v3156
  %v3158 = vpop.xlane.xlu0 %3157
  %v3159 = vsel %vm395, %v3155, 0.0
  %3160 = vadd.xlane.f32.xlu0 %v3159
  %v3161 = vpop.xlane.xlu0 %3160
  %v3162 = vmul.f32 %v3158, %v402
  %v3163 = vmul.f32 %v3161, %v402
  %v3164 = vsub.f32 %v3154, %v3162
  %v3165 = vsub.f32 %v3155, %v3163
  %v3166 = vmul.f32 %v3164, %v3164
  %v3167 = vmul.f32 %v3165, %v3165
  %v3168 = vsel %vm395, %v3166, 0.0
  %3169 = vadd.xlane.f32.xlu0 %v3168
  %v3170 = vpop.xlane.xlu0 %3169
  %v3171 = vsel %vm395, %v3167, 0.0
  %3172 = vadd.xlane.f32.xlu0 %v3171
  %v3173 = vpop.xlane.xlu0 %3172
  %v3174 = vmul.f32 %v3170, %v402
  %v3175 = vmul.f32 %v3173, %v402
  %v3176 = vadd.f32 %v3174, 1e-06
  %v3177 = vadd.f32 %v3175, 1e-06
  %v3178 = vrsqrt.pop %v3176
  %v3179 = vrsqrt.pop %v3177
  %v3180 = vmul.f32 %v3164, %v3178
  %v3181 = vmul.f32 %v3165, %v3179
  %s3182 = scalar_lea.vmem %s7, 32
  %v3183 = vld [vmem:[%s3182] sm:$0xff]
  %v3184 = vld [vmem:[%s3182 + $0x8] sm:$0xff]
  %v3185 = vld [vmem:[%s3182 + $0x10] sm:$0xff]
  %v3186 = vld [vmem:[%s3182 + $0x18] sm:$0xff]
  %s3187 = scalar_lea.vmem %s8, 1
  %v3188 = vld [vmem:[%s3187] sm:$0x1]
  %v3190 = vlaneseq
  %v3191 = vshrl.u32 %v3190, 7
  %v3192 = vsub.s32 0, %v3191
  %v3193 = vrot.slane %v3188, %v3192
  %v3196 = vsel %vm395, %v3180, 0
  %v3199 = vsel %vm395, %v3181, 0
  %3201 = vmatprep.subr.mxu0 0.0
  %3202 = vmatpush1.msra.mxu0 %v3183
  %3203 = vmatprep.subr.mxu0 0.0
  %3204 = vmatpush1.msra.mxu0 %v3184
  %3205 = vmatprep.subr.mxu0 0.0
  %3206 = vmatpush1.msra.mxu0 %v3185
  %3207 = vmatprep.subr.mxu0 0.0
  %3208 = vmatpush1.msra.mxu0 %v3186
  %3209 = vmatprep.subr.mxu0 0.0
  %3210 = vmatpush1.msra.mxu0 0.0
  %3211 = vmatprep.subr.mxu0 0.0
  %3212 = vmatpush1.msra.mxu0 0.0
  %3213 = vmatprep.subr.mxu0 0.0
  %3214 = vmatpush1.msra.mxu0 0.0
  %3215 = vmatprep.subr.mxu0 0.0
  %3216 = vmatpush1.msra.mxu0 0.0
  %3217 = vmatprep.subr.mxu0 0.0
  %3218 = vmatpush1.msra.mxu0 0.0
  %3219 = vmatprep.subr.mxu0 0.0
  %3220 = vmatpush1.msra.mxu0 0.0
  %3221 = vmatprep.subr.mxu0 0.0
  %3222 = vmatpush1.msra.mxu0 0.0
  %3223 = vmatprep.subr.mxu0 0.0
  %3224 = vmatpush1.msra.mxu0 0.0
  %3225 = vmatprep.subr.mxu0 0.0
  %3226 = vmatpush1.msra.mxu0 0.0
  %3227 = vmatprep.subr.mxu0 0.0
  %3228 = vmatpush1.msra.mxu0 0.0
  %3229 = vmatprep.subr.mxu0 0.0
  %3230 = vmatpush1.msra.mxu0 0.0
  %3231 = vmatprep.subr.mxu0 0.0
  %3232 = vmatpush1.msra.mxu0 0.0
  %3233 = vmatprep.subr.mxu0 0.0
  %3234 = vmatpush1.msra.mxu0 0.0
  %3235 = vmatprep.subr.mxu0 0.0
  %3236 = vmatpush1.msra.mxu0 0.0
  %3237 = vmatprep.subr.mxu0 0.0
  %3238 = vmatpush1.msra.mxu0 0.0
  %3239 = vmatprep.subr.mxu0 0.0
  %3240 = vmatpush1.msra.mxu0 0.0
  %3241 = vmatprep.subr.mxu0 0.0
  %3242 = vmatpush1.msra.mxu0 0.0
  %3243 = vmatprep.subr.mxu0 0.0
  %3244 = vmatpush1.msra.mxu0 0.0
  %3245 = vmatprep.subr.mxu0 0.0
  %3246 = vmatpush1.msra.mxu0 0.0
  %3247 = vmatprep.subr.mxu0 0.0
  %3248 = vmatpush1.msra.mxu0 0.0
  %3249 = vmatprep.subr.mxu0 0.0
  %3250 = vmatpush1.msra.mxu0 0.0
  %3251 = vmatprep.subr.mxu0 0.0
  %3252 = vmatpush1.msra.mxu0 0.0
  %3253 = vmatprep.subr.mxu0 0.0
  %3254 = vmatpush1.msra.mxu0 0.0
  %3255 = vmatprep.subr.mxu0 0.0
  %3256 = vmatpush1.msra.mxu0 0.0
  %3257 = vmatprep.subr.mxu0 0.0
  %3258 = vmatpush1.msra.mxu0 0.0
  %3259 = vmatprep.subr.mxu0 0.0
  %3260 = vmatpush1.msra.mxu0 0.0
  %3261 = vmatprep.subr.mxu0 0.0
  %3262 = vmatpush1.msra.mxu0 0.0
  %3263 = vmatprep.subr.mxu0 0.0
  %3264 = vmatpush1.msra.mxu0 0.0
  %3265 = vmatprep.mubr.f32.mxu0 0.0
  %3266 = vmatmul.mubr.f32.gmra.mrb[0].mxu0 %v3196
  %v3267 = vpop.f32.mrb[0].mxu0
  %v3268 = vadd.f32 %v3193, %v3267
  %v3269 = vpop.f32.mrb[0].mxu0
  %3270 = vmatprep.mubr.f32.mxu0 0.0
  %3271 = vmatmul.mubr.f32.gmra.mrb[0].mxu0 %v3199
  %v3272 = vpop.f32.mrb[0].mxu0
  %v3273 = vadd.f32 %v3193, %v3272
  %v3274 = vpop.f32.mrb[0].mxu0
  %3275 = vdwg.mxu0
  %v3276 = vmul.f32 %v3268, 0.5
  %v3277 = vmul.f32 %v3273, 0.5
  %v3278 = vmul.f32 %v3268, 0.70710677
  %v3279 = vmul.f32 %v3273, 0.70710677
  %v3280 = verf.f32.pop %v3278
  %v3281 = verf.f32.pop %v3279
  %v3282 = vadd.f32 %v3280, 1.0
  %v3283 = vadd.f32 %v3281, 1.0
  %v3284 = vmul.f32 %v3276, %v3282
  %v3285 = vmul.f32 %v3277, %v3283
  %s3286 = scalar_lea.vmem %s9, 64
  %v3287 = vld [vmem:[%s3286] sm:$0xff]
  %v3288 = vld [vmem:[%s3286 + $0x8] sm:$0xff]
  %v3289 = vld [vmem:[%s3286 + $0x10] sm:$0xff]
  %v3290 = vld [vmem:[%s3286 + $0x18] sm:$0xff]
  %v3291 = vld [vmem:[%s3286 + $0x20] sm:$0xff]
  %v3292 = vld [vmem:[%s3286 + $0x28] sm:$0xff]
  %v3293 = vld [vmem:[%s3286 + $0x30] sm:$0xff]
  %v3294 = vld [vmem:[%s3286 + $0x38] sm:$0xff]
  %v3296 = vsel %vm1797, %v3284, 0
  %v3299 = vsel %vm1797, %v3285, 0
  %3301 = vmatprep.subr.mxu0 0.0
  %3302 = vmatpush1.msra.mxu0 %v3287
  %3303 = vmatprep.subr.mxu0 0.0
  %3304 = vmatpush1.msra.mxu0 %v3288
  %3305 = vmatprep.subr.mxu0 0.0
  %3306 = vmatpush1.msra.mxu0 %v3289
  %3307 = vmatprep.subr.mxu0 0.0
  %3308 = vmatpush1.msra.mxu0 %v3290
  %3309 = vmatprep.subr.mxu0 0.0
  %3310 = vmatpush1.msra.mxu0 %v3291
  %3311 = vmatprep.subr.mxu0 0.0
  %3312 = vmatpush1.msra.mxu0 %v3292
  %3313 = vmatprep.subr.mxu0 0.0
  %3314 = vmatpush1.msra.mxu0 %v3293
  %3315 = vmatprep.subr.mxu0 0.0
  %3316 = vmatpush1.msra.mxu0 %v3294
  %3317 = vmatprep.subr.mxu0 0.0
  %3318 = vmatpush1.msra.mxu0 0.0
  %3319 = vmatprep.subr.mxu0 0.0
  %3320 = vmatpush1.msra.mxu0 0.0
  %3321 = vmatprep.subr.mxu0 0.0
  %3322 = vmatpush1.msra.mxu0 0.0
  %3323 = vmatprep.subr.mxu0 0.0
  %3324 = vmatpush1.msra.mxu0 0.0
  %3325 = vmatprep.subr.mxu0 0.0
  %3326 = vmatpush1.msra.mxu0 0.0
  %3327 = vmatprep.subr.mxu0 0.0
  %3328 = vmatpush1.msra.mxu0 0.0
  %3329 = vmatprep.subr.mxu0 0.0
  %3330 = vmatpush1.msra.mxu0 0.0
  %3331 = vmatprep.subr.mxu0 0.0
  %3332 = vmatpush1.msra.mxu0 0.0
  %3333 = vmatprep.subr.mxu0 0.0
  %3334 = vmatpush1.msra.mxu0 0.0
  %3335 = vmatprep.subr.mxu0 0.0
  %3336 = vmatpush1.msra.mxu0 0.0
  %3337 = vmatprep.subr.mxu0 0.0
  %3338 = vmatpush1.msra.mxu0 0.0
  %3339 = vmatprep.subr.mxu0 0.0
  %3340 = vmatpush1.msra.mxu0 0.0
  %3341 = vmatprep.subr.mxu0 0.0
  %3342 = vmatpush1.msra.mxu0 0.0
  %3343 = vmatprep.subr.mxu0 0.0
  %3344 = vmatpush1.msra.mxu0 0.0
  %3345 = vmatprep.subr.mxu0 0.0
  %3346 = vmatpush1.msra.mxu0 0.0
  %3347 = vmatprep.subr.mxu0 0.0
  %3348 = vmatpush1.msra.mxu0 0.0
  %3349 = vmatprep.subr.mxu0 0.0
  %3350 = vmatpush1.msra.mxu0 0.0
  %3351 = vmatprep.subr.mxu0 0.0
  %3352 = vmatpush1.msra.mxu0 0.0
  %3353 = vmatprep.subr.mxu0 0.0
  %3354 = vmatpush1.msra.mxu0 0.0
  %3355 = vmatprep.subr.mxu0 0.0
  %3356 = vmatpush1.msra.mxu0 0.0
  %3357 = vmatprep.subr.mxu0 0.0
  %3358 = vmatpush1.msra.mxu0 0.0
  %3359 = vmatprep.subr.mxu0 0.0
  %3360 = vmatpush1.msra.mxu0 0.0
  %3361 = vmatprep.subr.mxu0 0.0
  %3362 = vmatpush1.msra.mxu0 0.0
  %3363 = vmatprep.subr.mxu0 0.0
  %3364 = vmatpush1.msra.mxu0 0.0
  %3365 = vmatprep.mubr.f32.mxu0 0.0
  %3366 = vmatmul.mubr.f32.gmra.mrb[0].mxu0 %v3296
  %v3367 = vpop.f32.mrb[0].mxu0
  %v3368 = vadd.f32 0.0, %v3367
  %v3369 = vpop.f32.mrb[0].mxu0
  %3370 = vmatprep.mubr.f32.mxu0 0.0
  %3371 = vmatmul.mubr.f32.gmra.mrb[0].mxu0 %v3299
  %v3372 = vpop.f32.mrb[0].mxu0
  %v3373 = vadd.f32 0.0, %v3372
  %v3374 = vpop.f32.mrb[0].mxu0
  %3375 = vdwg.mxu0
  %v3376 = vadd.f32 %v3154, %v3368
  %v3377 = vadd.f32 %v3155, %v3373
  %s3378 = scalar_lea.vmem %s10, 1
  %v3379 = vld [vmem:[%s3378] sm:$0x1]
  %v3381 = vlaneseq
  %v3382 = vshrl.u32 %v3381, 7
  %v3383 = vsub.s32 0, %v3382
  %v3384 = vrot.slane %v3379, %v3383
  %v3386 = vadd.f32 %v3376, %v3384
  %v3387 = vadd.f32 %v3377, %v3384
  %v3388 = vsel %vm395, %v3386, 0.0
  %3389 = vadd.xlane.f32.xlu0 %v3388
  %v3390 = vpop.xlane.xlu0 %3389
  %v3391 = vsel %vm395, %v3387, 0.0
  %3392 = vadd.xlane.f32.xlu0 %v3391
  %v3393 = vpop.xlane.xlu0 %3392
  %v3394 = vmul.f32 %v3390, %v402
  %v3395 = vmul.f32 %v3393, %v402
  %v3396 = vsub.f32 %v3386, %v3394
  %v3397 = vsub.f32 %v3387, %v3395
  %v3398 = vmul.f32 %v3396, %v3396
  %v3399 = vmul.f32 %v3397, %v3397
  %v3400 = vsel %vm395, %v3398, 0.0
  %3401 = vadd.xlane.f32.xlu0 %v3400
  %v3402 = vpop.xlane.xlu0 %3401
  %v3403 = vsel %vm395, %v3399, 0.0
  %3404 = vadd.xlane.f32.xlu0 %v3403
  %v3405 = vpop.xlane.xlu0 %3404
  %v3406 = vmul.f32 %v3402, %v402
  %v3407 = vmul.f32 %v3405, %v402
  %v3408 = vadd.f32 %v3406, 1e-06
  %v3409 = vadd.f32 %v3407, 1e-06
  %v3410 = vrsqrt.pop %v3408
  %v3411 = vrsqrt.pop %v3409
  %v3412 = vmul.f32 %v3396, %v3410
  %v3413 = vmul.f32 %v3397, %v3411
  %v3414 = vld [vmem:[%s11] sm:$0xff]
  %v3415 = vld [vmem:[%s11 + $0x8] sm:$0xff]
  %v3416 = vld [vmem:[%s11 + $0x10] sm:$0xff]
  %v3417 = vld [vmem:[%s11 + $0x18] sm:$0xff]
  %v3418 = vld [vmem:[%s12] sm:$0x1]
  %v3420 = vlaneseq
  %v3421 = vshrl.u32 %v3420, 7
  %v3422 = vsub.s32 0, %v3421
  %v3423 = vrot.slane %v3418, %v3422
  %v3426 = vsel %vm395, %v3412, 0
  %v3429 = vsel %vm395, %v3413, 0
  %3431 = vmatprep.subr.mxu0 0.0
  %3432 = vmatpush1.msra.mxu0 %v3414
  %3433 = vmatprep.subr.mxu0 0.0
  %3434 = vmatpush1.msra.mxu0 %v3415
  %3435 = vmatprep.subr.mxu0 0.0
  %3436 = vmatpush1.msra.mxu0 %v3416
  %3437 = vmatprep.subr.mxu0 0.0
  %3438 = vmatpush1.msra.mxu0 %v3417
  %3439 = vmatprep.subr.mxu0 0.0
  %3440 = vmatpush1.msra.mxu0 0.0
  %3441 = vmatprep.subr.mxu0 0.0
  %3442 = vmatpush1.msra.mxu0 0.0
  %3443 = vmatprep.subr.mxu0 0.0
  %3444 = vmatpush1.msra.mxu0 0.0
  %3445 = vmatprep.subr.mxu0 0.0
  %3446 = vmatpush1.msra.mxu0 0.0
  %3447 = vmatprep.subr.mxu0 0.0
  %3448 = vmatpush1.msra.mxu0 0.0
  %3449 = vmatprep.subr.mxu0 0.0
  %3450 = vmatpush1.msra.mxu0 0.0
  %3451 = vmatprep.subr.mxu0 0.0
  %3452 = vmatpush1.msra.mxu0 0.0
  %3453 = vmatprep.subr.mxu0 0.0
  %3454 = vmatpush1.msra.mxu0 0.0
  %3455 = vmatprep.subr.mxu0 0.0
  %3456 = vmatpush1.msra.mxu0 0.0
  %3457 = vmatprep.subr.mxu0 0.0
  %3458 = vmatpush1.msra.mxu0 0.0
  %3459 = vmatprep.subr.mxu0 0.0
  %3460 = vmatpush1.msra.mxu0 0.0
  %3461 = vmatprep.subr.mxu0 0.0
  %3462 = vmatpush1.msra.mxu0 0.0
  %3463 = vmatprep.subr.mxu0 0.0
  %3464 = vmatpush1.msra.mxu0 0.0
  %3465 = vmatprep.subr.mxu0 0.0
  %3466 = vmatpush1.msra.mxu0 0.0
  %3467 = vmatprep.subr.mxu0 0.0
  %3468 = vmatpush1.msra.mxu0 0.0
  %3469 = vmatprep.subr.mxu0 0.0
  %3470 = vmatpush1.msra.mxu0 0.0
  %3471 = vmatprep.subr.mxu0 0.0
  %3472 = vmatpush1.msra.mxu0 0.0
  %3473 = vmatprep.subr.mxu0 0.0
  %3474 = vmatpush1.msra.mxu0 0.0
  %3475 = vmatprep.subr.mxu0 0.0
  %3476 = vmatpush1.msra.mxu0 0.0
  %3477 = vmatprep.subr.mxu0 0.0
  %3478 = vmatpush1.msra.mxu0 0.0
  %3479 = vmatprep.subr.mxu0 0.0
  %3480 = vmatpush1.msra.mxu0 0.0
  %3481 = vmatprep.subr.mxu0 0.0
  %3482 = vmatpush1.msra.mxu0 0.0
  %3483 = vmatprep.subr.mxu0 0.0
  %3484 = vmatpush1.msra.mxu0 0.0
  %3485 = vmatprep.subr.mxu0 0.0
  %3486 = vmatpush1.msra.mxu0 0.0
  %3487 = vmatprep.subr.mxu0 0.0
  %3488 = vmatpush1.msra.mxu0 0.0
  %3489 = vmatprep.subr.mxu0 0.0
  %3490 = vmatpush1.msra.mxu0 0.0
  %3491 = vmatprep.subr.mxu0 0.0
  %3492 = vmatpush1.msra.mxu0 0.0
  %3493 = vmatprep.subr.mxu0 0.0
  %3494 = vmatpush1.msra.mxu0 0.0
  %3495 = vmatprep.mubr.f32.mxu0 0.0
  %3496 = vmatmul.mubr.f32.gmra.mrb[0].mxu0 %v3426
  %v3497 = vpop.f32.mrb[0].mxu0
  %v3498 = vadd.f32 %v3423, %v3497
  %v3499 = vpop.f32.mrb[0].mxu0
  %3500 = vmatprep.mubr.f32.mxu0 0.0
  %3501 = vmatmul.mubr.f32.gmra.mrb[0].mxu0 %v3429
  %v3502 = vpop.f32.mrb[0].mxu0
  %v3503 = vadd.f32 %v3423, %v3502
  %v3504 = vpop.f32.mrb[0].mxu0
  %3505 = vdwg.mxu0
  %3506 = vst [vmem:[%s13] sm:$0xff] %v3498
  %3507 = vst [vmem:[%s13 + $0x8] sm:$0xff] %v3503
  // Predicated region
  $region54: #{vit_forward.1} parent=0 // pred_check
    _
  $region55: #{vit_forward.1} parent=0 // pred_check_branch
    %3509 = sbr.rel (0) target = $region57
  $region56: #{vit_forward.1} parent=0 // pred_region
    _
  $region57: #{vit_forward.1} parent=0 // pred_fallthru
    _
  // Predicated region
  $region58: #{vit_forward.1} parent=0 // pred_check
    _
  $region59: #{vit_forward.1} parent=0 // pred_check_branch
    %3511 = sbr.rel (0) target = $region61
  $region60: #{vit_forward.1} parent=0 // pred_region
    _
  $region61: #{vit_forward.1} parent=0 // pred_fallthru
    _

</llo_original>
